<compile_context>
chip_gen: v7x
topology: tpu7x:2x2x1
jax: 0.10.0
libtpu: 0.0.40
codegen_flags: <defaults>
</compile_context>

<pallas_src>
import functools

import numpy as np
import jax
import jax.numpy as jnp
from jax.experimental import pallas as pl
from jax.experimental.pallas import tpu as pltpu

KH = 3  # conv kernel height
KW = 3  # conv kernel width


# ----------------------------------------------------------------------------
# Fused kernel (whole batch stacked along M / sublanes)
# ----------------------------------------------------------------------------
def _dqn_fused_kernel(x_ref, w1_ref, b1_ref, w2_ref, b2_ref, w3_ref, b3_ref,
                      fc1w_ref, fc1b_ref, fc2w_ref, fc2b_ref, out_ref,
                      *, nb, hin):

    def conv(x, w_ref, b_ref):
        """3x3 valid conv on the batch-stacked slab.

        x:     (R, Win*Cin) f32, rows n*hin + r per sample (junk at seams)
        w_ref: (3, Win*Cin, Wo*Cout) bf16 block-banded slabs (one per kh)
        b_ref: (1, Wo*Cout) f32 bias tiled over Wo
        returns (R-2, Wo*Cout) f32 = relu(conv + bias); seam rows are junk but
        are never consumed by subsequent layers.
        """
        r_out = x.shape[0] - (KH - 1)
        x16 = x.astype(jnp.bfloat16)
        p0 = jnp.dot(x16[0:r_out, :], w_ref[0], preferred_element_type=jnp.float32)
        p1 = jnp.dot(x16[1:r_out + 1, :], w_ref[1], preferred_element_type=jnp.float32)
        p2 = jnp.dot(x16[2:r_out + 2, :], w_ref[2], preferred_element_type=jnp.float32)
        return jnp.maximum((p0 + p1) + (p2 + b_ref[...]), 0.0)

    a1 = conv(x_ref[...], w1_ref, b1_ref)   # (nb*H-2, (W-2)*32)
    a2 = conv(a1, w2_ref, b2_ref)            # (nb*H-4, (W-4)*64)
    a3 = conv(a2, w3_ref, b3_ref)            # (nb*H-6, (W-6)*64)

    # fc1: flatten == sum over spatial rows i of (row_i @ per-row weight).
    # Computed as ho3 INDEPENDENT shifted matmuls over the junk-stacked rows,
    # tree-summed so the MXU weight pushes can pipeline.
    ho3 = fc1w_ref.shape[0]
    span = (nb - 1) * hin + 1                 # valid samples live at rows n*hin
    a3_16 = a3.astype(jnp.bfloat16)
    parts = [jnp.dot(a3_16[i:i + span, :], fc1w_ref[i],
                     preferred_element_type=jnp.float32)
             for i in range(ho3)]
    while len(parts) > 1:                     # static tree reduction
        parts = [parts[j] + parts[j + 1] if j + 1 < len(parts) else parts[j]
                 for j in range(0, len(parts), 2)]
    h_full = jnp.maximum(parts[0] + fc1b_ref[...], 0.0)      # (span, 256)

    # pick the nb valid rows (row n*hin per sample) -> (nb, 256)
    h = jnp.concatenate([h_full[n * hin:n * hin + 1, :] for n in range(nb)],
                        axis=0)

    # fc2: one matmul, one lane-dense (nb, 128) store.
    out_ref[...] = (jnp.dot(h.astype(jnp.bfloat16), fc2w_ref[...],
                            preferred_element_type=jnp.float32)
                    + fc2b_ref[...])


# ----------------------------------------------------------------------------
# Parameter init (PyTorch layout) and one-time packing to kernel layout
# ----------------------------------------------------------------------------
def init_dqn_params(key, input_shape, n_actions):
    C, H, W = input_shape
    assert C == 2, "DQN conv stack expects 2 input channels"
    ho, wo = H - 6, W - 6
    conv_out_size = 64 * ho * wo

    def uinit(k, shape, fan_in):
        bound = 1.0 / np.sqrt(float(fan_in))
        return jax.random.uniform(k, shape, jnp.float32, -bound, bound)

    ks = jax.random.split(key, 10)
    params = {
        "conv1_w": uinit(ks[0], (32, 2, 3, 3), 2 * 9),
        "conv1_b": uinit(ks[1], (32,), 2 * 9),
        "conv2_w": uinit(ks[2], (64, 32, 3, 3), 32 * 9),
        "conv2_b": uinit(ks[3], (64,), 32 * 9),
        "conv3_w": uinit(ks[4], (64, 64, 3, 3), 64 * 9),
        "conv3_b": uinit(ks[5], (64,), 64 * 9),
        "fc1_w": uinit(ks[6], (conv_out_size, 256), conv_out_size),
        "fc1_b": uinit(ks[7], (256,), conv_out_size),
        "fc2_w": uinit(ks[8], (256, n_actions), 256),
        "fc2_b": uinit(ks[9], (n_actions,), 256),
    }
    return params, conv_out_size


def _band_conv_weight(w_oihw, win):
    """OIHW (Cout,Cin,3,3) -> (3, win*Cin, (win-2)*Cout) bf16 block-banded slabs."""
    w = np.asarray(w_oihw, dtype=np.float32)
    cout, cin, kh_sz, kw_sz = w.shape
    wo = win - kw_sz + 1
    w_t = np.transpose(w, (2, 3, 1, 0))                       # (kh, kw, Cin, Cout)
    slab = np.zeros((kh_sz, win * cin, wo * cout), dtype=np.float32)
    for s in range(kw_sz):
        for j in range(wo):
            slab[:, (j + s) * cin:(j + s + 1) * cin,
                 j * cout:(j + 1) * cout] = w_t[:, s]
    return jnp.asarray(slab).astype(jnp.bfloat16)


def pack_params(params, input_shape, n_actions):
    """One-time host-side re-layout of weights into the fused-kernel format."""
    _, H, W = input_shape
    ho3, wo3 = H - 6, W - 6
    assert n_actions >= 1
    lane_pad = 128 * ((n_actions + 127) // 128)     # lane-dense fc2 output width

    packed = {
        "w1": _band_conv_weight(params["conv1_w"], W),
        "b1": jnp.tile(params["conv1_b"], W - 2)[None, :],
        "w2": _band_conv_weight(params["conv2_w"], W - 2),
        "b2": jnp.tile(params["conv2_b"], W - 4)[None, :],
        "w3": _band_conv_weight(params["conv3_w"], W - 4),
        "b3": jnp.tile(params["conv3_b"], W - 6)[None, :],
    }
    # fc1: PyTorch flattens NCHW as (c, i, j); kernel consumes row i of (j*C + c).
    fc1 = np.asarray(params["fc1_w"], dtype=np.float32)            # (64*ho3*wo3, 256)
    fc1 = fc1.reshape(64, ho3, wo3, 256).transpose(1, 2, 0, 3)     # (i, j, c, out)
    packed["fc1w"] = jnp.asarray(
        np.ascontiguousarray(fc1.reshape(ho3, wo3 * 64, 256))).astype(jnp.bfloat16)
    packed["fc1b"] = params["fc1_b"][None, :]
    # fc2: zero-pad n_actions up to a multiple of 128 lanes (unmasked final store).
    fc2_w = np.zeros((256, lane_pad), dtype=np.float32)
    fc2_w[:, :n_actions] = np.asarray(params["fc2_w"], dtype=np.float32)
    fc2_b = np.zeros((1, lane_pad), dtype=np.float32)
    fc2_b[0, :n_actions] = np.asarray(params["fc2_b"], dtype=np.float32)
    packed["fc2w"] = jnp.asarray(fc2_w).astype(jnp.bfloat16)
    packed["fc2b"] = jnp.asarray(fc2_b)
    return packed


# ----------------------------------------------------------------------------
# Forward (single fused pallas_call) and pure-JAX reference
# ----------------------------------------------------------------------------
def _cost_estimate(arrays, nb, cin, h, w, n_actions, out_cols):
    ho1, wo1, ho2, wo2, ho3, wo3 = h - 2, w - 2, h - 4, w - 4, h - 6, w - 6
    macs = nb * (ho1 * wo1 * 32 * (cin * 9)
                 + ho2 * wo2 * 64 * (32 * 9)
                 + ho3 * wo3 * 64 * (64 * 9)
                 + (64 * ho3 * wo3) * 256
                 + 256 * n_actions)
    bytes_accessed = sum(int(a.size) * int(a.dtype.itemsize) for a in arrays)
    bytes_accessed += nb * out_cols * 4
    return pl.CostEstimate(flops=2 * macs, transcendentals=0,
                           bytes_accessed=bytes_accessed)


@functools.partial(jax.jit, static_argnames=("n_actions",))
def dqn_forward(packed, x_nchw, n_actions):
    """x: (N, 2, H, W) f32 -> (N, n_actions) f32."""
    nb, cin, h, w = x_nchw.shape
    # channel-last row layout stacked over the batch:
    #   x_l[n*H + r, p*Cin + ci] = x[n, ci, r, p]
    x_l = jnp.transpose(x_nchw, (0, 2, 3, 1)).reshape(nb * h, w * cin)

    args = (x_l, packed["w1"], packed["b1"], packed["w2"], packed["b2"],
            packed["w3"], packed["b3"], packed["fc1w"], packed["fc1b"],
            packed["fc2w"], packed["fc2b"])
    out_cols = packed["fc2w"].shape[1]

    out_padded = pl.pallas_call(
        functools.partial(_dqn_fused_kernel, nb=nb, hin=h),
        out_shape=jax.ShapeDtypeStruct((nb, out_cols), jnp.float32),
        in_specs=[pl.BlockSpec(memory_space=pltpu.MemorySpace.VMEM)] * len(args),
        out_specs=pl.BlockSpec(memory_space=pltpu.MemorySpace.VMEM),
        cost_estimate=_cost_estimate(args, nb, cin, h, w, n_actions, out_cols),
    )(*args)
    return out_padded[:, :n_actions]


def dqn_reference(params, x):
    """Plain-JAX f32 reference with the original PyTorch-style NCHW semantics."""
    h = x
    for wn, bn in (("conv1_w", "conv1_b"), ("conv2_w", "conv2_b"),
                   ("conv3_w", "conv3_b")):
        h = jax.lax.conv_general_dilated(
            h, params[wn], window_strides=(1, 1), padding="VALID",
            dimension_numbers=("NCHW", "OIHW", "NCHW"))
        h = jnp.maximum(h + params[bn][None, :, None, None], 0.0)
    flat = h.reshape(h.shape[0], -1)            # NCHW .view(N, -1)
    h = jnp.maximum(flat @ params["fc1_w"] + params["fc1_b"], 0.0)
    return h @ params["fc2_w"] + params["fc2_b"]


if __name__ == "__main__":
    key = jax.random.PRNGKey(0)
    k_param, k_x = jax.random.split(key)

    batch = 2
    input_shape = (2, 10, 10)      # (C, H, W): conv stack 10 -> 8 -> 6 -> 4
    n_actions = 4

    params, conv_out_size = init_dqn_params(k_param, input_shape, n_actions)
    packed = pack_params(params, input_shape, n_actions)
    x = jax.random.normal(k_x, (batch,) + input_shape, dtype=jnp.float32)

    out = dqn_forward(packed, x, n_actions)
    jax.block_until_ready(out)

    ref = dqn_reference(params, x)
    assert out.shape == (batch, n_actions)
    max_err = float(jnp.max(jnp.abs(out - ref)))
    # Tolerance chosen for bf16 weights/activations with f32 accumulation.
    assert jnp.allclose(out, ref, rtol=5e-2, atol=5e-2), (
        f"mismatch vs f32 reference, max abs err {max_err}")

    # PyTorch's .double(): one host-side output-dtype cast, off the TPU hot path
    # (true f64 compute is not available on TPU).
    out64 = np.asarray(out, dtype=np.float64)
    assert out64.dtype == np.float64
    print("KERNEL_OK")
</pallas_src>

<mosaic_0001>
module attributes {stable_mosaic.version = 11 : i64} {
  func.func @_dqn_fused_kernel(%arg0: memref<20x20xf32, #tpu.memory_space<vmem>>, %arg1: memref<3x20x256xbf16, #tpu.memory_space<vmem>>, %arg2: memref<1x256xf32, #tpu.memory_space<vmem>>, %arg3: memref<3x256x384xbf16, #tpu.memory_space<vmem>>, %arg4: memref<1x384xf32, #tpu.memory_space<vmem>>, %arg5: memref<3x384x256xbf16, #tpu.memory_space<vmem>>, %arg6: memref<1x256xf32, #tpu.memory_space<vmem>>, %arg7: memref<4x256x256xbf16, #tpu.memory_space<vmem>>, %arg8: memref<1x256xf32, #tpu.memory_space<vmem>>, %arg9: memref<256x128xbf16, #tpu.memory_space<vmem>>, %arg10: memref<1x128xf32, #tpu.memory_space<vmem>>, %arg11: memref<2x128xf32, #tpu.memory_space<vmem>>) attributes {dimension_semantics = [], scalar_prefetch = 0 : i64, scratch_operands = 0 : i64, tpu.core_type = #tpu.core_type<tc>} {
    %c0 = arith.constant 0 : index
    %c0_0 = arith.constant 0 : index
    %0 = vector.load %arg0[%c0, %c0_0] : memref<20x20xf32, #tpu.memory_space<vmem>>, vector<20x20xf32>
    %1 = arith.truncf %0 : vector<20x20xf32> to vector<20x20xbf16>
    %2 = vector.extract_strided_slice %1 {offsets = [0, 0], sizes = [18, 20], strides = [1, 1]} : vector<20x20xbf16> to vector<18x20xbf16>
    %c0_1 = arith.constant 0 : index
    %c0_2 = arith.constant 0 : index
    %c0_3 = arith.constant 0 : index
    %3 = vector.load %arg1[%c0_1, %c0_2, %c0_3] : memref<3x20x256xbf16, #tpu.memory_space<vmem>>, vector<1x20x256xbf16>
    %4 = vector.shape_cast %3 : vector<1x20x256xbf16> to vector<20x256xbf16>
    %cst = arith.constant dense<0.000000e+00> : vector<18x256xf32>
    %5 = tpu.matmul %2, %4, %cst {dimension_numbers = #tpu.dot_dimension_numbers<[1], [0], [0], [1], [0, 0, 1, 1], [], []>} : vector<18x20xbf16>, vector<20x256xbf16>, vector<18x256xf32> -> vector<18x256xf32>
    %6 = vector.extract_strided_slice %1 {offsets = [1, 0], sizes = [18, 20], strides = [1, 1]} : vector<20x20xbf16> to vector<18x20xbf16>
    %c1 = arith.constant 1 : index
    %c0_4 = arith.constant 0 : index
    %c0_5 = arith.constant 0 : index
    %7 = vector.load %arg1[%c1, %c0_4, %c0_5] : memref<3x20x256xbf16, #tpu.memory_space<vmem>>, vector<1x20x256xbf16>
    %8 = vector.shape_cast %7 : vector<1x20x256xbf16> to vector<20x256xbf16>
    %cst_6 = arith.constant dense<0.000000e+00> : vector<18x256xf32>
    %9 = tpu.matmul %6, %8, %cst_6 {dimension_numbers = #tpu.dot_dimension_numbers<[1], [0], [0], [1], [0, 0, 1, 1], [], []>} : vector<18x20xbf16>, vector<20x256xbf16>, vector<18x256xf32> -> vector<18x256xf32>
    %10 = vector.extract_strided_slice %1 {offsets = [2, 0], sizes = [18, 20], strides = [1, 1]} : vector<20x20xbf16> to vector<18x20xbf16>
    %c2 = arith.constant 2 : index
    %c0_7 = arith.constant 0 : index
    %c0_8 = arith.constant 0 : index
    %11 = vector.load %arg1[%c2, %c0_7, %c0_8] : memref<3x20x256xbf16, #tpu.memory_space<vmem>>, vector<1x20x256xbf16>
    %12 = vector.shape_cast %11 : vector<1x20x256xbf16> to vector<20x256xbf16>
    %cst_9 = arith.constant dense<0.000000e+00> : vector<18x256xf32>
    %13 = tpu.matmul %10, %12, %cst_9 {dimension_numbers = #tpu.dot_dimension_numbers<[1], [0], [0], [1], [0, 0, 1, 1], [], []>} : vector<18x20xbf16>, vector<20x256xbf16>, vector<18x256xf32> -> vector<18x256xf32>
    %14 = arith.addf %5, %9 : vector<18x256xf32>
    %c0_10 = arith.constant 0 : index
    %c0_11 = arith.constant 0 : index
    %15 = vector.load %arg2[%c0_10, %c0_11] : memref<1x256xf32, #tpu.memory_space<vmem>>, vector<1x256xf32>
    %16 = vector.broadcast %15 : vector<1x256xf32> to vector<18x256xf32>
    %17 = arith.addf %13, %16 : vector<18x256xf32>
    %18 = arith.addf %14, %17 : vector<18x256xf32>
    %cst_12 = arith.constant 0.000000e+00 : f32
    %19 = vector.broadcast %cst_12 : f32 to vector<18x256xf32>
    %20 = arith.maximumf %18, %19 : vector<18x256xf32>
    %21 = arith.truncf %20 : vector<18x256xf32> to vector<18x256xbf16>
    %22 = vector.extract_strided_slice %21 {offsets = [0, 0], sizes = [16, 256], strides = [1, 1]} : vector<18x256xbf16> to vector<16x256xbf16>
    %c0_13 = arith.constant 0 : index
    %c0_14 = arith.constant 0 : index
    %c0_15 = arith.constant 0 : index
    %23 = vector.load %arg3[%c0_13, %c0_14, %c0_15] : memref<3x256x384xbf16, #tpu.memory_space<vmem>>, vector<1x256x384xbf16>
    %24 = vector.shape_cast %23 : vector<1x256x384xbf16> to vector<256x384xbf16>
    %cst_16 = arith.constant dense<0.000000e+00> : vector<16x384xf32>
    %25 = tpu.matmul %22, %24, %cst_16 {dimension_numbers = #tpu.dot_dimension_numbers<[1], [0], [0], [1], [0, 0, 1, 1], [], []>} : vector<16x256xbf16>, vector<256x384xbf16>, vector<16x384xf32> -> vector<16x384xf32>
    %26 = vector.extract_strided_slice %21 {offsets = [1, 0], sizes = [16, 256], strides = [1, 1]} : vector<18x256xbf16> to vector<16x256xbf16>
    %c1_17 = arith.constant 1 : index
    %c0_18 = arith.constant 0 : index
    %c0_19 = arith.constant 0 : index
    %27 = vector.load %arg3[%c1_17, %c0_18, %c0_19] : memref<3x256x384xbf16, #tpu.memory_space<vmem>>, vector<1x256x384xbf16>
    %28 = vector.shape_cast %27 : vector<1x256x384xbf16> to vector<256x384xbf16>
    %cst_20 = arith.constant dense<0.000000e+00> : vector<16x384xf32>
    %29 = tpu.matmul %26, %28, %cst_20 {dimension_numbers = #tpu.dot_dimension_numbers<[1], [0], [0], [1], [0, 0, 1, 1], [], []>} : vector<16x256xbf16>, vector<256x384xbf16>, vector<16x384xf32> -> vector<16x384xf32>
    %30 = vector.extract_strided_slice %21 {offsets = [2, 0], sizes = [16, 256], strides = [1, 1]} : vector<18x256xbf16> to vector<16x256xbf16>
    %c2_21 = arith.constant 2 : index
    %c0_22 = arith.constant 0 : index
    %c0_23 = arith.constant 0 : index
    %31 = vector.load %arg3[%c2_21, %c0_22, %c0_23] : memref<3x256x384xbf16, #tpu.memory_space<vmem>>, vector<1x256x384xbf16>
    %32 = vector.shape_cast %31 : vector<1x256x384xbf16> to vector<256x384xbf16>
    %cst_24 = arith.constant dense<0.000000e+00> : vector<16x384xf32>
    %33 = tpu.matmul %30, %32, %cst_24 {dimension_numbers = #tpu.dot_dimension_numbers<[1], [0], [0], [1], [0, 0, 1, 1], [], []>} : vector<16x256xbf16>, vector<256x384xbf16>, vector<16x384xf32> -> vector<16x384xf32>
    %34 = arith.addf %25, %29 : vector<16x384xf32>
    %c0_25 = arith.constant 0 : index
    %c0_26 = arith.constant 0 : index
    %35 = vector.load %arg4[%c0_25, %c0_26] : memref<1x384xf32, #tpu.memory_space<vmem>>, vector<1x384xf32>
    %36 = vector.broadcast %35 : vector<1x384xf32> to vector<16x384xf32>
    %37 = arith.addf %33, %36 : vector<16x384xf32>
    %38 = arith.addf %34, %37 : vector<16x384xf32>
    %cst_27 = arith.constant 0.000000e+00 : f32
    %39 = vector.broadcast %cst_27 : f32 to vector<16x384xf32>
    %40 = arith.maximumf %38, %39 : vector<16x384xf32>
    %41 = arith.truncf %40 : vector<16x384xf32> to vector<16x384xbf16>
    %42 = vector.extract_strided_slice %41 {offsets = [0, 0], sizes = [14, 384], strides = [1, 1]} : vector<16x384xbf16> to vector<14x384xbf16>
    %c0_28 = arith.constant 0 : index
    %c0_29 = arith.constant 0 : index
    %c0_30 = arith.constant 0 : index
    %43 = vector.load %arg5[%c0_28, %c0_29, %c0_30] : memref<3x384x256xbf16, #tpu.memory_space<vmem>>, vector<1x384x256xbf16>
    %44 = vector.shape_cast %43 : vector<1x384x256xbf16> to vector<384x256xbf16>
    %cst_31 = arith.constant dense<0.000000e+00> : vector<14x256xf32>
    %45 = tpu.matmul %42, %44, %cst_31 {dimension_numbers = #tpu.dot_dimension_numbers<[1], [0], [0], [1], [0, 0, 1, 1], [], []>} : vector<14x384xbf16>, vector<384x256xbf16>, vector<14x256xf32> -> vector<14x256xf32>
    %46 = vector.extract_strided_slice %41 {offsets = [1, 0], sizes = [14, 384], strides = [1, 1]} : vector<16x384xbf16> to vector<14x384xbf16>
    %c1_32 = arith.constant 1 : index
    %c0_33 = arith.constant 0 : index
    %c0_34 = arith.constant 0 : index
    %47 = vector.load %arg5[%c1_32, %c0_33, %c0_34] : memref<3x384x256xbf16, #tpu.memory_space<vmem>>, vector<1x384x256xbf16>
    %48 = vector.shape_cast %47 : vector<1x384x256xbf16> to vector<384x256xbf16>
    %cst_35 = arith.constant dense<0.000000e+00> : vector<14x256xf32>
    %49 = tpu.matmul %46, %48, %cst_35 {dimension_numbers = #tpu.dot_dimension_numbers<[1], [0], [0], [1], [0, 0, 1, 1], [], []>} : vector<14x384xbf16>, vector<384x256xbf16>, vector<14x256xf32> -> vector<14x256xf32>
    %50 = vector.extract_strided_slice %41 {offsets = [2, 0], sizes = [14, 384], strides = [1, 1]} : vector<16x384xbf16> to vector<14x384xbf16>
    %c2_36 = arith.constant 2 : index
    %c0_37 = arith.constant 0 : index
    %c0_38 = arith.constant 0 : index
    %51 = vector.load %arg5[%c2_36, %c0_37, %c0_38] : memref<3x384x256xbf16, #tpu.memory_space<vmem>>, vector<1x384x256xbf16>
    %52 = vector.shape_cast %51 : vector<1x384x256xbf16> to vector<384x256xbf16>
    %cst_39 = arith.constant dense<0.000000e+00> : vector<14x256xf32>
    %53 = tpu.matmul %50, %52, %cst_39 {dimension_numbers = #tpu.dot_dimension_numbers<[1], [0], [0], [1], [0, 0, 1, 1], [], []>} : vector<14x384xbf16>, vector<384x256xbf16>, vector<14x256xf32> -> vector<14x256xf32>
    %54 = arith.addf %45, %49 : vector<14x256xf32>
    %c0_40 = arith.constant 0 : index
    %c0_41 = arith.constant 0 : index
    %55 = vector.load %arg6[%c0_40, %c0_41] : memref<1x256xf32, #tpu.memory_space<vmem>>, vector<1x256xf32>
    %56 = vector.broadcast %55 : vector<1x256xf32> to vector<14x256xf32>
    %57 = arith.addf %53, %56 : vector<14x256xf32>
    %58 = arith.addf %54, %57 : vector<14x256xf32>
    %cst_42 = arith.constant 0.000000e+00 : f32
    %59 = vector.broadcast %cst_42 : f32 to vector<14x256xf32>
    %60 = arith.maximumf %58, %59 : vector<14x256xf32>
    %61 = arith.truncf %60 : vector<14x256xf32> to vector<14x256xbf16>
    %62 = vector.extract_strided_slice %61 {offsets = [0, 0], sizes = [11, 256], strides = [1, 1]} : vector<14x256xbf16> to vector<11x256xbf16>
    %c0_43 = arith.constant 0 : index
    %c0_44 = arith.constant 0 : index
    %c0_45 = arith.constant 0 : index
    %63 = vector.load %arg7[%c0_43, %c0_44, %c0_45] : memref<4x256x256xbf16, #tpu.memory_space<vmem>>, vector<1x256x256xbf16>
    %64 = vector.shape_cast %63 : vector<1x256x256xbf16> to vector<256x256xbf16>
    %cst_46 = arith.constant dense<0.000000e+00> : vector<11x256xf32>
    %65 = tpu.matmul %62, %64, %cst_46 {dimension_numbers = #tpu.dot_dimension_numbers<[1], [0], [0], [1], [0, 0, 1, 1], [], []>} : vector<11x256xbf16>, vector<256x256xbf16>, vector<11x256xf32> -> vector<11x256xf32>
    %66 = vector.extract_strided_slice %61 {offsets = [1, 0], sizes = [11, 256], strides = [1, 1]} : vector<14x256xbf16> to vector<11x256xbf16>
    %c1_47 = arith.constant 1 : index
    %c0_48 = arith.constant 0 : index
    %c0_49 = arith.constant 0 : index
    %67 = vector.load %arg7[%c1_47, %c0_48, %c0_49] : memref<4x256x256xbf16, #tpu.memory_space<vmem>>, vector<1x256x256xbf16>
    %68 = vector.shape_cast %67 : vector<1x256x256xbf16> to vector<256x256xbf16>
    %cst_50 = arith.constant dense<0.000000e+00> : vector<11x256xf32>
    %69 = tpu.matmul %66, %68, %cst_50 {dimension_numbers = #tpu.dot_dimension_numbers<[1], [0], [0], [1], [0, 0, 1, 1], [], []>} : vector<11x256xbf16>, vector<256x256xbf16>, vector<11x256xf32> -> vector<11x256xf32>
    %70 = vector.extract_strided_slice %61 {offsets = [2, 0], sizes = [11, 256], strides = [1, 1]} : vector<14x256xbf16> to vector<11x256xbf16>
    %c2_51 = arith.constant 2 : index
    %c0_52 = arith.constant 0 : index
    %c0_53 = arith.constant 0 : index
    %71 = vector.load %arg7[%c2_51, %c0_52, %c0_53] : memref<4x256x256xbf16, #tpu.memory_space<vmem>>, vector<1x256x256xbf16>
    %72 = vector.shape_cast %71 : vector<1x256x256xbf16> to vector<256x256xbf16>
    %cst_54 = arith.constant dense<0.000000e+00> : vector<11x256xf32>
    %73 = tpu.matmul %70, %72, %cst_54 {dimension_numbers = #tpu.dot_dimension_numbers<[1], [0], [0], [1], [0, 0, 1, 1], [], []>} : vector<11x256xbf16>, vector<256x256xbf16>, vector<11x256xf32> -> vector<11x256xf32>
    %74 = vector.extract_strided_slice %61 {offsets = [3, 0], sizes = [11, 256], strides = [1, 1]} : vector<14x256xbf16> to vector<11x256xbf16>
    %c3 = arith.constant 3 : index
    %c0_55 = arith.constant 0 : index
    %c0_56 = arith.constant 0 : index
    %75 = vector.load %arg7[%c3, %c0_55, %c0_56] : memref<4x256x256xbf16, #tpu.memory_space<vmem>>, vector<1x256x256xbf16>
    %76 = vector.shape_cast %75 : vector<1x256x256xbf16> to vector<256x256xbf16>
    %cst_57 = arith.constant dense<0.000000e+00> : vector<11x256xf32>
    %77 = tpu.matmul %74, %76, %cst_57 {dimension_numbers = #tpu.dot_dimension_numbers<[1], [0], [0], [1], [0, 0, 1, 1], [], []>} : vector<11x256xbf16>, vector<256x256xbf16>, vector<11x256xf32> -> vector<11x256xf32>
    %78 = arith.addf %65, %69 : vector<11x256xf32>
    %79 = arith.addf %73, %77 : vector<11x256xf32>
    %80 = arith.addf %78, %79 : vector<11x256xf32>
    %c0_58 = arith.constant 0 : index
    %c0_59 = arith.constant 0 : index
    %81 = vector.load %arg8[%c0_58, %c0_59] : memref<1x256xf32, #tpu.memory_space<vmem>>, vector<1x256xf32>
    %82 = vector.broadcast %81 : vector<1x256xf32> to vector<11x256xf32>
    %83 = arith.addf %80, %82 : vector<11x256xf32>
    %cst_60 = arith.constant 0.000000e+00 : f32
    %84 = vector.broadcast %cst_60 : f32 to vector<11x256xf32>
    %85 = arith.maximumf %83, %84 : vector<11x256xf32>
    %86 = vector.extract_strided_slice %85 {offsets = [0, 0], sizes = [1, 256], strides = [1, 1]} : vector<11x256xf32> to vector<1x256xf32>
    %87 = vector.extract_strided_slice %85 {offsets = [10, 0], sizes = [1, 256], strides = [1, 1]} : vector<11x256xf32> to vector<1x256xf32>
    %88 = tpu.concatenate %86, %87 in 0 : vector<1x256xf32>, vector<1x256xf32> -> vector<2x256xf32>
    %89 = arith.truncf %88 : vector<2x256xf32> to vector<2x256xbf16>
    %c0_61 = arith.constant 0 : index
    %c0_62 = arith.constant 0 : index
    %90 = vector.load %arg9[%c0_61, %c0_62] : memref<256x128xbf16, #tpu.memory_space<vmem>>, vector<256x128xbf16>
    %cst_63 = arith.constant dense<0.000000e+00> : vector<2x128xf32>
    %91 = tpu.matmul %89, %90, %cst_63 {dimension_numbers = #tpu.dot_dimension_numbers<[1], [0], [0], [1], [0, 0, 1, 1], [], []>} : vector<2x256xbf16>, vector<256x128xbf16>, vector<2x128xf32> -> vector<2x128xf32>
    %c0_64 = arith.constant 0 : index
    %c0_65 = arith.constant 0 : index
    %92 = vector.load %arg10[%c0_64, %c0_65] : memref<1x128xf32, #tpu.memory_space<vmem>>, vector<1x128xf32>
    %93 = vector.broadcast %92 : vector<1x128xf32> to vector<2x128xf32>
    %94 = arith.addf %91, %93 : vector<2x128xf32>
    %c0_66 = arith.constant 0 : index
    %c0_67 = arith.constant 0 : index
    %95 = vector.load %arg11[%c0_66, %c0_67] : memref<2x128xf32, #tpu.memory_space<vmem>>, vector<2x128xf32>
    tpu.vector_store %arg11[%c0_66, %c0_67], %94 {strides = array<i32>} : memref<2x128xf32, #tpu.memory_space<vmem>>, vector<2x128xf32>,
    return
  }
}

</mosaic_0001>

<llo_original>
// kernel: dqn_forward.1
$region0: #{dqn_forward.1}
  #allocation0 [shape = 'u32[]', space=smem, size = 0x4, offset = 0x4, fixed_abs, tag = 'smem constant byte address 0x4 - core index']
  #allocation1 [shape = 'u32[144,128]{1,0:T(1,128)}', space=vmem, size = 0x12000, scoped, tag = 'internal scratch']
  %s0 = inlined_call_operand.vmem [shape: f32[20,20], index: 0, kind: input, shape index: {}]
  %s1 = inlined_call_operand.vmem [shape: bf16[3,20,256], index: 1, kind: input, shape index: {}]
  %s2 = inlined_call_operand.vmem [shape: f32[1,256], index: 2, kind: input, shape index: {}]
  %s3 = inlined_call_operand.hbm [shape: bf16[3,256,384], index: 3, kind: input, shape index: {}]
  %s4 = inlined_call_operand.vmem [shape: f32[1,384], index: 4, kind: input, shape index: {}]
  %s5 = inlined_call_operand.hbm [shape: bf16[3,384,256], index: 5, kind: input, shape index: {}]
  %s6 = inlined_call_operand.vmem [shape: f32[1,256], index: 6, kind: input, shape index: {}]
  %s7 = inlined_call_operand.hbm [shape: bf16[4,256,256], index: 7, kind: input, shape index: {}]
  %s8 = inlined_call_operand.vmem [shape: f32[1,256], index: 8, kind: input, shape index: {}]
  %s9 = inlined_call_operand.vmem [shape: bf16[256,128], index: 9, kind: input, shape index: {}]
  %s10 = inlined_call_operand.vmem [shape: f32[1,128], index: 10, kind: input, shape index: {}]
  %s11 = inlined_call_operand.hbm [shape: f32[2,128], index: 11, kind: output, shape index: {}]
  %s12 = sld [smem:[#allocation0]]
  $region66: #{dqn_forward.1} parent=0
    _
  %s14 = ssub.s32 1, %s12
  %s15 = scalar_select 0, %s14, %s12
  $region1: #{dqn_forward.1} parent=0
    #allocation2 [shape = 'u8[589824]{0}', space=vmem, size = 0x90000, scoped, tag = 'input window, operand 3, single buffered']
    #allocation3 [shape = 's32[1]{0}', space=sflag, size = 0x4, scoped, tag = 'scoped memory for dqn_forward.1']
    #allocation4 [shape = 's32[1]{0}', space=sflag, size = 0x4, scoped, tag = 'scoped memory for dqn_forward.1']
    #allocation5 [shape = 'u8[589824]{0}', space=vmem, size = 0x90000, scoped, tag = 'input window, operand 5, single buffered']
    #allocation6 [shape = 's32[1]{0}', space=sflag, size = 0x4, scoped, tag = 'scoped memory for dqn_forward.1']
    #allocation7 [shape = 'u8[524288]{0}', space=vmem, size = 0x80000, scoped, tag = 'input window, operand 7, single buffered']
    #allocation8 [shape = 'u8[1024]{0}', space=vmem, size = 0x400, scoped, tag = 'output window, operand 0, single buffered']
    %16 = vsyncpa [#allocation3], 0
    %17 = vsyncpa [#allocation6], 0
    %18 = vsyncpa [#allocation4], 0
    // Predicated region
    $region2: #{dqn_forward.1} parent=1 // pred_check
      _
    $region3: #{dqn_forward.1} parent=1 // pred_check_branch
      %20 = sbr.rel (0) target = $region5
    $region4: #{dqn_forward.1} parent=1 // pred_region
      _
    $region5: #{dqn_forward.1} parent=1 // pred_fallthru
      _
    // Predicated region
    $region6: #{dqn_forward.1} parent=1 // pred_check
      _
    $region7: #{dqn_forward.1} parent=1 // pred_check_branch
      %22 = sbr.rel (0) target = $region9
    $region8: #{dqn_forward.1} parent=1 // pred_region
      _
    $region9: #{dqn_forward.1} parent=1 // pred_fallthru
      _
    // Predicated region
    $region10: #{dqn_forward.1} parent=1 // pred_check
      _
    $region11: #{dqn_forward.1} parent=1 // pred_check_branch
      %24 = sbr.rel (0) target = $region13
    $region12: #{dqn_forward.1} parent=1 // pred_region
      _
    $region13: #{dqn_forward.1} parent=1 // pred_fallthru
      _
    // Predicated region
    $region14: #{dqn_forward.1} parent=1 // pred_check
      _
    $region15: #{dqn_forward.1} parent=1 // pred_check_branch
      %26 = sbr.rel (0) target = $region17
    $region16: #{dqn_forward.1} parent=1 // pred_region
      %s28 = ssub.s32 18432, 18432
      %29 = vsyncadd [#allocation3], %s28
      %s30 = sshll.u32 [#allocation2], 4
      %s31 = int_to_ptr.vmem [resolvable:$true] %s30
      %36 = dma.hbm_to_vmem [thread:$0]  %s3, 18432, %s31, [#allocation3], 192, 192, 12
    $region17: #{dqn_forward.1} parent=1 // pred_fallthru
      _
    // Predicated region
    $region18: #{dqn_forward.1} parent=1 // pred_check
      _
    $region19: #{dqn_forward.1} parent=1 // pred_check_branch
      %38 = sbr.rel (0) target = $region21
    $region20: #{dqn_forward.1} parent=1 // pred_region
      _
    $region21: #{dqn_forward.1} parent=1 // pred_fallthru
      _
    // Predicated region
    $region22: #{dqn_forward.1} parent=1 // pred_check
      _
    $region23: #{dqn_forward.1} parent=1 // pred_check_branch
      %40 = sbr.rel (0) target = $region25
    $region24: #{dqn_forward.1} parent=1 // pred_region
      %s42 = ssub.s32 18432, 18432
      %43 = vsyncadd [#allocation6], %s42
      %s44 = sshll.u32 [#allocation5], 4
      %s45 = int_to_ptr.vmem [resolvable:$true] %s44
      %50 = dma.hbm_to_vmem [thread:$0]  %s5, 18432, %s45, [#allocation6], 128, 128, 8
    $region25: #{dqn_forward.1} parent=1 // pred_fallthru
      _
    // Predicated region
    $region26: #{dqn_forward.1} parent=1 // pred_check
      _
    $region27: #{dqn_forward.1} parent=1 // pred_check_branch
      %52 = sbr.rel (0) target = $region29
    $region28: #{dqn_forward.1} parent=1 // pred_region
      _
    $region29: #{dqn_forward.1} parent=1 // pred_fallthru
      _
    // Predicated region
    $region30: #{dqn_forward.1} parent=1 // pred_check
      _
    $region31: #{dqn_forward.1} parent=1 // pred_check_branch
      %54 = sbr.rel (0) target = $region33
    $region32: #{dqn_forward.1} parent=1 // pred_region
      %s56 = ssub.s32 16384, 16384
      %57 = vsyncadd [#allocation6], %s56
      %s58 = sshll.u32 [#allocation7], 4
      %s59 = int_to_ptr.vmem [resolvable:$true] %s58
      %64 = dma.hbm_to_vmem [thread:$0]  %s7, 16384, %s59, [#allocation6], 128, 128, 8
    $region33: #{dqn_forward.1} parent=1 // pred_fallthru
      _
    // Predicated region
    $region34: #{dqn_forward.1} parent=1 // pred_check
      _
    $region35: #{dqn_forward.1} parent=1 // pred_check_branch
      %66 = sbr.rel (0) target = $region37
    $region36: #{dqn_forward.1} parent=1 // pred_region
      _
    $region37: #{dqn_forward.1} parent=1 // pred_fallthru
      _
    // Predicated region
    $region38: #{dqn_forward.1} parent=1 // pred_check
      _
    $region39: #{dqn_forward.1} parent=1 // pred_check_branch
      %68 = sbr.rel (0) target = $region41
    $region40: #{dqn_forward.1} parent=1 // pred_region
      _
    $region41: #{dqn_forward.1} parent=1 // pred_fallthru
      _
    // Predicated region
    $region42: #{dqn_forward.1} parent=1 // pred_check
      _
    $region43: #{dqn_forward.1} parent=1 // pred_check_branch
      %70 = sbr.rel (0) target = $region45
    $region44: #{dqn_forward.1} parent=1 // pred_region
      _
    $region45: #{dqn_forward.1} parent=1 // pred_fallthru
      _
    // Predicated region
    $region46: #{dqn_forward.1} parent=1 // pred_check
      _
    $region47: #{dqn_forward.1} parent=1 // pred_check_branch
      %72 = sbr.rel (0) target = $region49
    $region48: #{dqn_forward.1} parent=1 // pred_region
      %73 = dma.done [#allocation3], 18432
    $region49: #{dqn_forward.1} parent=1 // pred_fallthru
      _
    // Predicated region
    $region50: #{dqn_forward.1} parent=1 // pred_check
      _
    $region51: #{dqn_forward.1} parent=1 // pred_check_branch
      %75 = sbr.rel (0) target = $region53
    $region52: #{dqn_forward.1} parent=1 // pred_region
      %76 = dma.done [#allocation6], 18432
    $region53: #{dqn_forward.1} parent=1 // pred_fallthru
      _
    // Predicated region
    $region54: #{dqn_forward.1} parent=1 // pred_check
      _
    $region55: #{dqn_forward.1} parent=1 // pred_check_branch
      %78 = sbr.rel (0) target = $region57
    $region56: #{dqn_forward.1} parent=1 // pred_region
      %79 = dma.done [#allocation6], 16384
    $region57: #{dqn_forward.1} parent=1 // pred_fallthru
      _
    %v81 = vld [vmem:[%s0] sm:$0xff]
    %v82 = vld [vmem:[%s0 + $0x8] sm:$0xff]
    %v83 = vld [vmem:[%s0 + $0x10] sm:$0xf]
    %v84 = vpack.c.bf16 %v82, %v81
    %v85 = vpack.c.bf16 %v83, %v83
    %v86 = vld [vmem:[%s1] sm:$0xff]
    %v87 = vld [vmem:[%s1 + $0x8] sm:$0xff]
    %v88 = vld [vmem:[%s1 + $0x10] sm:$0x33]
    %s89 = scalar_lea.vmem %s1, 24
    %v90 = vld [vmem:[%s89] sm:$0xff]
    %v91 = vld [vmem:[%s89 + $0x8] sm:$0xff]
    %v92 = vld [vmem:[%s89 + $0x10] sm:$0x33]
    %vm93 = vsmask.f32 7424
    %v95 = vshrl.u32 %v84, 16
    %v97 = vshll.u32 %v84, 16
    %v99 = vrot.slane %v97, 1
    %v100 = vor.u32 %v95, %v99
    %v102 = vshll.u32 %v85, 16
    %v104 = vrot.slane %v102, 1
    %v105 = vsel %vm93, %v100, %v104
    %v106 = vshrl.u32 %v85, 16
    %v108 = vor.u32 %v106, %v104
    %v112 = vunpack.c.l.b16 %v90
    %v113 = vunpack.c.h.b16 %v90
    %v114 = vunpack.c.l.b16 %v91
    %v115 = vunpack.c.h.b16 %v91
    %v116 = vunpack.c.l.b16 %v92
    %v117 = vunpack.c.h.b16 %v92
    %v118 = vpack.c.b16 %v114, %v112
    %v119 = vpack.c.b16 %v115, %v113
    %v120 = vpack.c.b16 %v116, %v116
    %v121 = vpack.c.b16 %v117, %v117
    %vm124 = vcmask 162816
    %v126 = vsel %vm124, %v105, 0
    %v129 = vsel %vm124, %v108, 0
    %vm131 = vcmask 1041408
    %v133 = vsel %vm131, %v120, 0
    %v136 = vsel %vm131, %v121, 0
    %138 = vmatprep.subr.bf16.mxu0 %v119
    %139 = vmatpush1.bf16.msra.mxu0 %v118
    %140 = vmatprep.subr.bf16.mxu0 %v136
    %141 = vmatpush1.bf16.msra.mxu0 %v133
    %142 = vmatprep.subr.bf16.mxu0 0
    %143 = vmatpush1.bf16.msra.mxu0 0
    %144 = vmatprep.subr.bf16.mxu0 0
    %145 = vmatpush1.bf16.msra.mxu0 0
    %146 = vmatprep.subr.bf16.mxu0 0
    %147 = vmatpush1.bf16.msra.mxu0 0
    %148 = vmatprep.subr.bf16.mxu0 0
    %149 = vmatpush1.bf16.msra.mxu0 0
    %150 = vmatprep.subr.bf16.mxu0 0
    %151 = vmatpush1.bf16.msra.mxu0 0
    %152 = vmatprep.subr.bf16.mxu0 0
    %153 = vmatpush1.bf16.msra.mxu0 0
    %154 = vmatprep.subr.bf16.mxu0 0
    %155 = vmatpush1.bf16.msra.mxu0 0
    %156 = vmatprep.subr.bf16.mxu0 0
    %157 = vmatpush1.bf16.msra.mxu0 0
    %158 = vmatprep.subr.bf16.mxu0 0
    %159 = vmatpush1.bf16.msra.mxu0 0
    %160 = vmatprep.subr.bf16.mxu0 0
    %161 = vmatpush1.bf16.msra.mxu0 0
    %162 = vmatprep.subr.bf16.mxu0 0
    %163 = vmatpush1.bf16.msra.mxu0 0
    %164 = vmatprep.subr.bf16.mxu0 0
    %165 = vmatpush1.bf16.msra.mxu0 0
    %166 = vmatprep.subr.bf16.mxu0 0
    %167 = vmatpush1.bf16.msra.mxu0 0
    %168 = vmatprep.subr.bf16.mxu0 0
    %169 = vmatpush1.bf16.msra.mxu0 0
    %170 = vmatprep.mubr.bf16.mxu0 0
    %171 = vmatmul.mubr.bf16.gmra.mrb[0].mxu0 %v126
    %v172 = vpop.f32.mrb[0].mxu0
    %v173 = vadd.f32 0.0, %v172
    %v174 = vpop.f32.mrb[0].mxu0
    %v175 = vadd.f32 0.0, %v174
    %v176 = vpop.f32.mrb[0].mxu0
    %v177 = vadd.f32 0.0, %v176
    %v178 = vpop.f32.mrb[0].mxu0
    %v179 = vadd.f32 0.0, %v178
    %180 = vmatprep.mubr.bf16.mxu0 0
    %181 = vmatmul.mubr.bf16.gmra.mrb[0].mxu0 %v129
    %v182 = vpop.f32.mrb[0].mxu0
    %v183 = vadd.f32 0.0, %v182
    %v184 = vpop.f32.mrb[0].mxu0
    %v185 = vadd.f32 0.0, %v184
    %v186 = vpop.f32.mrb[0].mxu0
    %v187 = vpop.f32.mrb[0].mxu0
    %188 = vdwg.mxu0
    %s189 = scalar_lea.vmem %s1, 48
    %v190 = vld [vmem:[%s189] sm:$0xff]
    %v191 = vld [vmem:[%s189 + $0x8] sm:$0xff]
    %v192 = vld [vmem:[%s189 + $0x10] sm:$0x33]
    %v196 = vunpack.c.l.b16 %v86
    %v197 = vunpack.c.h.b16 %v86
    %v198 = vunpack.c.l.b16 %v87
    %v199 = vunpack.c.h.b16 %v87
    %v200 = vunpack.c.l.b16 %v88
    %v201 = vunpack.c.h.b16 %v88
    %v202 = vpack.c.b16 %v198, %v196
    %v203 = vpack.c.b16 %v199, %v197
    %v204 = vpack.c.b16 %v200, %v200
    %v205 = vpack.c.b16 %v201, %v201
    %v208 = vsel %vm124, %v84, 0
    %v210 = vsel %vm124, %v85, 0
    %v213 = vsel %vm131, %v204, 0
    %v216 = vsel %vm131, %v205, 0
    %218 = vmatprep.subr.bf16.mxu0 %v203
    %219 = vmatpush1.bf16.msra.mxu0 %v202
    %220 = vmatprep.subr.bf16.mxu0 %v216
    %221 = vmatpush1.bf16.msra.mxu0 %v213
    %222 = vmatprep.subr.bf16.mxu0 0
    %223 = vmatpush1.bf16.msra.mxu0 0
    %224 = vmatprep.subr.bf16.mxu0 0
    %225 = vmatpush1.bf16.msra.mxu0 0
    %226 = vmatprep.subr.bf16.mxu0 0
    %227 = vmatpush1.bf16.msra.mxu0 0
    %228 = vmatprep.subr.bf16.mxu0 0
    %229 = vmatpush1.bf16.msra.mxu0 0
    %230 = vmatprep.subr.bf16.mxu0 0
    %231 = vmatpush1.bf16.msra.mxu0 0
    %232 = vmatprep.subr.bf16.mxu0 0
    %233 = vmatpush1.bf16.msra.mxu0 0
    %234 = vmatprep.subr.bf16.mxu0 0
    %235 = vmatpush1.bf16.msra.mxu0 0
    %236 = vmatprep.subr.bf16.mxu0 0
    %237 = vmatpush1.bf16.msra.mxu0 0
    %238 = vmatprep.subr.bf16.mxu0 0
    %239 = vmatpush1.bf16.msra.mxu0 0
    %240 = vmatprep.subr.bf16.mxu0 0
    %241 = vmatpush1.bf16.msra.mxu0 0
    %242 = vmatprep.subr.bf16.mxu0 0
    %243 = vmatpush1.bf16.msra.mxu0 0
    %244 = vmatprep.subr.bf16.mxu0 0
    %245 = vmatpush1.bf16.msra.mxu0 0
    %246 = vmatprep.subr.bf16.mxu0 0
    %247 = vmatpush1.bf16.msra.mxu0 0
    %248 = vmatprep.subr.bf16.mxu0 0
    %249 = vmatpush1.bf16.msra.mxu0 0
    %250 = vmatprep.mubr.bf16.mxu0 0
    %251 = vmatmul.mubr.bf16.gmra.mrb[0].mxu0 %v208
    %v252 = vpop.f32.mrb[0].mxu0
    %v253 = vadd.f32 %v173, %v252
    %v254 = vpop.f32.mrb[0].mxu0
    %v255 = vadd.f32 %v175, %v254
    %v256 = vpop.f32.mrb[0].mxu0
    %v257 = vadd.f32 %v177, %v256
    %v258 = vpop.f32.mrb[0].mxu0
    %v259 = vadd.f32 %v179, %v258
    %260 = vmatprep.mubr.bf16.mxu0 0
    %261 = vmatmul.mubr.bf16.gmra.mrb[0].mxu0 %v210
    %v262 = vpop.f32.mrb[0].mxu0
    %v263 = vadd.f32 %v183, %v262
    %v264 = vpop.f32.mrb[0].mxu0
    %v265 = vadd.f32 %v185, %v264
    %v266 = vpop.f32.mrb[0].mxu0
    %v267 = vpop.f32.mrb[0].mxu0
    %268 = vdwg.mxu0
    %v269 = vld [vmem:[%s2] sm:$0x3]
    %v271 = vlaneseq
    %v272 = vshrl.u32 %v271, 7
    %v273 = vsub.s32 0, %v272
    %v274 = vrot.slane %v269, %v273
    %v275 = vlaneseq
    %v276 = vshrl.u32 %v275, 7
    %v277 = vsub.s32 1, %v276
    %v278 = vrot.slane %v269, %v277
    %vm283 = vcmask 1046528
    %v284 = vrot.slane %v84, 1
    %v285 = vrot.slane %v85, 1
    %v286 = vsel %vm283, %v284, %v285
    %v290 = vunpack.c.l.b16 %v190
    %v291 = vunpack.c.h.b16 %v190
    %v292 = vunpack.c.l.b16 %v191
    %v293 = vunpack.c.h.b16 %v191
    %v294 = vunpack.c.l.b16 %v192
    %v295 = vunpack.c.h.b16 %v192
    %v296 = vpack.c.b16 %v292, %v290
    %v297 = vpack.c.b16 %v293, %v291
    %v298 = vpack.c.b16 %v294, %v294
    %v299 = vpack.c.b16 %v295, %v295
    %v303 = vsel %vm124, %v286, 0
    %v306 = vsel %vm124, %v285, 0
    %v309 = vsel %vm131, %v298, 0
    %v312 = vsel %vm131, %v299, 0
    %314 = vmatprep.subr.bf16.mxu0 %v297
    %315 = vmatpush1.bf16.msra.mxu0 %v296
    %316 = vmatprep.subr.bf16.mxu0 %v312
    %317 = vmatpush1.bf16.msra.mxu0 %v309
    %318 = vmatprep.subr.bf16.mxu0 0
    %319 = vmatpush1.bf16.msra.mxu0 0
    %320 = vmatprep.subr.bf16.mxu0 0
    %321 = vmatpush1.bf16.msra.mxu0 0
    %322 = vmatprep.subr.bf16.mxu0 0
    %323 = vmatpush1.bf16.msra.mxu0 0
    %324 = vmatprep.subr.bf16.mxu0 0
    %325 = vmatpush1.bf16.msra.mxu0 0
    %326 = vmatprep.subr.bf16.mxu0 0
    %327 = vmatpush1.bf16.msra.mxu0 0
    %328 = vmatprep.subr.bf16.mxu0 0
    %329 = vmatpush1.bf16.msra.mxu0 0
    %330 = vmatprep.subr.bf16.mxu0 0
    %331 = vmatpush1.bf16.msra.mxu0 0
    %332 = vmatprep.subr.bf16.mxu0 0
    %333 = vmatpush1.bf16.msra.mxu0 0
    %334 = vmatprep.subr.bf16.mxu0 0
    %335 = vmatpush1.bf16.msra.mxu0 0
    %336 = vmatprep.subr.bf16.mxu0 0
    %337 = vmatpush1.bf16.msra.mxu0 0
    %338 = vmatprep.subr.bf16.mxu0 0
    %339 = vmatpush1.bf16.msra.mxu0 0
    %340 = vmatprep.subr.bf16.mxu0 0
    %341 = vmatpush1.bf16.msra.mxu0 0
    %342 = vmatprep.subr.bf16.mxu0 0
    %343 = vmatpush1.bf16.msra.mxu0 0
    %344 = vmatprep.subr.bf16.mxu0 0
    %345 = vmatpush1.bf16.msra.mxu0 0
    %346 = vmatprep.mubr.bf16.mxu0 0
    %347 = vmatmul.mubr.bf16.gmra.mrb[0].mxu0 %v303
    %v348 = vpop.f32.mrb[0].mxu0
    %v349 = vadd.f32 %v274, %v348
    %v350 = vpop.f32.mrb[0].mxu0
    %v351 = vadd.f32 %v278, %v350
    %v352 = vpop.f32.mrb[0].mxu0
    %v353 = vadd.f32 %v274, %v352
    %v354 = vpop.f32.mrb[0].mxu0
    %v355 = vadd.f32 %v278, %v354
    %356 = vmatprep.mubr.bf16.mxu0 0
    %357 = vmatmul.mubr.bf16.gmra.mrb[0].mxu0 %v306
    %v358 = vpop.f32.mrb[0].mxu0
    %v359 = vadd.f32 %v274, %v358
    %v360 = vpop.f32.mrb[0].mxu0
    %v361 = vadd.f32 %v278, %v360
    %v362 = vpop.f32.mrb[0].mxu0
    %v363 = vpop.f32.mrb[0].mxu0
    %364 = vdwg.mxu0
    %v365 = vadd.f32 %v253, %v349
    %v366 = vadd.f32 %v255, %v351
    %v367 = vadd.f32 %v257, %v353
    %v368 = vadd.f32 %v259, %v355
    %v369 = vadd.f32 %v263, %v359
    %v370 = vadd.f32 %v265, %v361
    %v371 = vmax.f32 %v365, 0.0
    %v372 = vmax.f32 %v366, 0.0
    %v373 = vmax.f32 %v367, 0.0
    %v374 = vmax.f32 %v368, 0.0
    %v375 = vmax.f32 %v369, 0.0
    %v376 = vmax.f32 %v370, 0.0
    %v377 = vpack.c.bf16 %v373, %v371
    %v378 = vpack.c.bf16 %v374, %v372
    %v379 = vpack.c.bf16 %v375, %v375
    %v380 = vpack.c.bf16 %v376, %v376
    %v381 = vld [vmem:[#allocation2] sm:$0xff]
    %v382 = vld [vmem:[#allocation2 + $0x8] sm:$0xf]
    %v383 = vld [vmem:[#allocation2 + $0xc] sm:$0xff]
    %v384 = vld [vmem:[#allocation2 + $0x14] sm:$0xf]
    %v385 = vld [vmem:[#allocation2 + $0x18] sm:$0xff]
    %v386 = vld [vmem:[#allocation2 + $0x20] sm:$0xf]
    %v387 = vld [vmem:[#allocation2 + $0x24] sm:$0xff]
    %v388 = vld [vmem:[#allocation2 + $0x2c] sm:$0xf]
    %v389 = vld [vmem:[#allocation2 + $0x30] sm:$0xff]
    %v390 = vld [vmem:[#allocation2 + $0x38] sm:$0xf]
    %v391 = vld [vmem:[#allocation2 + $0x3c] sm:$0xff]
    %v392 = vld [vmem:[#allocation2 + $0x44] sm:$0xf]
    %v393 = vld [vmem:[#allocation2 + $0x48] sm:$0xff]
    %v394 = vld [vmem:[#allocation2 + $0x50] sm:$0xf]
    %v395 = vld [vmem:[#allocation2 + $0x54] sm:$0xff]
    %v396 = vld [vmem:[#allocation2 + $0x5c] sm:$0xf]
    %v397 = vld [vmem:[#allocation2 + $0x60] sm:$0xff]
    %v398 = vld [vmem:[#allocation2 + $0x68] sm:$0xf]
    %v399 = vld [vmem:[#allocation2 + $0x6c] sm:$0xff]
    %v400 = vld [vmem:[#allocation2 + $0x74] sm:$0xf]
    %v401 = vld [vmem:[#allocation2 + $0x78] sm:$0xff]
    %v402 = vld [vmem:[#allocation2 + $0x80] sm:$0xf]
    %v403 = vld [vmem:[#allocation2 + $0x84] sm:$0xff]
    %v404 = vld [vmem:[#allocation2 + $0x8c] sm:$0xf]
    %v405 = vld [vmem:[#allocation2 + $0x90] sm:$0xff]
    %v406 = vld [vmem:[#allocation2 + $0x98] sm:$0xf]
    %v407 = vld [vmem:[#allocation2 + $0x9c] sm:$0xff]
    %v408 = vld [vmem:[#allocation2 + $0xa4] sm:$0xf]
    %v409 = vld [vmem:[#allocation2 + $0xa8] sm:$0xff]
    %v410 = vld [vmem:[#allocation2 + $0xb0] sm:$0xf]
    %v411 = vld [vmem:[#allocation2 + $0xb4] sm:$0xff]
    %v412 = vld [vmem:[#allocation2 + $0xbc] sm:$0xf]
    %v413 = vld [vmem:[#allocation2 + $0xc0] sm:$0xff]
    %v414 = vld [vmem:[#allocation2 + $0xc8] sm:$0xf]
    %v415 = vld [vmem:[#allocation2 + $0xcc] sm:$0xff]
    %v416 = vld [vmem:[#allocation2 + $0xd4] sm:$0xf]
    %v417 = vld [vmem:[#allocation2 + $0xd8] sm:$0xff]
    %v418 = vld [vmem:[#allocation2 + $0xe0] sm:$0xf]
    %v419 = vld [vmem:[#allocation2 + $0xe4] sm:$0xff]
    %v420 = vld [vmem:[#allocation2 + $0xec] sm:$0xf]
    %v421 = vld [vmem:[#allocation2 + $0xf0] sm:$0xff]
    %v422 = vld [vmem:[#allocation2 + $0xf8] sm:$0xf]
    %v423 = vld [vmem:[#allocation2 + $0xfc] sm:$0xff]
    %v424 = vld [vmem:[#allocation2 + $0x104] sm:$0xf]
    %v425 = vld [vmem:[#allocation2 + $0x108] sm:$0xff]
    %v426 = vld [vmem:[#allocation2 + $0x110] sm:$0xf]
    %v427 = vld [vmem:[#allocation2 + $0x114] sm:$0xff]
    %v428 = vld [vmem:[#allocation2 + $0x11c] sm:$0xf]
    %v429 = vld [vmem:[#allocation2 + $0x120] sm:$0xff]
    %v430 = vld [vmem:[#allocation2 + $0x128] sm:$0xf]
    %v431 = vld [vmem:[#allocation2 + $0x12c] sm:$0xff]
    %v432 = vld [vmem:[#allocation2 + $0x134] sm:$0xf]
    %v433 = vld [vmem:[#allocation2 + $0x138] sm:$0xff]
    %v434 = vld [vmem:[#allocation2 + $0x140] sm:$0xf]
    %v435 = vld [vmem:[#allocation2 + $0x144] sm:$0xff]
    %v436 = vld [vmem:[#allocation2 + $0x14c] sm:$0xf]
    %v437 = vld [vmem:[#allocation2 + $0x150] sm:$0xff]
    %v438 = vld [vmem:[#allocation2 + $0x158] sm:$0xf]
    %v439 = vld [vmem:[#allocation2 + $0x15c] sm:$0xff]
    %v440 = vld [vmem:[#allocation2 + $0x164] sm:$0xf]
    %v441 = vld [vmem:[#allocation2 + $0x168] sm:$0xff]
    %v442 = vld [vmem:[#allocation2 + $0x170] sm:$0xf]
    %v443 = vld [vmem:[#allocation2 + $0x174] sm:$0xff]
    %v444 = vld [vmem:[#allocation2 + $0x17c] sm:$0xf]
    %s445 = scalar_lea.vmem [#allocation2], 384
    %v446 = vld [vmem:[%s445] sm:$0xff]
    %v447 = vld [vmem:[%s445 + $0x8] sm:$0xf]
    %v448 = vld [vmem:[%s445 + $0xc] sm:$0xff]
    %v449 = vld [vmem:[%s445 + $0x14] sm:$0xf]
    %v450 = vld [vmem:[%s445 + $0x18] sm:$0xff]
    %v451 = vld [vmem:[%s445 + $0x20] sm:$0xf]
    %v452 = vld [vmem:[%s445 + $0x24] sm:$0xff]
    %v453 = vld [vmem:[%s445 + $0x2c] sm:$0xf]
    %v454 = vld [vmem:[%s445 + $0x30] sm:$0xff]
    %v455 = vld [vmem:[%s445 + $0x38] sm:$0xf]
    %v456 = vld [vmem:[%s445 + $0x3c] sm:$0xff]
    %v457 = vld [vmem:[%s445 + $0x44] sm:$0xf]
    %v458 = vld [vmem:[%s445 + $0x48] sm:$0xff]
    %v459 = vld [vmem:[%s445 + $0x50] sm:$0xf]
    %v460 = vld [vmem:[%s445 + $0x54] sm:$0xff]
    %v461 = vld [vmem:[%s445 + $0x5c] sm:$0xf]
    %v462 = vld [vmem:[%s445 + $0x60] sm:$0xff]
    %v463 = vld [vmem:[%s445 + $0x68] sm:$0xf]
    %v464 = vld [vmem:[%s445 + $0x6c] sm:$0xff]
    %v465 = vld [vmem:[%s445 + $0x74] sm:$0xf]
    %v466 = vld [vmem:[%s445 + $0x78] sm:$0xff]
    %v467 = vld [vmem:[%s445 + $0x80] sm:$0xf]
    %v468 = vld [vmem:[%s445 + $0x84] sm:$0xff]
    %v469 = vld [vmem:[%s445 + $0x8c] sm:$0xf]
    %v470 = vld [vmem:[%s445 + $0x90] sm:$0xff]
    %v471 = vld [vmem:[%s445 + $0x98] sm:$0xf]
    %v472 = vld [vmem:[%s445 + $0x9c] sm:$0xff]
    %v473 = vld [vmem:[%s445 + $0xa4] sm:$0xf]
    %v474 = vld [vmem:[%s445 + $0xa8] sm:$0xff]
    %v475 = vld [vmem:[%s445 + $0xb0] sm:$0xf]
    %v476 = vld [vmem:[%s445 + $0xb4] sm:$0xff]
    %v477 = vld [vmem:[%s445 + $0xbc] sm:$0xf]
    %v478 = vld [vmem:[%s445 + $0xc0] sm:$0xff]
    %v479 = vld [vmem:[%s445 + $0xc8] sm:$0xf]
    %v480 = vld [vmem:[%s445 + $0xcc] sm:$0xff]
    %v481 = vld [vmem:[%s445 + $0xd4] sm:$0xf]
    %v482 = vld [vmem:[%s445 + $0xd8] sm:$0xff]
    %v483 = vld [vmem:[%s445 + $0xe0] sm:$0xf]
    %v484 = vld [vmem:[%s445 + $0xe4] sm:$0xff]
    %v485 = vld [vmem:[%s445 + $0xec] sm:$0xf]
    %v486 = vld [vmem:[%s445 + $0xf0] sm:$0xff]
    %v487 = vld [vmem:[%s445 + $0xf8] sm:$0xf]
    %v488 = vld [vmem:[%s445 + $0xfc] sm:$0xff]
    %v489 = vld [vmem:[%s445 + $0x104] sm:$0xf]
    %v490 = vld [vmem:[%s445 + $0x108] sm:$0xff]
    %v491 = vld [vmem:[%s445 + $0x110] sm:$0xf]
    %v492 = vld [vmem:[%s445 + $0x114] sm:$0xff]
    %v493 = vld [vmem:[%s445 + $0x11c] sm:$0xf]
    %v494 = vld [vmem:[%s445 + $0x120] sm:$0xff]
    %v495 = vld [vmem:[%s445 + $0x128] sm:$0xf]
    %v496 = vld [vmem:[%s445 + $0x12c] sm:$0xff]
    %v497 = vld [vmem:[%s445 + $0x134] sm:$0xf]
    %v498 = vld [vmem:[%s445 + $0x138] sm:$0xff]
    %v499 = vld [vmem:[%s445 + $0x140] sm:$0xf]
    %v500 = vld [vmem:[%s445 + $0x144] sm:$0xff]
    %v501 = vld [vmem:[%s445 + $0x14c] sm:$0xf]
    %v502 = vld [vmem:[%s445 + $0x150] sm:$0xff]
    %v503 = vld [vmem:[%s445 + $0x158] sm:$0xf]
    %v504 = vld [vmem:[%s445 + $0x15c] sm:$0xff]
    %v505 = vld [vmem:[%s445 + $0x164] sm:$0xf]
    %v506 = vld [vmem:[%s445 + $0x168] sm:$0xff]
    %v507 = vld [vmem:[%s445 + $0x170] sm:$0xf]
    %v508 = vld [vmem:[%s445 + $0x174] sm:$0xff]
    %v509 = vld [vmem:[%s445 + $0x17c] sm:$0xf]
    %v511 = vshrl.u32 %v377, 16
    %v513 = vshll.u32 %v377, 16
    %v515 = vrot.slane %v513, 1
    %v516 = vor.u32 %v511, %v515
    %v518 = vshll.u32 %v379, 16
    %v520 = vrot.slane %v518, 1
    %v521 = vsel %vm93, %v516, %v520
    %v523 = vshrl.u32 %v378, 16
    %v525 = vshll.u32 %v378, 16
    %v527 = vrot.slane %v525, 1
    %v528 = vor.u32 %v523, %v527
    %v530 = vshll.u32 %v380, 16
    %v532 = vrot.slane %v530, 1
    %v533 = vsel %vm93, %v528, %v532
    %v600 = vunpack.c.l.b16 %v446
    %v601 = vunpack.c.h.b16 %v446
    %v602 = vunpack.c.l.b16 %v447
    %v603 = vunpack.c.l.b16 %v448
    %v604 = vunpack.c.h.b16 %v448
    %v605 = vunpack.c.l.b16 %v449
    %v606 = vunpack.c.l.b16 %v450
    %v607 = vunpack.c.h.b16 %v450
    %v608 = vunpack.c.l.b16 %v451
    %v609 = vunpack.c.l.b16 %v452
    %v610 = vunpack.c.h.b16 %v452
    %v611 = vunpack.c.l.b16 %v453
    %v612 = vunpack.c.l.b16 %v454
    %v613 = vunpack.c.h.b16 %v454
    %v614 = vunpack.c.l.b16 %v455
    %v615 = vunpack.c.l.b16 %v456
    %v616 = vunpack.c.h.b16 %v456
    %v617 = vunpack.c.l.b16 %v457
    %v618 = vunpack.c.l.b16 %v458
    %v619 = vunpack.c.h.b16 %v458
    %v620 = vunpack.c.l.b16 %v459
    %v621 = vunpack.c.l.b16 %v460
    %v622 = vunpack.c.h.b16 %v460
    %v623 = vunpack.c.l.b16 %v461
    %v624 = vunpack.c.l.b16 %v462
    %v625 = vunpack.c.h.b16 %v462
    %v626 = vunpack.c.l.b16 %v463
    %v627 = vunpack.c.l.b16 %v464
    %v628 = vunpack.c.h.b16 %v464
    %v629 = vunpack.c.l.b16 %v465
    %v630 = vunpack.c.l.b16 %v466
    %v631 = vunpack.c.h.b16 %v466
    %v632 = vunpack.c.l.b16 %v467
    %v633 = vunpack.c.l.b16 %v468
    %v634 = vunpack.c.h.b16 %v468
    %v635 = vunpack.c.l.b16 %v469
    %v636 = vunpack.c.l.b16 %v470
    %v637 = vunpack.c.h.b16 %v470
    %v638 = vunpack.c.l.b16 %v471
    %v639 = vunpack.c.l.b16 %v472
    %v640 = vunpack.c.h.b16 %v472
    %v641 = vunpack.c.l.b16 %v473
    %v642 = vunpack.c.l.b16 %v474
    %v643 = vunpack.c.h.b16 %v474
    %v644 = vunpack.c.l.b16 %v475
    %v645 = vunpack.c.l.b16 %v476
    %v646 = vunpack.c.h.b16 %v476
    %v647 = vunpack.c.l.b16 %v477
    %v648 = vunpack.c.l.b16 %v478
    %v649 = vunpack.c.h.b16 %v478
    %v650 = vunpack.c.l.b16 %v479
    %v651 = vunpack.c.l.b16 %v480
    %v652 = vunpack.c.h.b16 %v480
    %v653 = vunpack.c.l.b16 %v481
    %v654 = vunpack.c.l.b16 %v482
    %v655 = vunpack.c.h.b16 %v482
    %v656 = vunpack.c.l.b16 %v483
    %v657 = vunpack.c.l.b16 %v484
    %v658 = vunpack.c.h.b16 %v484
    %v659 = vunpack.c.l.b16 %v485
    %v660 = vunpack.c.l.b16 %v486
    %v661 = vunpack.c.h.b16 %v486
    %v662 = vunpack.c.l.b16 %v487
    %v663 = vunpack.c.l.b16 %v488
    %v664 = vunpack.c.h.b16 %v488
    %v665 = vunpack.c.l.b16 %v489
    %v666 = vunpack.c.l.b16 %v490
    %v667 = vunpack.c.h.b16 %v490
    %v668 = vunpack.c.l.b16 %v491
    %v669 = vunpack.c.l.b16 %v492
    %v670 = vunpack.c.h.b16 %v492
    %v671 = vunpack.c.l.b16 %v493
    %v672 = vunpack.c.l.b16 %v494
    %v673 = vunpack.c.h.b16 %v494
    %v674 = vunpack.c.l.b16 %v495
    %v675 = vunpack.c.l.b16 %v496
    %v676 = vunpack.c.h.b16 %v496
    %v677 = vunpack.c.l.b16 %v497
    %v678 = vunpack.c.l.b16 %v498
    %v679 = vunpack.c.h.b16 %v498
    %v680 = vunpack.c.l.b16 %v499
    %v681 = vunpack.c.l.b16 %v500
    %v682 = vunpack.c.h.b16 %v500
    %v683 = vunpack.c.l.b16 %v501
    %v684 = vunpack.c.l.b16 %v502
    %v685 = vunpack.c.h.b16 %v502
    %v686 = vunpack.c.l.b16 %v503
    %v687 = vunpack.c.l.b16 %v504
    %v688 = vunpack.c.h.b16 %v504
    %v689 = vunpack.c.l.b16 %v505
    %v690 = vunpack.c.l.b16 %v506
    %v691 = vunpack.c.h.b16 %v506
    %v692 = vunpack.c.l.b16 %v507
    %v693 = vunpack.c.l.b16 %v508
    %v694 = vunpack.c.h.b16 %v508
    %v695 = vunpack.c.l.b16 %v509
    %v696 = vpack.c.b16 %v603, %v600
    %v697 = vpack.c.b16 %v604, %v601
    %v698 = vpack.c.b16 %v605, %v602
    %v699 = vpack.c.b16 %v609, %v606
    %v700 = vpack.c.b16 %v610, %v607
    %v701 = vpack.c.b16 %v611, %v608
    %v702 = vpack.c.b16 %v615, %v612
    %v703 = vpack.c.b16 %v616, %v613
    %v704 = vpack.c.b16 %v617, %v614
    %v705 = vpack.c.b16 %v621, %v618
    %v706 = vpack.c.b16 %v622, %v619
    %v707 = vpack.c.b16 %v623, %v620
    %v708 = vpack.c.b16 %v627, %v624
    %v709 = vpack.c.b16 %v628, %v625
    %v710 = vpack.c.b16 %v629, %v626
    %v711 = vpack.c.b16 %v633, %v630
    %v712 = vpack.c.b16 %v634, %v631
    %v713 = vpack.c.b16 %v635, %v632
    %v714 = vpack.c.b16 %v639, %v636
    %v715 = vpack.c.b16 %v640, %v637
    %v716 = vpack.c.b16 %v641, %v638
    %v717 = vpack.c.b16 %v645, %v642
    %v718 = vpack.c.b16 %v646, %v643
    %v719 = vpack.c.b16 %v647, %v644
    %v720 = vpack.c.b16 %v651, %v648
    %v721 = vpack.c.b16 %v652, %v649
    %v722 = vpack.c.b16 %v653, %v650
    %v723 = vpack.c.b16 %v657, %v654
    %v724 = vpack.c.b16 %v658, %v655
    %v725 = vpack.c.b16 %v659, %v656
    %v726 = vpack.c.b16 %v663, %v660
    %v727 = vpack.c.b16 %v664, %v661
    %v728 = vpack.c.b16 %v665, %v662
    %v729 = vpack.c.b16 %v669, %v666
    %v730 = vpack.c.b16 %v670, %v667
    %v731 = vpack.c.b16 %v671, %v668
    %v732 = vpack.c.b16 %v675, %v672
    %v733 = vpack.c.b16 %v676, %v673
    %v734 = vpack.c.b16 %v677, %v674
    %v735 = vpack.c.b16 %v681, %v678
    %v736 = vpack.c.b16 %v682, %v679
    %v737 = vpack.c.b16 %v683, %v680
    %v738 = vpack.c.b16 %v687, %v684
    %v739 = vpack.c.b16 %v688, %v685
    %v740 = vpack.c.b16 %v689, %v686
    %v741 = vpack.c.b16 %v693, %v690
    %v742 = vpack.c.b16 %v694, %v691
    %v743 = vpack.c.b16 %v695, %v692
    %792 = vmatprep.subr.bf16.mxu0 %v697
    %793 = vmatpush1.bf16.msra.mxu0 %v696
    %794 = vmatprep.subr.bf16.mxu0 %v700
    %795 = vmatpush1.bf16.msra.mxu0 %v699
    %796 = vmatprep.subr.bf16.mxu0 %v703
    %797 = vmatpush1.bf16.msra.mxu0 %v702
    %798 = vmatprep.subr.bf16.mxu0 %v706
    %799 = vmatpush1.bf16.msra.mxu0 %v705
    %800 = vmatprep.subr.bf16.mxu0 %v709
    %801 = vmatpush1.bf16.msra.mxu0 %v708
    %802 = vmatprep.subr.bf16.mxu0 %v712
    %803 = vmatpush1.bf16.msra.mxu0 %v711
    %804 = vmatprep.subr.bf16.mxu0 %v715
    %805 = vmatpush1.bf16.msra.mxu0 %v714
    %806 = vmatprep.subr.bf16.mxu0 %v718
    %807 = vmatpush1.bf16.msra.mxu0 %v717
    %808 = vmatprep.subr.bf16.mxu0 %v721
    %809 = vmatpush1.bf16.msra.mxu0 %v720
    %810 = vmatprep.subr.bf16.mxu0 %v724
    %811 = vmatpush1.bf16.msra.mxu0 %v723
    %812 = vmatprep.subr.bf16.mxu0 %v727
    %813 = vmatpush1.bf16.msra.mxu0 %v726
    %814 = vmatprep.subr.bf16.mxu0 %v730
    %815 = vmatpush1.bf16.msra.mxu0 %v729
    %816 = vmatprep.subr.bf16.mxu0 %v733
    %817 = vmatpush1.bf16.msra.mxu0 %v732
    %818 = vmatprep.subr.bf16.mxu0 %v736
    %819 = vmatpush1.bf16.msra.mxu0 %v735
    %820 = vmatprep.subr.bf16.mxu0 %v739
    %821 = vmatpush1.bf16.msra.mxu0 %v738
    %822 = vmatprep.subr.bf16.mxu0 %v742
    %823 = vmatpush1.bf16.msra.mxu0 %v741
    %824 = vmatprep.mubr.bf16.mxu0 %v533
    %825 = vmatmul.mubr.bf16.gmra.mrb[0].mxu0 %v521
    %v826 = vpop.f32.mrb[0].mxu0
    %v827 = vadd.f32 0.0, %v826
    %v828 = vpop.f32.mrb[0].mxu0
    %v829 = vadd.f32 0.0, %v828
    %v830 = vpop.f32.mrb[0].mxu0
    %v831 = vadd.f32 0.0, %v830
    %v832 = vpop.f32.mrb[0].mxu0
    %v833 = vadd.f32 0.0, %v832
    %834 = vdwg.mxu0
    %835 = vmatprep.subr.bf16.mxu0 0
    %836 = vmatpush1.bf16.msra.mxu0 %v698
    %837 = vmatprep.subr.bf16.mxu0 0
    %838 = vmatpush1.bf16.msra.mxu0 %v701
    %839 = vmatprep.subr.bf16.mxu0 0
    %840 = vmatpush1.bf16.msra.mxu0 %v704
    %841 = vmatprep.subr.bf16.mxu0 0
    %842 = vmatpush1.bf16.msra.mxu0 %v707
    %843 = vmatprep.subr.bf16.mxu0 0
    %844 = vmatpush1.bf16.msra.mxu0 %v710
    %845 = vmatprep.subr.bf16.mxu0 0
    %846 = vmatpush1.bf16.msra.mxu0 %v713
    %847 = vmatprep.subr.bf16.mxu0 0
    %848 = vmatpush1.bf16.msra.mxu0 %v716
    %849 = vmatprep.subr.bf16.mxu0 0
    %850 = vmatpush1.bf16.msra.mxu0 %v719
    %851 = vmatprep.subr.bf16.mxu0 0
    %852 = vmatpush1.bf16.msra.mxu0 %v722
    %853 = vmatprep.subr.bf16.mxu0 0
    %854 = vmatpush1.bf16.msra.mxu0 %v725
    %855 = vmatprep.subr.bf16.mxu0 0
    %856 = vmatpush1.bf16.msra.mxu0 %v728
    %857 = vmatprep.subr.bf16.mxu0 0
    %858 = vmatpush1.bf16.msra.mxu0 %v731
    %859 = vmatprep.subr.bf16.mxu0 0
    %860 = vmatpush1.bf16.msra.mxu0 %v734
    %861 = vmatprep.subr.bf16.mxu0 0
    %862 = vmatpush1.bf16.msra.mxu0 %v737
    %863 = vmatprep.subr.bf16.mxu0 0
    %864 = vmatpush1.bf16.msra.mxu0 %v740
    %865 = vmatprep.subr.bf16.mxu0 0
    %866 = vmatpush1.bf16.msra.mxu0 %v743
    %867 = vmatprep.mubr.bf16.mxu0 %v533
    %868 = vmatmul.mubr.bf16.gmra.mrb[0].mxu0 %v521
    %v869 = vpop.f32.mrb[0].mxu0
    %v870 = vadd.f32 0.0, %v869
    %v871 = vpop.f32.mrb[0].mxu0
    %v872 = vpop.f32.mrb[0].mxu0
    %v873 = vadd.f32 0.0, %v872
    %v874 = vpop.f32.mrb[0].mxu0
    %875 = vdwg.mxu0
    %s876 = scalar_lea.vmem [#allocation2], 768
    %v877 = vld [vmem:[%s876] sm:$0xff]
    %v878 = vld [vmem:[%s876 + $0x8] sm:$0xf]
    %v879 = vld [vmem:[%s876 + $0xc] sm:$0xff]
    %v880 = vld [vmem:[%s876 + $0x14] sm:$0xf]
    %v881 = vld [vmem:[%s876 + $0x18] sm:$0xff]
    %v882 = vld [vmem:[%s876 + $0x20] sm:$0xf]
    %v883 = vld [vmem:[%s876 + $0x24] sm:$0xff]
    %v884 = vld [vmem:[%s876 + $0x2c] sm:$0xf]
    %v885 = vld [vmem:[%s876 + $0x30] sm:$0xff]
    %v886 = vld [vmem:[%s876 + $0x38] sm:$0xf]
    %v887 = vld [vmem:[%s876 + $0x3c] sm:$0xff]
    %v888 = vld [vmem:[%s876 + $0x44] sm:$0xf]
    %v889 = vld [vmem:[%s876 + $0x48] sm:$0xff]
    %v890 = vld [vmem:[%s876 + $0x50] sm:$0xf]
    %v891 = vld [vmem:[%s876 + $0x54] sm:$0xff]
    %v892 = vld [vmem:[%s876 + $0x5c] sm:$0xf]
    %v893 = vld [vmem:[%s876 + $0x60] sm:$0xff]
    %v894 = vld [vmem:[%s876 + $0x68] sm:$0xf]
    %v895 = vld [vmem:[%s876 + $0x6c] sm:$0xff]
    %v896 = vld [vmem:[%s876 + $0x74] sm:$0xf]
    %v897 = vld [vmem:[%s876 + $0x78] sm:$0xff]
    %v898 = vld [vmem:[%s876 + $0x80] sm:$0xf]
    %v899 = vld [vmem:[%s876 + $0x84] sm:$0xff]
    %v900 = vld [vmem:[%s876 + $0x8c] sm:$0xf]
    %v901 = vld [vmem:[%s876 + $0x90] sm:$0xff]
    %v902 = vld [vmem:[%s876 + $0x98] sm:$0xf]
    %v903 = vld [vmem:[%s876 + $0x9c] sm:$0xff]
    %v904 = vld [vmem:[%s876 + $0xa4] sm:$0xf]
    %v905 = vld [vmem:[%s876 + $0xa8] sm:$0xff]
    %v906 = vld [vmem:[%s876 + $0xb0] sm:$0xf]
    %v907 = vld [vmem:[%s876 + $0xb4] sm:$0xff]
    %v908 = vld [vmem:[%s876 + $0xbc] sm:$0xf]
    %v909 = vld [vmem:[%s876 + $0xc0] sm:$0xff]
    %v910 = vld [vmem:[%s876 + $0xc8] sm:$0xf]
    %v911 = vld [vmem:[%s876 + $0xcc] sm:$0xff]
    %v912 = vld [vmem:[%s876 + $0xd4] sm:$0xf]
    %v913 = vld [vmem:[%s876 + $0xd8] sm:$0xff]
    %v914 = vld [vmem:[%s876 + $0xe0] sm:$0xf]
    %v915 = vld [vmem:[%s876 + $0xe4] sm:$0xff]
    %v916 = vld [vmem:[%s876 + $0xec] sm:$0xf]
    %v917 = vld [vmem:[%s876 + $0xf0] sm:$0xff]
    %v918 = vld [vmem:[%s876 + $0xf8] sm:$0xf]
    %v919 = vld [vmem:[%s876 + $0xfc] sm:$0xff]
    %v920 = vld [vmem:[%s876 + $0x104] sm:$0xf]
    %v921 = vld [vmem:[%s876 + $0x108] sm:$0xff]
    %v922 = vld [vmem:[%s876 + $0x110] sm:$0xf]
    %v923 = vld [vmem:[%s876 + $0x114] sm:$0xff]
    %v924 = vld [vmem:[%s876 + $0x11c] sm:$0xf]
    %v925 = vld [vmem:[%s876 + $0x120] sm:$0xff]
    %v926 = vld [vmem:[%s876 + $0x128] sm:$0xf]
    %v927 = vld [vmem:[%s876 + $0x12c] sm:$0xff]
    %v928 = vld [vmem:[%s876 + $0x134] sm:$0xf]
    %v929 = vld [vmem:[%s876 + $0x138] sm:$0xff]
    %v930 = vld [vmem:[%s876 + $0x140] sm:$0xf]
    %v931 = vld [vmem:[%s876 + $0x144] sm:$0xff]
    %v932 = vld [vmem:[%s876 + $0x14c] sm:$0xf]
    %v933 = vld [vmem:[%s876 + $0x150] sm:$0xff]
    %v934 = vld [vmem:[%s876 + $0x158] sm:$0xf]
    %v935 = vld [vmem:[%s876 + $0x15c] sm:$0xff]
    %v936 = vld [vmem:[%s876 + $0x164] sm:$0xf]
    %v937 = vld [vmem:[%s876 + $0x168] sm:$0xff]
    %v938 = vld [vmem:[%s876 + $0x170] sm:$0xf]
    %v939 = vld [vmem:[%s876 + $0x174] sm:$0xff]
    %v940 = vld [vmem:[%s876 + $0x17c] sm:$0xf]
    %v1005 = vunpack.c.l.b16 %v381
    %v1006 = vunpack.c.h.b16 %v381
    %v1007 = vunpack.c.l.b16 %v382
    %v1008 = vunpack.c.l.b16 %v383
    %v1009 = vunpack.c.h.b16 %v383
    %v1010 = vunpack.c.l.b16 %v384
    %v1011 = vunpack.c.l.b16 %v385
    %v1012 = vunpack.c.h.b16 %v385
    %v1013 = vunpack.c.l.b16 %v386
    %v1014 = vunpack.c.l.b16 %v387
    %v1015 = vunpack.c.h.b16 %v387
    %v1016 = vunpack.c.l.b16 %v388
    %v1017 = vunpack.c.l.b16 %v389
    %v1018 = vunpack.c.h.b16 %v389
    %v1019 = vunpack.c.l.b16 %v390
    %v1020 = vunpack.c.l.b16 %v391
    %v1021 = vunpack.c.h.b16 %v391
    %v1022 = vunpack.c.l.b16 %v392
    %v1023 = vunpack.c.l.b16 %v393
    %v1024 = vunpack.c.h.b16 %v393
    %v1025 = vunpack.c.l.b16 %v394
    %v1026 = vunpack.c.l.b16 %v395
    %v1027 = vunpack.c.h.b16 %v395
    %v1028 = vunpack.c.l.b16 %v396
    %v1029 = vunpack.c.l.b16 %v397
    %v1030 = vunpack.c.h.b16 %v397
    %v1031 = vunpack.c.l.b16 %v398
    %v1032 = vunpack.c.l.b16 %v399
    %v1033 = vunpack.c.h.b16 %v399
    %v1034 = vunpack.c.l.b16 %v400
    %v1035 = vunpack.c.l.b16 %v401
    %v1036 = vunpack.c.h.b16 %v401
    %v1037 = vunpack.c.l.b16 %v402
    %v1038 = vunpack.c.l.b16 %v403
    %v1039 = vunpack.c.h.b16 %v403
    %v1040 = vunpack.c.l.b16 %v404
    %v1041 = vunpack.c.l.b16 %v405
    %v1042 = vunpack.c.h.b16 %v405
    %v1043 = vunpack.c.l.b16 %v406
    %v1044 = vunpack.c.l.b16 %v407
    %v1045 = vunpack.c.h.b16 %v407
    %v1046 = vunpack.c.l.b16 %v408
    %v1047 = vunpack.c.l.b16 %v409
    %v1048 = vunpack.c.h.b16 %v409
    %v1049 = vunpack.c.l.b16 %v410
    %v1050 = vunpack.c.l.b16 %v411
    %v1051 = vunpack.c.h.b16 %v411
    %v1052 = vunpack.c.l.b16 %v412
    %v1053 = vunpack.c.l.b16 %v413
    %v1054 = vunpack.c.h.b16 %v413
    %v1055 = vunpack.c.l.b16 %v414
    %v1056 = vunpack.c.l.b16 %v415
    %v1057 = vunpack.c.h.b16 %v415
    %v1058 = vunpack.c.l.b16 %v416
    %v1059 = vunpack.c.l.b16 %v417
    %v1060 = vunpack.c.h.b16 %v417
    %v1061 = vunpack.c.l.b16 %v418
    %v1062 = vunpack.c.l.b16 %v419
    %v1063 = vunpack.c.h.b16 %v419
    %v1064 = vunpack.c.l.b16 %v420
    %v1065 = vunpack.c.l.b16 %v421
    %v1066 = vunpack.c.h.b16 %v421
    %v1067 = vunpack.c.l.b16 %v422
    %v1068 = vunpack.c.l.b16 %v423
    %v1069 = vunpack.c.h.b16 %v423
    %v1070 = vunpack.c.l.b16 %v424
    %v1071 = vunpack.c.l.b16 %v425
    %v1072 = vunpack.c.h.b16 %v425
    %v1073 = vunpack.c.l.b16 %v426
    %v1074 = vunpack.c.l.b16 %v427
    %v1075 = vunpack.c.h.b16 %v427
    %v1076 = vunpack.c.l.b16 %v428
    %v1077 = vunpack.c.l.b16 %v429
    %v1078 = vunpack.c.h.b16 %v429
    %v1079 = vunpack.c.l.b16 %v430
    %v1080 = vunpack.c.l.b16 %v431
    %v1081 = vunpack.c.h.b16 %v431
    %v1082 = vunpack.c.l.b16 %v432
    %v1083 = vunpack.c.l.b16 %v433
    %v1084 = vunpack.c.h.b16 %v433
    %v1085 = vunpack.c.l.b16 %v434
    %v1086 = vunpack.c.l.b16 %v435
    %v1087 = vunpack.c.h.b16 %v435
    %v1088 = vunpack.c.l.b16 %v436
    %v1089 = vunpack.c.l.b16 %v437
    %v1090 = vunpack.c.h.b16 %v437
    %v1091 = vunpack.c.l.b16 %v438
    %v1092 = vunpack.c.l.b16 %v439
    %v1093 = vunpack.c.h.b16 %v439
    %v1094 = vunpack.c.l.b16 %v440
    %v1095 = vunpack.c.l.b16 %v441
    %v1096 = vunpack.c.h.b16 %v441
    %v1097 = vunpack.c.l.b16 %v442
    %v1098 = vunpack.c.l.b16 %v443
    %v1099 = vunpack.c.h.b16 %v443
    %v1100 = vunpack.c.l.b16 %v444
    %v1101 = vpack.c.b16 %v1008, %v1005
    %v1102 = vpack.c.b16 %v1009, %v1006
    %v1103 = vpack.c.b16 %v1010, %v1007
    %v1104 = vpack.c.b16 %v1014, %v1011
    %v1105 = vpack.c.b16 %v1015, %v1012
    %v1106 = vpack.c.b16 %v1016, %v1013
    %v1107 = vpack.c.b16 %v1020, %v1017
    %v1108 = vpack.c.b16 %v1021, %v1018
    %v1109 = vpack.c.b16 %v1022, %v1019
    %v1110 = vpack.c.b16 %v1026, %v1023
    %v1111 = vpack.c.b16 %v1027, %v1024
    %v1112 = vpack.c.b16 %v1028, %v1025
    %v1113 = vpack.c.b16 %v1032, %v1029
    %v1114 = vpack.c.b16 %v1033, %v1030
    %v1115 = vpack.c.b16 %v1034, %v1031
    %v1116 = vpack.c.b16 %v1038, %v1035
    %v1117 = vpack.c.b16 %v1039, %v1036
    %v1118 = vpack.c.b16 %v1040, %v1037
    %v1119 = vpack.c.b16 %v1044, %v1041
    %v1120 = vpack.c.b16 %v1045, %v1042
    %v1121 = vpack.c.b16 %v1046, %v1043
    %v1122 = vpack.c.b16 %v1050, %v1047
    %v1123 = vpack.c.b16 %v1051, %v1048
    %v1124 = vpack.c.b16 %v1052, %v1049
    %v1125 = vpack.c.b16 %v1056, %v1053
    %v1126 = vpack.c.b16 %v1057, %v1054
    %v1127 = vpack.c.b16 %v1058, %v1055
    %v1128 = vpack.c.b16 %v1062, %v1059
    %v1129 = vpack.c.b16 %v1063, %v1060
    %v1130 = vpack.c.b16 %v1064, %v1061
    %v1131 = vpack.c.b16 %v1068, %v1065
    %v1132 = vpack.c.b16 %v1069, %v1066
    %v1133 = vpack.c.b16 %v1070, %v1067
    %v1134 = vpack.c.b16 %v1074, %v1071
    %v1135 = vpack.c.b16 %v1075, %v1072
    %v1136 = vpack.c.b16 %v1076, %v1073
    %v1137 = vpack.c.b16 %v1080, %v1077
    %v1138 = vpack.c.b16 %v1081, %v1078
    %v1139 = vpack.c.b16 %v1082, %v1079
    %v1140 = vpack.c.b16 %v1086, %v1083
    %v1141 = vpack.c.b16 %v1087, %v1084
    %v1142 = vpack.c.b16 %v1088, %v1085
    %v1143 = vpack.c.b16 %v1092, %v1089
    %v1144 = vpack.c.b16 %v1093, %v1090
    %v1145 = vpack.c.b16 %v1094, %v1091
    %v1146 = vpack.c.b16 %v1098, %v1095
    %v1147 = vpack.c.b16 %v1099, %v1096
    %v1148 = vpack.c.b16 %v1100, %v1097
    %1197 = vmatprep.subr.bf16.mxu0 %v1102
    %1198 = vmatpush1.bf16.msra.mxu0 %v1101
    %1199 = vmatprep.subr.bf16.mxu0 %v1105
    %1200 = vmatpush1.bf16.msra.mxu0 %v1104
    %1201 = vmatprep.subr.bf16.mxu0 %v1108
    %1202 = vmatpush1.bf16.msra.mxu0 %v1107
    %1203 = vmatprep.subr.bf16.mxu0 %v1111
    %1204 = vmatpush1.bf16.msra.mxu0 %v1110
    %1205 = vmatprep.subr.bf16.mxu0 %v1114
    %1206 = vmatpush1.bf16.msra.mxu0 %v1113
    %1207 = vmatprep.subr.bf16.mxu0 %v1117
    %1208 = vmatpush1.bf16.msra.mxu0 %v1116
    %1209 = vmatprep.subr.bf16.mxu0 %v1120
    %1210 = vmatpush1.bf16.msra.mxu0 %v1119
    %1211 = vmatprep.subr.bf16.mxu0 %v1123
    %1212 = vmatpush1.bf16.msra.mxu0 %v1122
    %1213 = vmatprep.subr.bf16.mxu0 %v1126
    %1214 = vmatpush1.bf16.msra.mxu0 %v1125
    %1215 = vmatprep.subr.bf16.mxu0 %v1129
    %1216 = vmatpush1.bf16.msra.mxu0 %v1128
    %1217 = vmatprep.subr.bf16.mxu0 %v1132
    %1218 = vmatpush1.bf16.msra.mxu0 %v1131
    %1219 = vmatprep.subr.bf16.mxu0 %v1135
    %1220 = vmatpush1.bf16.msra.mxu0 %v1134
    %1221 = vmatprep.subr.bf16.mxu0 %v1138
    %1222 = vmatpush1.bf16.msra.mxu0 %v1137
    %1223 = vmatprep.subr.bf16.mxu0 %v1141
    %1224 = vmatpush1.bf16.msra.mxu0 %v1140
    %1225 = vmatprep.subr.bf16.mxu0 %v1144
    %1226 = vmatpush1.bf16.msra.mxu0 %v1143
    %1227 = vmatprep.subr.bf16.mxu0 %v1147
    %1228 = vmatpush1.bf16.msra.mxu0 %v1146
    %1229 = vmatprep.mubr.bf16.mxu0 %v378
    %1230 = vmatmul.mubr.bf16.gmra.mrb[0].mxu0 %v377
    %v1231 = vpop.f32.mrb[0].mxu0
    %v1232 = vadd.f32 %v827, %v1231
    %v1233 = vpop.f32.mrb[0].mxu0
    %v1234 = vadd.f32 %v829, %v1233
    %v1235 = vpop.f32.mrb[0].mxu0
    %v1236 = vadd.f32 %v831, %v1235
    %v1237 = vpop.f32.mrb[0].mxu0
    %v1238 = vadd.f32 %v833, %v1237
    %1239 = vdwg.mxu0
    %1240 = vmatprep.subr.bf16.mxu0 0
    %1241 = vmatpush1.bf16.msra.mxu0 %v1103
    %1242 = vmatprep.subr.bf16.mxu0 0
    %1243 = vmatpush1.bf16.msra.mxu0 %v1106
    %1244 = vmatprep.subr.bf16.mxu0 0
    %1245 = vmatpush1.bf16.msra.mxu0 %v1109
    %1246 = vmatprep.subr.bf16.mxu0 0
    %1247 = vmatpush1.bf16.msra.mxu0 %v1112
    %1248 = vmatprep.subr.bf16.mxu0 0
    %1249 = vmatpush1.bf16.msra.mxu0 %v1115
    %1250 = vmatprep.subr.bf16.mxu0 0
    %1251 = vmatpush1.bf16.msra.mxu0 %v1118
    %1252 = vmatprep.subr.bf16.mxu0 0
    %1253 = vmatpush1.bf16.msra.mxu0 %v1121
    %1254 = vmatprep.subr.bf16.mxu0 0
    %1255 = vmatpush1.bf16.msra.mxu0 %v1124
    %1256 = vmatprep.subr.bf16.mxu0 0
    %1257 = vmatpush1.bf16.msra.mxu0 %v1127
    %1258 = vmatprep.subr.bf16.mxu0 0
    %1259 = vmatpush1.bf16.msra.mxu0 %v1130
    %1260 = vmatprep.subr.bf16.mxu0 0
    %1261 = vmatpush1.bf16.msra.mxu0 %v1133
    %1262 = vmatprep.subr.bf16.mxu0 0
    %1263 = vmatpush1.bf16.msra.mxu0 %v1136
    %1264 = vmatprep.subr.bf16.mxu0 0
    %1265 = vmatpush1.bf16.msra.mxu0 %v1139
    %1266 = vmatprep.subr.bf16.mxu0 0
    %1267 = vmatpush1.bf16.msra.mxu0 %v1142
    %1268 = vmatprep.subr.bf16.mxu0 0
    %1269 = vmatpush1.bf16.msra.mxu0 %v1145
    %1270 = vmatprep.subr.bf16.mxu0 0
    %1271 = vmatpush1.bf16.msra.mxu0 %v1148
    %1272 = vmatprep.mubr.bf16.mxu0 %v378
    %1273 = vmatmul.mubr.bf16.gmra.mrb[0].mxu0 %v377
    %v1274 = vpop.f32.mrb[0].mxu0
    %v1275 = vadd.f32 %v870, %v1274
    %v1276 = vpop.f32.mrb[0].mxu0
    %v1277 = vpop.f32.mrb[0].mxu0
    %v1278 = vadd.f32 %v873, %v1277
    %v1279 = vpop.f32.mrb[0].mxu0
    %1280 = vdwg.mxu0
    %v1281 = vld [vmem:[%s4] sm:$0x7]
    %v1283 = vlaneseq
    %v1284 = vshrl.u32 %v1283, 7
    %v1285 = vsub.s32 0, %v1284
    %v1286 = vrot.slane %v1281, %v1285
    %v1287 = vlaneseq
    %v1288 = vshrl.u32 %v1287, 7
    %v1289 = vsub.s32 1, %v1288
    %v1290 = vrot.slane %v1281, %v1289
    %v1291 = vlaneseq
    %v1292 = vshrl.u32 %v1291, 7
    %v1293 = vsub.s32 2, %v1292
    %v1294 = vrot.slane %v1281, %v1293
    %v1302 = vrot.slane %v377, 1
    %v1303 = vrot.slane %v379, 1
    %v1304 = vsel %vm283, %v1302, %v1303
    %v1305 = vrot.slane %v378, 1
    %v1306 = vrot.slane %v380, 1
    %v1307 = vsel %vm283, %v1305, %v1306
    %v1374 = vunpack.c.l.b16 %v877
    %v1375 = vunpack.c.h.b16 %v877
    %v1376 = vunpack.c.l.b16 %v878
    %v1377 = vunpack.c.l.b16 %v879
    %v1378 = vunpack.c.h.b16 %v879
    %v1379 = vunpack.c.l.b16 %v880
    %v1380 = vunpack.c.l.b16 %v881
    %v1381 = vunpack.c.h.b16 %v881
    %v1382 = vunpack.c.l.b16 %v882
    %v1383 = vunpack.c.l.b16 %v883
    %v1384 = vunpack.c.h.b16 %v883
    %v1385 = vunpack.c.l.b16 %v884
    %v1386 = vunpack.c.l.b16 %v885
    %v1387 = vunpack.c.h.b16 %v885
    %v1388 = vunpack.c.l.b16 %v886
    %v1389 = vunpack.c.l.b16 %v887
    %v1390 = vunpack.c.h.b16 %v887
    %v1391 = vunpack.c.l.b16 %v888
    %v1392 = vunpack.c.l.b16 %v889
    %v1393 = vunpack.c.h.b16 %v889
    %v1394 = vunpack.c.l.b16 %v890
    %v1395 = vunpack.c.l.b16 %v891
    %v1396 = vunpack.c.h.b16 %v891
    %v1397 = vunpack.c.l.b16 %v892
    %v1398 = vunpack.c.l.b16 %v893
    %v1399 = vunpack.c.h.b16 %v893
    %v1400 = vunpack.c.l.b16 %v894
    %v1401 = vunpack.c.l.b16 %v895
    %v1402 = vunpack.c.h.b16 %v895
    %v1403 = vunpack.c.l.b16 %v896
    %v1404 = vunpack.c.l.b16 %v897
    %v1405 = vunpack.c.h.b16 %v897
    %v1406 = vunpack.c.l.b16 %v898
    %v1407 = vunpack.c.l.b16 %v899
    %v1408 = vunpack.c.h.b16 %v899
    %v1409 = vunpack.c.l.b16 %v900
    %v1410 = vunpack.c.l.b16 %v901
    %v1411 = vunpack.c.h.b16 %v901
    %v1412 = vunpack.c.l.b16 %v902
    %v1413 = vunpack.c.l.b16 %v903
    %v1414 = vunpack.c.h.b16 %v903
    %v1415 = vunpack.c.l.b16 %v904
    %v1416 = vunpack.c.l.b16 %v905
    %v1417 = vunpack.c.h.b16 %v905
    %v1418 = vunpack.c.l.b16 %v906
    %v1419 = vunpack.c.l.b16 %v907
    %v1420 = vunpack.c.h.b16 %v907
    %v1421 = vunpack.c.l.b16 %v908
    %v1422 = vunpack.c.l.b16 %v909
    %v1423 = vunpack.c.h.b16 %v909
    %v1424 = vunpack.c.l.b16 %v910
    %v1425 = vunpack.c.l.b16 %v911
    %v1426 = vunpack.c.h.b16 %v911
    %v1427 = vunpack.c.l.b16 %v912
    %v1428 = vunpack.c.l.b16 %v913
    %v1429 = vunpack.c.h.b16 %v913
    %v1430 = vunpack.c.l.b16 %v914
    %v1431 = vunpack.c.l.b16 %v915
    %v1432 = vunpack.c.h.b16 %v915
    %v1433 = vunpack.c.l.b16 %v916
    %v1434 = vunpack.c.l.b16 %v917
    %v1435 = vunpack.c.h.b16 %v917
    %v1436 = vunpack.c.l.b16 %v918
    %v1437 = vunpack.c.l.b16 %v919
    %v1438 = vunpack.c.h.b16 %v919
    %v1439 = vunpack.c.l.b16 %v920
    %v1440 = vunpack.c.l.b16 %v921
    %v1441 = vunpack.c.h.b16 %v921
    %v1442 = vunpack.c.l.b16 %v922
    %v1443 = vunpack.c.l.b16 %v923
    %v1444 = vunpack.c.h.b16 %v923
    %v1445 = vunpack.c.l.b16 %v924
    %v1446 = vunpack.c.l.b16 %v925
    %v1447 = vunpack.c.h.b16 %v925
    %v1448 = vunpack.c.l.b16 %v926
    %v1449 = vunpack.c.l.b16 %v927
    %v1450 = vunpack.c.h.b16 %v927
    %v1451 = vunpack.c.l.b16 %v928
    %v1452 = vunpack.c.l.b16 %v929
    %v1453 = vunpack.c.h.b16 %v929
    %v1454 = vunpack.c.l.b16 %v930
    %v1455 = vunpack.c.l.b16 %v931
    %v1456 = vunpack.c.h.b16 %v931
    %v1457 = vunpack.c.l.b16 %v932
    %v1458 = vunpack.c.l.b16 %v933
    %v1459 = vunpack.c.h.b16 %v933
    %v1460 = vunpack.c.l.b16 %v934
    %v1461 = vunpack.c.l.b16 %v935
    %v1462 = vunpack.c.h.b16 %v935
    %v1463 = vunpack.c.l.b16 %v936
    %v1464 = vunpack.c.l.b16 %v937
    %v1465 = vunpack.c.h.b16 %v937
    %v1466 = vunpack.c.l.b16 %v938
    %v1467 = vunpack.c.l.b16 %v939
    %v1468 = vunpack.c.h.b16 %v939
    %v1469 = vunpack.c.l.b16 %v940
    %v1470 = vpack.c.b16 %v1377, %v1374
    %v1471 = vpack.c.b16 %v1378, %v1375
    %v1472 = vpack.c.b16 %v1379, %v1376
    %v1473 = vpack.c.b16 %v1383, %v1380
    %v1474 = vpack.c.b16 %v1384, %v1381
    %v1475 = vpack.c.b16 %v1385, %v1382
    %v1476 = vpack.c.b16 %v1389, %v1386
    %v1477 = vpack.c.b16 %v1390, %v1387
    %v1478 = vpack.c.b16 %v1391, %v1388
    %v1479 = vpack.c.b16 %v1395, %v1392
    %v1480 = vpack.c.b16 %v1396, %v1393
    %v1481 = vpack.c.b16 %v1397, %v1394
    %v1482 = vpack.c.b16 %v1401, %v1398
    %v1483 = vpack.c.b16 %v1402, %v1399
    %v1484 = vpack.c.b16 %v1403, %v1400
    %v1485 = vpack.c.b16 %v1407, %v1404
    %v1486 = vpack.c.b16 %v1408, %v1405
    %v1487 = vpack.c.b16 %v1409, %v1406
    %v1488 = vpack.c.b16 %v1413, %v1410
    %v1489 = vpack.c.b16 %v1414, %v1411
    %v1490 = vpack.c.b16 %v1415, %v1412
    %v1491 = vpack.c.b16 %v1419, %v1416
    %v1492 = vpack.c.b16 %v1420, %v1417
    %v1493 = vpack.c.b16 %v1421, %v1418
    %v1494 = vpack.c.b16 %v1425, %v1422
    %v1495 = vpack.c.b16 %v1426, %v1423
    %v1496 = vpack.c.b16 %v1427, %v1424
    %v1497 = vpack.c.b16 %v1431, %v1428
    %v1498 = vpack.c.b16 %v1432, %v1429
    %v1499 = vpack.c.b16 %v1433, %v1430
    %v1500 = vpack.c.b16 %v1437, %v1434
    %v1501 = vpack.c.b16 %v1438, %v1435
    %v1502 = vpack.c.b16 %v1439, %v1436
    %v1503 = vpack.c.b16 %v1443, %v1440
    %v1504 = vpack.c.b16 %v1444, %v1441
    %v1505 = vpack.c.b16 %v1445, %v1442
    %v1506 = vpack.c.b16 %v1449, %v1446
    %v1507 = vpack.c.b16 %v1450, %v1447
    %v1508 = vpack.c.b16 %v1451, %v1448
    %v1509 = vpack.c.b16 %v1455, %v1452
    %v1510 = vpack.c.b16 %v1456, %v1453
    %v1511 = vpack.c.b16 %v1457, %v1454
    %v1512 = vpack.c.b16 %v1461, %v1458
    %v1513 = vpack.c.b16 %v1462, %v1459
    %v1514 = vpack.c.b16 %v1463, %v1460
    %v1515 = vpack.c.b16 %v1467, %v1464
    %v1516 = vpack.c.b16 %v1468, %v1465
    %v1517 = vpack.c.b16 %v1469, %v1466
    %1566 = vmatprep.subr.bf16.mxu0 %v1471
    %1567 = vmatpush1.bf16.msra.mxu0 %v1470
    %1568 = vmatprep.subr.bf16.mxu0 %v1474
    %1569 = vmatpush1.bf16.msra.mxu0 %v1473
    %1570 = vmatprep.subr.bf16.mxu0 %v1477
    %1571 = vmatpush1.bf16.msra.mxu0 %v1476
    %1572 = vmatprep.subr.bf16.mxu0 %v1480
    %1573 = vmatpush1.bf16.msra.mxu0 %v1479
    %1574 = vmatprep.subr.bf16.mxu0 %v1483
    %1575 = vmatpush1.bf16.msra.mxu0 %v1482
    %1576 = vmatprep.subr.bf16.mxu0 %v1486
    %1577 = vmatpush1.bf16.msra.mxu0 %v1485
    %1578 = vmatprep.subr.bf16.mxu0 %v1489
    %1579 = vmatpush1.bf16.msra.mxu0 %v1488
    %1580 = vmatprep.subr.bf16.mxu0 %v1492
    %1581 = vmatpush1.bf16.msra.mxu0 %v1491
    %1582 = vmatprep.subr.bf16.mxu0 %v1495
    %1583 = vmatpush1.bf16.msra.mxu0 %v1494
    %1584 = vmatprep.subr.bf16.mxu0 %v1498
    %1585 = vmatpush1.bf16.msra.mxu0 %v1497
    %1586 = vmatprep.subr.bf16.mxu0 %v1501
    %1587 = vmatpush1.bf16.msra.mxu0 %v1500
    %1588 = vmatprep.subr.bf16.mxu0 %v1504
    %1589 = vmatpush1.bf16.msra.mxu0 %v1503
    %1590 = vmatprep.subr.bf16.mxu0 %v1507
    %1591 = vmatpush1.bf16.msra.mxu0 %v1506
    %1592 = vmatprep.subr.bf16.mxu0 %v1510
    %1593 = vmatpush1.bf16.msra.mxu0 %v1509
    %1594 = vmatprep.subr.bf16.mxu0 %v1513
    %1595 = vmatpush1.bf16.msra.mxu0 %v1512
    %1596 = vmatprep.subr.bf16.mxu0 %v1516
    %1597 = vmatpush1.bf16.msra.mxu0 %v1515
    %1598 = vmatprep.mubr.bf16.mxu0 %v1307
    %1599 = vmatmul.mubr.bf16.gmra.mrb[0].mxu0 %v1304
    %v1600 = vpop.f32.mrb[0].mxu0
    %v1601 = vadd.f32 %v1286, %v1600
    %v1602 = vpop.f32.mrb[0].mxu0
    %v1603 = vadd.f32 %v1290, %v1602
    %v1604 = vpop.f32.mrb[0].mxu0
    %v1605 = vadd.f32 %v1286, %v1604
    %v1606 = vpop.f32.mrb[0].mxu0
    %v1607 = vadd.f32 %v1290, %v1606
    %1608 = vdwg.mxu0
    %1609 = vmatprep.subr.bf16.mxu0 0
    %1610 = vmatpush1.bf16.msra.mxu0 %v1472
    %1611 = vmatprep.subr.bf16.mxu0 0
    %1612 = vmatpush1.bf16.msra.mxu0 %v1475
    %1613 = vmatprep.subr.bf16.mxu0 0
    %1614 = vmatpush1.bf16.msra.mxu0 %v1478
    %1615 = vmatprep.subr.bf16.mxu0 0
    %1616 = vmatpush1.bf16.msra.mxu0 %v1481
    %1617 = vmatprep.subr.bf16.mxu0 0
    %1618 = vmatpush1.bf16.msra.mxu0 %v1484
    %1619 = vmatprep.subr.bf16.mxu0 0
    %1620 = vmatpush1.bf16.msra.mxu0 %v1487
    %1621 = vmatprep.subr.bf16.mxu0 0
    %1622 = vmatpush1.bf16.msra.mxu0 %v1490
    %1623 = vmatprep.subr.bf16.mxu0 0
    %1624 = vmatpush1.bf16.msra.mxu0 %v1493
    %1625 = vmatprep.subr.bf16.mxu0 0
    %1626 = vmatpush1.bf16.msra.mxu0 %v1496
    %1627 = vmatprep.subr.bf16.mxu0 0
    %1628 = vmatpush1.bf16.msra.mxu0 %v1499
    %1629 = vmatprep.subr.bf16.mxu0 0
    %1630 = vmatpush1.bf16.msra.mxu0 %v1502
    %1631 = vmatprep.subr.bf16.mxu0 0
    %1632 = vmatpush1.bf16.msra.mxu0 %v1505
    %1633 = vmatprep.subr.bf16.mxu0 0
    %1634 = vmatpush1.bf16.msra.mxu0 %v1508
    %1635 = vmatprep.subr.bf16.mxu0 0
    %1636 = vmatpush1.bf16.msra.mxu0 %v1511
    %1637 = vmatprep.subr.bf16.mxu0 0
    %1638 = vmatpush1.bf16.msra.mxu0 %v1514
    %1639 = vmatprep.subr.bf16.mxu0 0
    %1640 = vmatpush1.bf16.msra.mxu0 %v1517
    %1641 = vmatprep.mubr.bf16.mxu0 %v1307
    %1642 = vmatmul.mubr.bf16.gmra.mrb[0].mxu0 %v1304
    %v1643 = vpop.f32.mrb[0].mxu0
    %v1644 = vadd.f32 %v1294, %v1643
    %v1645 = vpop.f32.mrb[0].mxu0
    %v1646 = vpop.f32.mrb[0].mxu0
    %v1647 = vadd.f32 %v1294, %v1646
    %v1648 = vpop.f32.mrb[0].mxu0
    %1649 = vdwg.mxu0
    %v1650 = vadd.f32 %v1232, %v1601
    %v1651 = vadd.f32 %v1234, %v1603
    %v1652 = vadd.f32 %v1275, %v1644
    %v1653 = vadd.f32 %v1236, %v1605
    %v1654 = vadd.f32 %v1238, %v1607
    %v1655 = vadd.f32 %v1278, %v1647
    %v1656 = vmax.f32 %v1650, 0.0
    %v1657 = vmax.f32 %v1651, 0.0
    %v1658 = vmax.f32 %v1652, 0.0
    %v1659 = vmax.f32 %v1653, 0.0
    %v1660 = vmax.f32 %v1654, 0.0
    %v1661 = vmax.f32 %v1655, 0.0
    %v1662 = vpack.c.bf16 %v1659, %v1656
    %v1663 = vpack.c.bf16 %v1660, %v1657
    %v1664 = vpack.c.bf16 %v1661, %v1658
    %v1665 = vld [vmem:[#allocation5] sm:$0xff]
    %v1666 = vld [vmem:[#allocation5 + $0x8] sm:$0xff]
    %v1667 = vld [vmem:[#allocation5 + $0x10] sm:$0xff]
    %v1668 = vld [vmem:[#allocation5 + $0x18] sm:$0xff]
    %v1669 = vld [vmem:[#allocation5 + $0x20] sm:$0xff]
    %v1670 = vld [vmem:[#allocation5 + $0x28] sm:$0xff]
    %v1671 = vld [vmem:[#allocation5 + $0x30] sm:$0xff]
    %v1672 = vld [vmem:[#allocation5 + $0x38] sm:$0xff]
    %v1673 = vld [vmem:[#allocation5 + $0x40] sm:$0xff]
    %v1674 = vld [vmem:[#allocation5 + $0x48] sm:$0xff]
    %v1675 = vld [vmem:[#allocation5 + $0x50] sm:$0xff]
    %v1676 = vld [vmem:[#allocation5 + $0x58] sm:$0xff]
    %v1677 = vld [vmem:[#allocation5 + $0x60] sm:$0xff]
    %v1678 = vld [vmem:[#allocation5 + $0x68] sm:$0xff]
    %v1679 = vld [vmem:[#allocation5 + $0x70] sm:$0xff]
    %v1680 = vld [vmem:[#allocation5 + $0x78] sm:$0xff]
    %v1681 = vld [vmem:[#allocation5 + $0x80] sm:$0xff]
    %v1682 = vld [vmem:[#allocation5 + $0x88] sm:$0xff]
    %v1683 = vld [vmem:[#allocation5 + $0x90] sm:$0xff]
    %v1684 = vld [vmem:[#allocation5 + $0x98] sm:$0xff]
    %v1685 = vld [vmem:[#allocation5 + $0xa0] sm:$0xff]
    %v1686 = vld [vmem:[#allocation5 + $0xa8] sm:$0xff]
    %v1687 = vld [vmem:[#allocation5 + $0xb0] sm:$0xff]
    %v1688 = vld [vmem:[#allocation5 + $0xb8] sm:$0xff]
    %v1689 = vld [vmem:[#allocation5 + $0xc0] sm:$0xff]
    %v1690 = vld [vmem:[#allocation5 + $0xc8] sm:$0xff]
    %v1691 = vld [vmem:[#allocation5 + $0xd0] sm:$0xff]
    %v1692 = vld [vmem:[#allocation5 + $0xd8] sm:$0xff]
    %v1693 = vld [vmem:[#allocation5 + $0xe0] sm:$0xff]
    %v1694 = vld [vmem:[#allocation5 + $0xe8] sm:$0xff]
    %v1695 = vld [vmem:[#allocation5 + $0xf0] sm:$0xff]
    %v1696 = vld [vmem:[#allocation5 + $0xf8] sm:$0xff]
    %v1697 = vld [vmem:[#allocation5 + $0x100] sm:$0xff]
    %v1698 = vld [vmem:[#allocation5 + $0x108] sm:$0xff]
    %v1699 = vld [vmem:[#allocation5 + $0x110] sm:$0xff]
    %v1700 = vld [vmem:[#allocation5 + $0x118] sm:$0xff]
    %v1701 = vld [vmem:[#allocation5 + $0x120] sm:$0xff]
    %v1702 = vld [vmem:[#allocation5 + $0x128] sm:$0xff]
    %v1703 = vld [vmem:[#allocation5 + $0x130] sm:$0xff]
    %v1704 = vld [vmem:[#allocation5 + $0x138] sm:$0xff]
    %v1705 = vld [vmem:[#allocation5 + $0x140] sm:$0xff]
    %v1706 = vld [vmem:[#allocation5 + $0x148] sm:$0xff]
    %v1707 = vld [vmem:[#allocation5 + $0x150] sm:$0xff]
    %v1708 = vld [vmem:[#allocation5 + $0x158] sm:$0xff]
    %v1709 = vld [vmem:[#allocation5 + $0x160] sm:$0xff]
    %v1710 = vld [vmem:[#allocation5 + $0x168] sm:$0xff]
    %v1711 = vld [vmem:[#allocation5 + $0x170] sm:$0xff]
    %v1712 = vld [vmem:[#allocation5 + $0x178] sm:$0xff]
    %s1713 = scalar_lea.vmem [#allocation5], 384
    %v1714 = vld [vmem:[%s1713] sm:$0xff]
    %v1715 = vld [vmem:[%s1713 + $0x8] sm:$0xff]
    %v1716 = vld [vmem:[%s1713 + $0x10] sm:$0xff]
    %v1717 = vld [vmem:[%s1713 + $0x18] sm:$0xff]
    %v1718 = vld [vmem:[%s1713 + $0x20] sm:$0xff]
    %v1719 = vld [vmem:[%s1713 + $0x28] sm:$0xff]
    %v1720 = vld [vmem:[%s1713 + $0x30] sm:$0xff]
    %v1721 = vld [vmem:[%s1713 + $0x38] sm:$0xff]
    %v1722 = vld [vmem:[%s1713 + $0x40] sm:$0xff]
    %v1723 = vld [vmem:[%s1713 + $0x48] sm:$0xff]
    %v1724 = vld [vmem:[%s1713 + $0x50] sm:$0xff]
    %v1725 = vld [vmem:[%s1713 + $0x58] sm:$0xff]
    %v1726 = vld [vmem:[%s1713 + $0x60] sm:$0xff]
    %v1727 = vld [vmem:[%s1713 + $0x68] sm:$0xff]
    %v1728 = vld [vmem:[%s1713 + $0x70] sm:$0xff]
    %v1729 = vld [vmem:[%s1713 + $0x78] sm:$0xff]
    %v1730 = vld [vmem:[%s1713 + $0x80] sm:$0xff]
    %v1731 = vld [vmem:[%s1713 + $0x88] sm:$0xff]
    %v1732 = vld [vmem:[%s1713 + $0x90] sm:$0xff]
    %v1733 = vld [vmem:[%s1713 + $0x98] sm:$0xff]
    %v1734 = vld [vmem:[%s1713 + $0xa0] sm:$0xff]
    %v1735 = vld [vmem:[%s1713 + $0xa8] sm:$0xff]
    %v1736 = vld [vmem:[%s1713 + $0xb0] sm:$0xff]
    %v1737 = vld [vmem:[%s1713 + $0xb8] sm:$0xff]
    %v1738 = vld [vmem:[%s1713 + $0xc0] sm:$0xff]
    %v1739 = vld [vmem:[%s1713 + $0xc8] sm:$0xff]
    %v1740 = vld [vmem:[%s1713 + $0xd0] sm:$0xff]
    %v1741 = vld [vmem:[%s1713 + $0xd8] sm:$0xff]
    %v1742 = vld [vmem:[%s1713 + $0xe0] sm:$0xff]
    %v1743 = vld [vmem:[%s1713 + $0xe8] sm:$0xff]
    %v1744 = vld [vmem:[%s1713 + $0xf0] sm:$0xff]
    %v1745 = vld [vmem:[%s1713 + $0xf8] sm:$0xff]
    %v1746 = vld [vmem:[%s1713 + $0x100] sm:$0xff]
    %v1747 = vld [vmem:[%s1713 + $0x108] sm:$0xff]
    %v1748 = vld [vmem:[%s1713 + $0x110] sm:$0xff]
    %v1749 = vld [vmem:[%s1713 + $0x118] sm:$0xff]
    %v1750 = vld [vmem:[%s1713 + $0x120] sm:$0xff]
    %v1751 = vld [vmem:[%s1713 + $0x128] sm:$0xff]
    %v1752 = vld [vmem:[%s1713 + $0x130] sm:$0xff]
    %v1753 = vld [vmem:[%s1713 + $0x138] sm:$0xff]
    %v1754 = vld [vmem:[%s1713 + $0x140] sm:$0xff]
    %v1755 = vld [vmem:[%s1713 + $0x148] sm:$0xff]
    %v1756 = vld [vmem:[%s1713 + $0x150] sm:$0xff]
    %v1757 = vld [vmem:[%s1713 + $0x158] sm:$0xff]
    %v1758 = vld [vmem:[%s1713 + $0x160] sm:$0xff]
    %v1759 = vld [vmem:[%s1713 + $0x168] sm:$0xff]
    %v1760 = vld [vmem:[%s1713 + $0x170] sm:$0xff]
    %v1761 = vld [vmem:[%s1713 + $0x178] sm:$0xff]
    %v1763 = vshrl.u32 %v1662, 16
    %v1765 = vshll.u32 %v1662, 16
    %v1767 = vrot.slane %v1765, 1
    %v1768 = vor.u32 %v1763, %v1767
    %v1770 = vshrl.u32 %v1663, 16
    %v1772 = vshll.u32 %v1663, 16
    %v1774 = vrot.slane %v1772, 1
    %v1775 = vor.u32 %v1770, %v1774
    %v1777 = vshrl.u32 %v1664, 16
    %v1779 = vshll.u32 %v1664, 16
    %v1781 = vrot.slane %v1779, 1
    %v1782 = vor.u32 %v1777, %v1781
    %v1834 = vunpack.c.l.b16 %v1714
    %v1835 = vunpack.c.h.b16 %v1714
    %v1836 = vunpack.c.l.b16 %v1715
    %v1837 = vunpack.c.h.b16 %v1715
    %v1838 = vunpack.c.l.b16 %v1716
    %v1839 = vunpack.c.h.b16 %v1716
    %v1840 = vunpack.c.l.b16 %v1717
    %v1841 = vunpack.c.h.b16 %v1717
    %v1842 = vunpack.c.l.b16 %v1718
    %v1843 = vunpack.c.h.b16 %v1718
    %v1844 = vunpack.c.l.b16 %v1719
    %v1845 = vunpack.c.h.b16 %v1719
    %v1846 = vunpack.c.l.b16 %v1720
    %v1847 = vunpack.c.h.b16 %v1720
    %v1848 = vunpack.c.l.b16 %v1721
    %v1849 = vunpack.c.h.b16 %v1721
    %v1850 = vunpack.c.l.b16 %v1722
    %v1851 = vunpack.c.h.b16 %v1722
    %v1852 = vunpack.c.l.b16 %v1723
    %v1853 = vunpack.c.h.b16 %v1723
    %v1854 = vunpack.c.l.b16 %v1724
    %v1855 = vunpack.c.h.b16 %v1724
    %v1856 = vunpack.c.l.b16 %v1725
    %v1857 = vunpack.c.h.b16 %v1725
    %v1858 = vunpack.c.l.b16 %v1726
    %v1859 = vunpack.c.h.b16 %v1726
    %v1860 = vunpack.c.l.b16 %v1727
    %v1861 = vunpack.c.h.b16 %v1727
    %v1862 = vunpack.c.l.b16 %v1728
    %v1863 = vunpack.c.h.b16 %v1728
    %v1864 = vunpack.c.l.b16 %v1729
    %v1865 = vunpack.c.h.b16 %v1729
    %v1866 = vunpack.c.l.b16 %v1730
    %v1867 = vunpack.c.h.b16 %v1730
    %v1868 = vunpack.c.l.b16 %v1731
    %v1869 = vunpack.c.h.b16 %v1731
    %v1870 = vunpack.c.l.b16 %v1732
    %v1871 = vunpack.c.h.b16 %v1732
    %v1872 = vunpack.c.l.b16 %v1733
    %v1873 = vunpack.c.h.b16 %v1733
    %v1874 = vunpack.c.l.b16 %v1734
    %v1875 = vunpack.c.h.b16 %v1734
    %v1876 = vunpack.c.l.b16 %v1735
    %v1877 = vunpack.c.h.b16 %v1735
    %v1878 = vunpack.c.l.b16 %v1736
    %v1879 = vunpack.c.h.b16 %v1736
    %v1880 = vunpack.c.l.b16 %v1737
    %v1881 = vunpack.c.h.b16 %v1737
    %v1882 = vunpack.c.l.b16 %v1738
    %v1883 = vunpack.c.h.b16 %v1738
    %v1884 = vunpack.c.l.b16 %v1739
    %v1885 = vunpack.c.h.b16 %v1739
    %v1886 = vunpack.c.l.b16 %v1740
    %v1887 = vunpack.c.h.b16 %v1740
    %v1888 = vunpack.c.l.b16 %v1741
    %v1889 = vunpack.c.h.b16 %v1741
    %v1890 = vunpack.c.l.b16 %v1742
    %v1891 = vunpack.c.h.b16 %v1742
    %v1892 = vunpack.c.l.b16 %v1743
    %v1893 = vunpack.c.h.b16 %v1743
    %v1894 = vunpack.c.l.b16 %v1744
    %v1895 = vunpack.c.h.b16 %v1744
    %v1896 = vunpack.c.l.b16 %v1745
    %v1897 = vunpack.c.h.b16 %v1745
    %v1898 = vunpack.c.l.b16 %v1746
    %v1899 = vunpack.c.h.b16 %v1746
    %v1900 = vunpack.c.l.b16 %v1747
    %v1901 = vunpack.c.h.b16 %v1747
    %v1902 = vunpack.c.l.b16 %v1748
    %v1903 = vunpack.c.h.b16 %v1748
    %v1904 = vunpack.c.l.b16 %v1749
    %v1905 = vunpack.c.h.b16 %v1749
    %v1906 = vunpack.c.l.b16 %v1750
    %v1907 = vunpack.c.h.b16 %v1750
    %v1908 = vunpack.c.l.b16 %v1751
    %v1909 = vunpack.c.h.b16 %v1751
    %v1910 = vunpack.c.l.b16 %v1752
    %v1911 = vunpack.c.h.b16 %v1752
    %v1912 = vunpack.c.l.b16 %v1753
    %v1913 = vunpack.c.h.b16 %v1753
    %v1914 = vunpack.c.l.b16 %v1754
    %v1915 = vunpack.c.h.b16 %v1754
    %v1916 = vunpack.c.l.b16 %v1755
    %v1917 = vunpack.c.h.b16 %v1755
    %v1918 = vunpack.c.l.b16 %v1756
    %v1919 = vunpack.c.h.b16 %v1756
    %v1920 = vunpack.c.l.b16 %v1757
    %v1921 = vunpack.c.h.b16 %v1757
    %v1922 = vunpack.c.l.b16 %v1758
    %v1923 = vunpack.c.h.b16 %v1758
    %v1924 = vunpack.c.l.b16 %v1759
    %v1925 = vunpack.c.h.b16 %v1759
    %v1926 = vunpack.c.l.b16 %v1760
    %v1927 = vunpack.c.h.b16 %v1760
    %v1928 = vunpack.c.l.b16 %v1761
    %v1929 = vunpack.c.h.b16 %v1761
    %v1930 = vpack.c.b16 %v1836, %v1834
    %v1931 = vpack.c.b16 %v1837, %v1835
    %v1932 = vpack.c.b16 %v1840, %v1838
    %v1933 = vpack.c.b16 %v1841, %v1839
    %v1934 = vpack.c.b16 %v1844, %v1842
    %v1935 = vpack.c.b16 %v1845, %v1843
    %v1936 = vpack.c.b16 %v1848, %v1846
    %v1937 = vpack.c.b16 %v1849, %v1847
    %v1938 = vpack.c.b16 %v1852, %v1850
    %v1939 = vpack.c.b16 %v1853, %v1851
    %v1940 = vpack.c.b16 %v1856, %v1854
    %v1941 = vpack.c.b16 %v1857, %v1855
    %v1942 = vpack.c.b16 %v1860, %v1858
    %v1943 = vpack.c.b16 %v1861, %v1859
    %v1944 = vpack.c.b16 %v1864, %v1862
    %v1945 = vpack.c.b16 %v1865, %v1863
    %v1946 = vpack.c.b16 %v1868, %v1866
    %v1947 = vpack.c.b16 %v1869, %v1867
    %v1948 = vpack.c.b16 %v1872, %v1870
    %v1949 = vpack.c.b16 %v1873, %v1871
    %v1950 = vpack.c.b16 %v1876, %v1874
    %v1951 = vpack.c.b16 %v1877, %v1875
    %v1952 = vpack.c.b16 %v1880, %v1878
    %v1953 = vpack.c.b16 %v1881, %v1879
    %v1954 = vpack.c.b16 %v1884, %v1882
    %v1955 = vpack.c.b16 %v1885, %v1883
    %v1956 = vpack.c.b16 %v1888, %v1886
    %v1957 = vpack.c.b16 %v1889, %v1887
    %v1958 = vpack.c.b16 %v1892, %v1890
    %v1959 = vpack.c.b16 %v1893, %v1891
    %v1960 = vpack.c.b16 %v1896, %v1894
    %v1961 = vpack.c.b16 %v1897, %v1895
    %v1962 = vpack.c.b16 %v1900, %v1898
    %v1963 = vpack.c.b16 %v1901, %v1899
    %v1964 = vpack.c.b16 %v1904, %v1902
    %v1965 = vpack.c.b16 %v1905, %v1903
    %v1966 = vpack.c.b16 %v1908, %v1906
    %v1967 = vpack.c.b16 %v1909, %v1907
    %v1968 = vpack.c.b16 %v1912, %v1910
    %v1969 = vpack.c.b16 %v1913, %v1911
    %v1970 = vpack.c.b16 %v1916, %v1914
    %v1971 = vpack.c.b16 %v1917, %v1915
    %v1972 = vpack.c.b16 %v1920, %v1918
    %v1973 = vpack.c.b16 %v1921, %v1919
    %v1974 = vpack.c.b16 %v1924, %v1922
    %v1975 = vpack.c.b16 %v1925, %v1923
    %v1976 = vpack.c.b16 %v1928, %v1926
    %v1977 = vpack.c.b16 %v1929, %v1927
    %2026 = vmatprep.subr.bf16.mxu0 %v1931
    %2027 = vmatpush1.bf16.msra.mxu0 %v1930
    %2028 = vmatprep.subr.bf16.mxu0 %v1933
    %2029 = vmatpush1.bf16.msra.mxu0 %v1932
    %2030 = vmatprep.subr.bf16.mxu0 %v1935
    %2031 = vmatpush1.bf16.msra.mxu0 %v1934
    %2032 = vmatprep.subr.bf16.mxu0 %v1937
    %2033 = vmatpush1.bf16.msra.mxu0 %v1936
    %2034 = vmatprep.subr.bf16.mxu0 %v1939
    %2035 = vmatpush1.bf16.msra.mxu0 %v1938
    %2036 = vmatprep.subr.bf16.mxu0 %v1941
    %2037 = vmatpush1.bf16.msra.mxu0 %v1940
    %2038 = vmatprep.subr.bf16.mxu0 %v1943
    %2039 = vmatpush1.bf16.msra.mxu0 %v1942
    %2040 = vmatprep.subr.bf16.mxu0 %v1945
    %2041 = vmatpush1.bf16.msra.mxu0 %v1944
    %2042 = vmatprep.subr.bf16.mxu0 %v1947
    %2043 = vmatpush1.bf16.msra.mxu0 %v1946
    %2044 = vmatprep.subr.bf16.mxu0 %v1949
    %2045 = vmatpush1.bf16.msra.mxu0 %v1948
    %2046 = vmatprep.subr.bf16.mxu0 %v1951
    %2047 = vmatpush1.bf16.msra.mxu0 %v1950
    %2048 = vmatprep.subr.bf16.mxu0 %v1953
    %2049 = vmatpush1.bf16.msra.mxu0 %v1952
    %2050 = vmatprep.subr.bf16.mxu0 %v1955
    %2051 = vmatpush1.bf16.msra.mxu0 %v1954
    %2052 = vmatprep.subr.bf16.mxu0 %v1957
    %2053 = vmatpush1.bf16.msra.mxu0 %v1956
    %2054 = vmatprep.subr.bf16.mxu0 %v1959
    %2055 = vmatpush1.bf16.msra.mxu0 %v1958
    %2056 = vmatprep.subr.bf16.mxu0 %v1961
    %2057 = vmatpush1.bf16.msra.mxu0 %v1960
    %2058 = vmatprep.mubr.bf16.mxu0 %v1775
    %2059 = vmatmul.mubr.bf16.gmra.mrb[0].mxu0 %v1768
    %v2060 = vpop.f32.mrb[0].mxu0
    %v2061 = vadd.f32 0.0, %v2060
    %v2062 = vpop.f32.mrb[0].mxu0
    %v2063 = vadd.f32 0.0, %v2062
    %v2064 = vpop.f32.mrb[0].mxu0
    %v2065 = vadd.f32 0.0, %v2064
    %v2066 = vpop.f32.mrb[0].mxu0
    %v2067 = vadd.f32 0.0, %v2066
    %2068 = vdwg.mxu0
    %2069 = vmatprep.subr.bf16.mxu0 %v1963
    %2070 = vmatpush1.bf16.msra.mxu0 %v1962
    %2071 = vmatprep.subr.bf16.mxu0 %v1965
    %2072 = vmatpush1.bf16.msra.mxu0 %v1964
    %2073 = vmatprep.subr.bf16.mxu0 %v1967
    %2074 = vmatpush1.bf16.msra.mxu0 %v1966
    %2075 = vmatprep.subr.bf16.mxu0 %v1969
    %2076 = vmatpush1.bf16.msra.mxu0 %v1968
    %2077 = vmatprep.subr.bf16.mxu0 %v1971
    %2078 = vmatpush1.bf16.msra.mxu0 %v1970
    %2079 = vmatprep.subr.bf16.mxu0 %v1973
    %2080 = vmatpush1.bf16.msra.mxu0 %v1972
    %2081 = vmatprep.subr.bf16.mxu0 %v1975
    %2082 = vmatpush1.bf16.msra.mxu0 %v1974
    %2083 = vmatprep.subr.bf16.mxu0 %v1977
    %2084 = vmatpush1.bf16.msra.mxu0 %v1976
    %2085 = vmatprep.subr.bf16.mxu0 0
    %2086 = vmatpush1.bf16.msra.mxu0 0
    %2087 = vmatprep.subr.bf16.mxu0 0
    %2088 = vmatpush1.bf16.msra.mxu0 0
    %2089 = vmatprep.subr.bf16.mxu0 0
    %2090 = vmatpush1.bf16.msra.mxu0 0
    %2091 = vmatprep.subr.bf16.mxu0 0
    %2092 = vmatpush1.bf16.msra.mxu0 0
    %2093 = vmatprep.subr.bf16.mxu0 0
    %2094 = vmatpush1.bf16.msra.mxu0 0
    %2095 = vmatprep.subr.bf16.mxu0 0
    %2096 = vmatpush1.bf16.msra.mxu0 0
    %2097 = vmatprep.subr.bf16.mxu0 0
    %2098 = vmatpush1.bf16.msra.mxu0 0
    %2099 = vmatprep.subr.bf16.mxu0 0
    %2100 = vmatpush1.bf16.msra.mxu0 0
    %2101 = vmatprep.mubr.bf16.mxu0 0
    %2102 = vmatmul.mubr.bf16.gmra.mrb[0].mxu0 %v1782
    %v2103 = vpop.f32.mrb[0].mxu0
    %v2104 = vadd.f32 %v2061, %v2103
    %v2105 = vpop.f32.mrb[0].mxu0
    %v2106 = vadd.f32 %v2063, %v2105
    %v2107 = vpop.f32.mrb[0].mxu0
    %v2108 = vadd.f32 %v2065, %v2107
    %v2109 = vpop.f32.mrb[0].mxu0
    %v2110 = vadd.f32 %v2067, %v2109
    %2111 = vdwg.mxu0
    %s2112 = scalar_lea.vmem [#allocation5], 768
    %v2113 = vld [vmem:[%s2112] sm:$0xff]
    %v2114 = vld [vmem:[%s2112 + $0x8] sm:$0xff]
    %v2115 = vld [vmem:[%s2112 + $0x10] sm:$0xff]
    %v2116 = vld [vmem:[%s2112 + $0x18] sm:$0xff]
    %v2117 = vld [vmem:[%s2112 + $0x20] sm:$0xff]
    %v2118 = vld [vmem:[%s2112 + $0x28] sm:$0xff]
    %v2119 = vld [vmem:[%s2112 + $0x30] sm:$0xff]
    %v2120 = vld [vmem:[%s2112 + $0x38] sm:$0xff]
    %v2121 = vld [vmem:[%s2112 + $0x40] sm:$0xff]
    %v2122 = vld [vmem:[%s2112 + $0x48] sm:$0xff]
    %v2123 = vld [vmem:[%s2112 + $0x50] sm:$0xff]
    %v2124 = vld [vmem:[%s2112 + $0x58] sm:$0xff]
    %v2125 = vld [vmem:[%s2112 + $0x60] sm:$0xff]
    %v2126 = vld [vmem:[%s2112 + $0x68] sm:$0xff]
    %v2127 = vld [vmem:[%s2112 + $0x70] sm:$0xff]
    %v2128 = vld [vmem:[%s2112 + $0x78] sm:$0xff]
    %v2129 = vld [vmem:[%s2112 + $0x80] sm:$0xff]
    %v2130 = vld [vmem:[%s2112 + $0x88] sm:$0xff]
    %v2131 = vld [vmem:[%s2112 + $0x90] sm:$0xff]
    %v2132 = vld [vmem:[%s2112 + $0x98] sm:$0xff]
    %v2133 = vld [vmem:[%s2112 + $0xa0] sm:$0xff]
    %v2134 = vld [vmem:[%s2112 + $0xa8] sm:$0xff]
    %v2135 = vld [vmem:[%s2112 + $0xb0] sm:$0xff]
    %v2136 = vld [vmem:[%s2112 + $0xb8] sm:$0xff]
    %v2137 = vld [vmem:[%s2112 + $0xc0] sm:$0xff]
    %v2138 = vld [vmem:[%s2112 + $0xc8] sm:$0xff]
    %v2139 = vld [vmem:[%s2112 + $0xd0] sm:$0xff]
    %v2140 = vld [vmem:[%s2112 + $0xd8] sm:$0xff]
    %v2141 = vld [vmem:[%s2112 + $0xe0] sm:$0xff]
    %v2142 = vld [vmem:[%s2112 + $0xe8] sm:$0xff]
    %v2143 = vld [vmem:[%s2112 + $0xf0] sm:$0xff]
    %v2144 = vld [vmem:[%s2112 + $0xf8] sm:$0xff]
    %v2145 = vld [vmem:[%s2112 + $0x100] sm:$0xff]
    %v2146 = vld [vmem:[%s2112 + $0x108] sm:$0xff]
    %v2147 = vld [vmem:[%s2112 + $0x110] sm:$0xff]
    %v2148 = vld [vmem:[%s2112 + $0x118] sm:$0xff]
    %v2149 = vld [vmem:[%s2112 + $0x120] sm:$0xff]
    %v2150 = vld [vmem:[%s2112 + $0x128] sm:$0xff]
    %v2151 = vld [vmem:[%s2112 + $0x130] sm:$0xff]
    %v2152 = vld [vmem:[%s2112 + $0x138] sm:$0xff]
    %v2153 = vld [vmem:[%s2112 + $0x140] sm:$0xff]
    %v2154 = vld [vmem:[%s2112 + $0x148] sm:$0xff]
    %v2155 = vld [vmem:[%s2112 + $0x150] sm:$0xff]
    %v2156 = vld [vmem:[%s2112 + $0x158] sm:$0xff]
    %v2157 = vld [vmem:[%s2112 + $0x160] sm:$0xff]
    %v2158 = vld [vmem:[%s2112 + $0x168] sm:$0xff]
    %v2159 = vld [vmem:[%s2112 + $0x170] sm:$0xff]
    %v2160 = vld [vmem:[%s2112 + $0x178] sm:$0xff]
    %v2209 = vunpack.c.l.b16 %v1665
    %v2210 = vunpack.c.h.b16 %v1665
    %v2211 = vunpack.c.l.b16 %v1666
    %v2212 = vunpack.c.h.b16 %v1666
    %v2213 = vunpack.c.l.b16 %v1667
    %v2214 = vunpack.c.h.b16 %v1667
    %v2215 = vunpack.c.l.b16 %v1668
    %v2216 = vunpack.c.h.b16 %v1668
    %v2217 = vunpack.c.l.b16 %v1669
    %v2218 = vunpack.c.h.b16 %v1669
    %v2219 = vunpack.c.l.b16 %v1670
    %v2220 = vunpack.c.h.b16 %v1670
    %v2221 = vunpack.c.l.b16 %v1671
    %v2222 = vunpack.c.h.b16 %v1671
    %v2223 = vunpack.c.l.b16 %v1672
    %v2224 = vunpack.c.h.b16 %v1672
    %v2225 = vunpack.c.l.b16 %v1673
    %v2226 = vunpack.c.h.b16 %v1673
    %v2227 = vunpack.c.l.b16 %v1674
    %v2228 = vunpack.c.h.b16 %v1674
    %v2229 = vunpack.c.l.b16 %v1675
    %v2230 = vunpack.c.h.b16 %v1675
    %v2231 = vunpack.c.l.b16 %v1676
    %v2232 = vunpack.c.h.b16 %v1676
    %v2233 = vunpack.c.l.b16 %v1677
    %v2234 = vunpack.c.h.b16 %v1677
    %v2235 = vunpack.c.l.b16 %v1678
    %v2236 = vunpack.c.h.b16 %v1678
    %v2237 = vunpack.c.l.b16 %v1679
    %v2238 = vunpack.c.h.b16 %v1679
    %v2239 = vunpack.c.l.b16 %v1680
    %v2240 = vunpack.c.h.b16 %v1680
    %v2241 = vunpack.c.l.b16 %v1681
    %v2242 = vunpack.c.h.b16 %v1681
    %v2243 = vunpack.c.l.b16 %v1682
    %v2244 = vunpack.c.h.b16 %v1682
    %v2245 = vunpack.c.l.b16 %v1683
    %v2246 = vunpack.c.h.b16 %v1683
    %v2247 = vunpack.c.l.b16 %v1684
    %v2248 = vunpack.c.h.b16 %v1684
    %v2249 = vunpack.c.l.b16 %v1685
    %v2250 = vunpack.c.h.b16 %v1685
    %v2251 = vunpack.c.l.b16 %v1686
    %v2252 = vunpack.c.h.b16 %v1686
    %v2253 = vunpack.c.l.b16 %v1687
    %v2254 = vunpack.c.h.b16 %v1687
    %v2255 = vunpack.c.l.b16 %v1688
    %v2256 = vunpack.c.h.b16 %v1688
    %v2257 = vunpack.c.l.b16 %v1689
    %v2258 = vunpack.c.h.b16 %v1689
    %v2259 = vunpack.c.l.b16 %v1690
    %v2260 = vunpack.c.h.b16 %v1690
    %v2261 = vunpack.c.l.b16 %v1691
    %v2262 = vunpack.c.h.b16 %v1691
    %v2263 = vunpack.c.l.b16 %v1692
    %v2264 = vunpack.c.h.b16 %v1692
    %v2265 = vunpack.c.l.b16 %v1693
    %v2266 = vunpack.c.h.b16 %v1693
    %v2267 = vunpack.c.l.b16 %v1694
    %v2268 = vunpack.c.h.b16 %v1694
    %v2269 = vunpack.c.l.b16 %v1695
    %v2270 = vunpack.c.h.b16 %v1695
    %v2271 = vunpack.c.l.b16 %v1696
    %v2272 = vunpack.c.h.b16 %v1696
    %v2273 = vunpack.c.l.b16 %v1697
    %v2274 = vunpack.c.h.b16 %v1697
    %v2275 = vunpack.c.l.b16 %v1698
    %v2276 = vunpack.c.h.b16 %v1698
    %v2277 = vunpack.c.l.b16 %v1699
    %v2278 = vunpack.c.h.b16 %v1699
    %v2279 = vunpack.c.l.b16 %v1700
    %v2280 = vunpack.c.h.b16 %v1700
    %v2281 = vunpack.c.l.b16 %v1701
    %v2282 = vunpack.c.h.b16 %v1701
    %v2283 = vunpack.c.l.b16 %v1702
    %v2284 = vunpack.c.h.b16 %v1702
    %v2285 = vunpack.c.l.b16 %v1703
    %v2286 = vunpack.c.h.b16 %v1703
    %v2287 = vunpack.c.l.b16 %v1704
    %v2288 = vunpack.c.h.b16 %v1704
    %v2289 = vunpack.c.l.b16 %v1705
    %v2290 = vunpack.c.h.b16 %v1705
    %v2291 = vunpack.c.l.b16 %v1706
    %v2292 = vunpack.c.h.b16 %v1706
    %v2293 = vunpack.c.l.b16 %v1707
    %v2294 = vunpack.c.h.b16 %v1707
    %v2295 = vunpack.c.l.b16 %v1708
    %v2296 = vunpack.c.h.b16 %v1708
    %v2297 = vunpack.c.l.b16 %v1709
    %v2298 = vunpack.c.h.b16 %v1709
    %v2299 = vunpack.c.l.b16 %v1710
    %v2300 = vunpack.c.h.b16 %v1710
    %v2301 = vunpack.c.l.b16 %v1711
    %v2302 = vunpack.c.h.b16 %v1711
    %v2303 = vunpack.c.l.b16 %v1712
    %v2304 = vunpack.c.h.b16 %v1712
    %v2305 = vpack.c.b16 %v2211, %v2209
    %v2306 = vpack.c.b16 %v2212, %v2210
    %v2307 = vpack.c.b16 %v2215, %v2213
    %v2308 = vpack.c.b16 %v2216, %v2214
    %v2309 = vpack.c.b16 %v2219, %v2217
    %v2310 = vpack.c.b16 %v2220, %v2218
    %v2311 = vpack.c.b16 %v2223, %v2221
    %v2312 = vpack.c.b16 %v2224, %v2222
    %v2313 = vpack.c.b16 %v2227, %v2225
    %v2314 = vpack.c.b16 %v2228, %v2226
    %v2315 = vpack.c.b16 %v2231, %v2229
    %v2316 = vpack.c.b16 %v2232, %v2230
    %v2317 = vpack.c.b16 %v2235, %v2233
    %v2318 = vpack.c.b16 %v2236, %v2234
    %v2319 = vpack.c.b16 %v2239, %v2237
    %v2320 = vpack.c.b16 %v2240, %v2238
    %v2321 = vpack.c.b16 %v2243, %v2241
    %v2322 = vpack.c.b16 %v2244, %v2242
    %v2323 = vpack.c.b16 %v2247, %v2245
    %v2324 = vpack.c.b16 %v2248, %v2246
    %v2325 = vpack.c.b16 %v2251, %v2249
    %v2326 = vpack.c.b16 %v2252, %v2250
    %v2327 = vpack.c.b16 %v2255, %v2253
    %v2328 = vpack.c.b16 %v2256, %v2254
    %v2329 = vpack.c.b16 %v2259, %v2257
    %v2330 = vpack.c.b16 %v2260, %v2258
    %v2331 = vpack.c.b16 %v2263, %v2261
    %v2332 = vpack.c.b16 %v2264, %v2262
    %v2333 = vpack.c.b16 %v2267, %v2265
    %v2334 = vpack.c.b16 %v2268, %v2266
    %v2335 = vpack.c.b16 %v2271, %v2269
    %v2336 = vpack.c.b16 %v2272, %v2270
    %v2337 = vpack.c.b16 %v2275, %v2273
    %v2338 = vpack.c.b16 %v2276, %v2274
    %v2339 = vpack.c.b16 %v2279, %v2277
    %v2340 = vpack.c.b16 %v2280, %v2278
    %v2341 = vpack.c.b16 %v2283, %v2281
    %v2342 = vpack.c.b16 %v2284, %v2282
    %v2343 = vpack.c.b16 %v2287, %v2285
    %v2344 = vpack.c.b16 %v2288, %v2286
    %v2345 = vpack.c.b16 %v2291, %v2289
    %v2346 = vpack.c.b16 %v2292, %v2290
    %v2347 = vpack.c.b16 %v2295, %v2293
    %v2348 = vpack.c.b16 %v2296, %v2294
    %v2349 = vpack.c.b16 %v2299, %v2297
    %v2350 = vpack.c.b16 %v2300, %v2298
    %v2351 = vpack.c.b16 %v2303, %v2301
    %v2352 = vpack.c.b16 %v2304, %v2302
    %2401 = vmatprep.subr.bf16.mxu0 %v2306
    %2402 = vmatpush1.bf16.msra.mxu0 %v2305
    %2403 = vmatprep.subr.bf16.mxu0 %v2308
    %2404 = vmatpush1.bf16.msra.mxu0 %v2307
    %2405 = vmatprep.subr.bf16.mxu0 %v2310
    %2406 = vmatpush1.bf16.msra.mxu0 %v2309
    %2407 = vmatprep.subr.bf16.mxu0 %v2312
    %2408 = vmatpush1.bf16.msra.mxu0 %v2311
    %2409 = vmatprep.subr.bf16.mxu0 %v2314
    %2410 = vmatpush1.bf16.msra.mxu0 %v2313
    %2411 = vmatprep.subr.bf16.mxu0 %v2316
    %2412 = vmatpush1.bf16.msra.mxu0 %v2315
    %2413 = vmatprep.subr.bf16.mxu0 %v2318
    %2414 = vmatpush1.bf16.msra.mxu0 %v2317
    %2415 = vmatprep.subr.bf16.mxu0 %v2320
    %2416 = vmatpush1.bf16.msra.mxu0 %v2319
    %2417 = vmatprep.subr.bf16.mxu0 %v2322
    %2418 = vmatpush1.bf16.msra.mxu0 %v2321
    %2419 = vmatprep.subr.bf16.mxu0 %v2324
    %2420 = vmatpush1.bf16.msra.mxu0 %v2323
    %2421 = vmatprep.subr.bf16.mxu0 %v2326
    %2422 = vmatpush1.bf16.msra.mxu0 %v2325
    %2423 = vmatprep.subr.bf16.mxu0 %v2328
    %2424 = vmatpush1.bf16.msra.mxu0 %v2327
    %2425 = vmatprep.subr.bf16.mxu0 %v2330
    %2426 = vmatpush1.bf16.msra.mxu0 %v2329
    %2427 = vmatprep.subr.bf16.mxu0 %v2332
    %2428 = vmatpush1.bf16.msra.mxu0 %v2331
    %2429 = vmatprep.subr.bf16.mxu0 %v2334
    %2430 = vmatpush1.bf16.msra.mxu0 %v2333
    %2431 = vmatprep.subr.bf16.mxu0 %v2336
    %2432 = vmatpush1.bf16.msra.mxu0 %v2335
    %2433 = vmatprep.mubr.bf16.mxu0 %v1663
    %2434 = vmatmul.mubr.bf16.gmra.mrb[0].mxu0 %v1662
    %v2435 = vpop.f32.mrb[0].mxu0
    %v2436 = vadd.f32 %v2104, %v2435
    %v2437 = vpop.f32.mrb[0].mxu0
    %v2438 = vadd.f32 %v2106, %v2437
    %v2439 = vpop.f32.mrb[0].mxu0
    %v2440 = vadd.f32 %v2108, %v2439
    %v2441 = vpop.f32.mrb[0].mxu0
    %v2442 = vadd.f32 %v2110, %v2441
    %2443 = vdwg.mxu0
    %2444 = vmatprep.subr.bf16.mxu0 %v2338
    %2445 = vmatpush1.bf16.msra.mxu0 %v2337
    %2446 = vmatprep.subr.bf16.mxu0 %v2340
    %2447 = vmatpush1.bf16.msra.mxu0 %v2339
    %2448 = vmatprep.subr.bf16.mxu0 %v2342
    %2449 = vmatpush1.bf16.msra.mxu0 %v2341
    %2450 = vmatprep.subr.bf16.mxu0 %v2344
    %2451 = vmatpush1.bf16.msra.mxu0 %v2343
    %2452 = vmatprep.subr.bf16.mxu0 %v2346
    %2453 = vmatpush1.bf16.msra.mxu0 %v2345
    %2454 = vmatprep.subr.bf16.mxu0 %v2348
    %2455 = vmatpush1.bf16.msra.mxu0 %v2347
    %2456 = vmatprep.subr.bf16.mxu0 %v2350
    %2457 = vmatpush1.bf16.msra.mxu0 %v2349
    %2458 = vmatprep.subr.bf16.mxu0 %v2352
    %2459 = vmatpush1.bf16.msra.mxu0 %v2351
    %2460 = vmatprep.subr.bf16.mxu0 0
    %2461 = vmatpush1.bf16.msra.mxu0 0
    %2462 = vmatprep.subr.bf16.mxu0 0
    %2463 = vmatpush1.bf16.msra.mxu0 0
    %2464 = vmatprep.subr.bf16.mxu0 0
    %2465 = vmatpush1.bf16.msra.mxu0 0
    %2466 = vmatprep.subr.bf16.mxu0 0
    %2467 = vmatpush1.bf16.msra.mxu0 0
    %2468 = vmatprep.subr.bf16.mxu0 0
    %2469 = vmatpush1.bf16.msra.mxu0 0
    %2470 = vmatprep.subr.bf16.mxu0 0
    %2471 = vmatpush1.bf16.msra.mxu0 0
    %2472 = vmatprep.subr.bf16.mxu0 0
    %2473 = vmatpush1.bf16.msra.mxu0 0
    %2474 = vmatprep.subr.bf16.mxu0 0
    %2475 = vmatpush1.bf16.msra.mxu0 0
    %2476 = vmatprep.mubr.bf16.mxu0 0
    %2477 = vmatmul.mubr.bf16.gmra.mrb[0].mxu0 %v1664
    %v2478 = vpop.f32.mrb[0].mxu0
    %v2479 = vadd.f32 %v2436, %v2478
    %v2480 = vpop.f32.mrb[0].mxu0
    %v2481 = vadd.f32 %v2438, %v2480
    %v2482 = vpop.f32.mrb[0].mxu0
    %v2483 = vadd.f32 %v2440, %v2482
    %v2484 = vpop.f32.mrb[0].mxu0
    %v2485 = vadd.f32 %v2442, %v2484
    %2486 = vdwg.mxu0
    %v2487 = vld [vmem:[%s6] sm:$0x3]
    %v2489 = vlaneseq
    %v2490 = vshrl.u32 %v2489, 7
    %v2491 = vsub.s32 0, %v2490
    %v2492 = vrot.slane %v2487, %v2491
    %v2493 = vlaneseq
    %v2494 = vshrl.u32 %v2493, 7
    %v2495 = vsub.s32 1, %v2494
    %v2496 = vrot.slane %v2487, %v2495
    %v2502 = vrot.slane %v1662, 1
    %v2503 = vrot.slane %v1663, 1
    %v2504 = vrot.slane %v1664, 1
    %v2556 = vunpack.c.l.b16 %v2113
    %v2557 = vunpack.c.h.b16 %v2113
    %v2558 = vunpack.c.l.b16 %v2114
    %v2559 = vunpack.c.h.b16 %v2114
    %v2560 = vunpack.c.l.b16 %v2115
    %v2561 = vunpack.c.h.b16 %v2115
    %v2562 = vunpack.c.l.b16 %v2116
    %v2563 = vunpack.c.h.b16 %v2116
    %v2564 = vunpack.c.l.b16 %v2117
    %v2565 = vunpack.c.h.b16 %v2117
    %v2566 = vunpack.c.l.b16 %v2118
    %v2567 = vunpack.c.h.b16 %v2118
    %v2568 = vunpack.c.l.b16 %v2119
    %v2569 = vunpack.c.h.b16 %v2119
    %v2570 = vunpack.c.l.b16 %v2120
    %v2571 = vunpack.c.h.b16 %v2120
    %v2572 = vunpack.c.l.b16 %v2121
    %v2573 = vunpack.c.h.b16 %v2121
    %v2574 = vunpack.c.l.b16 %v2122
    %v2575 = vunpack.c.h.b16 %v2122
    %v2576 = vunpack.c.l.b16 %v2123
    %v2577 = vunpack.c.h.b16 %v2123
    %v2578 = vunpack.c.l.b16 %v2124
    %v2579 = vunpack.c.h.b16 %v2124
    %v2580 = vunpack.c.l.b16 %v2125
    %v2581 = vunpack.c.h.b16 %v2125
    %v2582 = vunpack.c.l.b16 %v2126
    %v2583 = vunpack.c.h.b16 %v2126
    %v2584 = vunpack.c.l.b16 %v2127
    %v2585 = vunpack.c.h.b16 %v2127
    %v2586 = vunpack.c.l.b16 %v2128
    %v2587 = vunpack.c.h.b16 %v2128
    %v2588 = vunpack.c.l.b16 %v2129
    %v2589 = vunpack.c.h.b16 %v2129
    %v2590 = vunpack.c.l.b16 %v2130
    %v2591 = vunpack.c.h.b16 %v2130
    %v2592 = vunpack.c.l.b16 %v2131
    %v2593 = vunpack.c.h.b16 %v2131
    %v2594 = vunpack.c.l.b16 %v2132
    %v2595 = vunpack.c.h.b16 %v2132
    %v2596 = vunpack.c.l.b16 %v2133
    %v2597 = vunpack.c.h.b16 %v2133
    %v2598 = vunpack.c.l.b16 %v2134
    %v2599 = vunpack.c.h.b16 %v2134
    %v2600 = vunpack.c.l.b16 %v2135
    %v2601 = vunpack.c.h.b16 %v2135
    %v2602 = vunpack.c.l.b16 %v2136
    %v2603 = vunpack.c.h.b16 %v2136
    %v2604 = vunpack.c.l.b16 %v2137
    %v2605 = vunpack.c.h.b16 %v2137
    %v2606 = vunpack.c.l.b16 %v2138
    %v2607 = vunpack.c.h.b16 %v2138
    %v2608 = vunpack.c.l.b16 %v2139
    %v2609 = vunpack.c.h.b16 %v2139
    %v2610 = vunpack.c.l.b16 %v2140
    %v2611 = vunpack.c.h.b16 %v2140
    %v2612 = vunpack.c.l.b16 %v2141
    %v2613 = vunpack.c.h.b16 %v2141
    %v2614 = vunpack.c.l.b16 %v2142
    %v2615 = vunpack.c.h.b16 %v2142
    %v2616 = vunpack.c.l.b16 %v2143
    %v2617 = vunpack.c.h.b16 %v2143
    %v2618 = vunpack.c.l.b16 %v2144
    %v2619 = vunpack.c.h.b16 %v2144
    %v2620 = vunpack.c.l.b16 %v2145
    %v2621 = vunpack.c.h.b16 %v2145
    %v2622 = vunpack.c.l.b16 %v2146
    %v2623 = vunpack.c.h.b16 %v2146
    %v2624 = vunpack.c.l.b16 %v2147
    %v2625 = vunpack.c.h.b16 %v2147
    %v2626 = vunpack.c.l.b16 %v2148
    %v2627 = vunpack.c.h.b16 %v2148
    %v2628 = vunpack.c.l.b16 %v2149
    %v2629 = vunpack.c.h.b16 %v2149
    %v2630 = vunpack.c.l.b16 %v2150
    %v2631 = vunpack.c.h.b16 %v2150
    %v2632 = vunpack.c.l.b16 %v2151
    %v2633 = vunpack.c.h.b16 %v2151
    %v2634 = vunpack.c.l.b16 %v2152
    %v2635 = vunpack.c.h.b16 %v2152
    %v2636 = vunpack.c.l.b16 %v2153
    %v2637 = vunpack.c.h.b16 %v2153
    %v2638 = vunpack.c.l.b16 %v2154
    %v2639 = vunpack.c.h.b16 %v2154
    %v2640 = vunpack.c.l.b16 %v2155
    %v2641 = vunpack.c.h.b16 %v2155
    %v2642 = vunpack.c.l.b16 %v2156
    %v2643 = vunpack.c.h.b16 %v2156
    %v2644 = vunpack.c.l.b16 %v2157
    %v2645 = vunpack.c.h.b16 %v2157
    %v2646 = vunpack.c.l.b16 %v2158
    %v2647 = vunpack.c.h.b16 %v2158
    %v2648 = vunpack.c.l.b16 %v2159
    %v2649 = vunpack.c.h.b16 %v2159
    %v2650 = vunpack.c.l.b16 %v2160
    %v2651 = vunpack.c.h.b16 %v2160
    %v2652 = vpack.c.b16 %v2558, %v2556
    %v2653 = vpack.c.b16 %v2559, %v2557
    %v2654 = vpack.c.b16 %v2562, %v2560
    %v2655 = vpack.c.b16 %v2563, %v2561
    %v2656 = vpack.c.b16 %v2566, %v2564
    %v2657 = vpack.c.b16 %v2567, %v2565
    %v2658 = vpack.c.b16 %v2570, %v2568
    %v2659 = vpack.c.b16 %v2571, %v2569
    %v2660 = vpack.c.b16 %v2574, %v2572
    %v2661 = vpack.c.b16 %v2575, %v2573
    %v2662 = vpack.c.b16 %v2578, %v2576
    %v2663 = vpack.c.b16 %v2579, %v2577
    %v2664 = vpack.c.b16 %v2582, %v2580
    %v2665 = vpack.c.b16 %v2583, %v2581
    %v2666 = vpack.c.b16 %v2586, %v2584
    %v2667 = vpack.c.b16 %v2587, %v2585
    %v2668 = vpack.c.b16 %v2590, %v2588
    %v2669 = vpack.c.b16 %v2591, %v2589
    %v2670 = vpack.c.b16 %v2594, %v2592
    %v2671 = vpack.c.b16 %v2595, %v2593
    %v2672 = vpack.c.b16 %v2598, %v2596
    %v2673 = vpack.c.b16 %v2599, %v2597
    %v2674 = vpack.c.b16 %v2602, %v2600
    %v2675 = vpack.c.b16 %v2603, %v2601
    %v2676 = vpack.c.b16 %v2606, %v2604
    %v2677 = vpack.c.b16 %v2607, %v2605
    %v2678 = vpack.c.b16 %v2610, %v2608
    %v2679 = vpack.c.b16 %v2611, %v2609
    %v2680 = vpack.c.b16 %v2614, %v2612
    %v2681 = vpack.c.b16 %v2615, %v2613
    %v2682 = vpack.c.b16 %v2618, %v2616
    %v2683 = vpack.c.b16 %v2619, %v2617
    %v2684 = vpack.c.b16 %v2622, %v2620
    %v2685 = vpack.c.b16 %v2623, %v2621
    %v2686 = vpack.c.b16 %v2626, %v2624
    %v2687 = vpack.c.b16 %v2627, %v2625
    %v2688 = vpack.c.b16 %v2630, %v2628
    %v2689 = vpack.c.b16 %v2631, %v2629
    %v2690 = vpack.c.b16 %v2634, %v2632
    %v2691 = vpack.c.b16 %v2635, %v2633
    %v2692 = vpack.c.b16 %v2638, %v2636
    %v2693 = vpack.c.b16 %v2639, %v2637
    %v2694 = vpack.c.b16 %v2642, %v2640
    %v2695 = vpack.c.b16 %v2643, %v2641
    %v2696 = vpack.c.b16 %v2646, %v2644
    %v2697 = vpack.c.b16 %v2647, %v2645
    %v2698 = vpack.c.b16 %v2650, %v2648
    %v2699 = vpack.c.b16 %v2651, %v2649
    %2748 = vmatprep.subr.bf16.mxu0 %v2653
    %2749 = vmatpush1.bf16.msra.mxu0 %v2652
    %2750 = vmatprep.subr.bf16.mxu0 %v2655
    %2751 = vmatpush1.bf16.msra.mxu0 %v2654
    %2752 = vmatprep.subr.bf16.mxu0 %v2657
    %2753 = vmatpush1.bf16.msra.mxu0 %v2656
    %2754 = vmatprep.subr.bf16.mxu0 %v2659
    %2755 = vmatpush1.bf16.msra.mxu0 %v2658
    %2756 = vmatprep.subr.bf16.mxu0 %v2661
    %2757 = vmatpush1.bf16.msra.mxu0 %v2660
    %2758 = vmatprep.subr.bf16.mxu0 %v2663
    %2759 = vmatpush1.bf16.msra.mxu0 %v2662
    %2760 = vmatprep.subr.bf16.mxu0 %v2665
    %2761 = vmatpush1.bf16.msra.mxu0 %v2664
    %2762 = vmatprep.subr.bf16.mxu0 %v2667
    %2763 = vmatpush1.bf16.msra.mxu0 %v2666
    %2764 = vmatprep.subr.bf16.mxu0 %v2669
    %2765 = vmatpush1.bf16.msra.mxu0 %v2668
    %2766 = vmatprep.subr.bf16.mxu0 %v2671
    %2767 = vmatpush1.bf16.msra.mxu0 %v2670
    %2768 = vmatprep.subr.bf16.mxu0 %v2673
    %2769 = vmatpush1.bf16.msra.mxu0 %v2672
    %2770 = vmatprep.subr.bf16.mxu0 %v2675
    %2771 = vmatpush1.bf16.msra.mxu0 %v2674
    %2772 = vmatprep.subr.bf16.mxu0 %v2677
    %2773 = vmatpush1.bf16.msra.mxu0 %v2676
    %2774 = vmatprep.subr.bf16.mxu0 %v2679
    %2775 = vmatpush1.bf16.msra.mxu0 %v2678
    %2776 = vmatprep.subr.bf16.mxu0 %v2681
    %2777 = vmatpush1.bf16.msra.mxu0 %v2680
    %2778 = vmatprep.subr.bf16.mxu0 %v2683
    %2779 = vmatpush1.bf16.msra.mxu0 %v2682
    %2780 = vmatprep.mubr.bf16.mxu0 %v2503
    %2781 = vmatmul.mubr.bf16.gmra.mrb[0].mxu0 %v2502
    %v2782 = vpop.f32.mrb[0].mxu0
    %v2783 = vadd.f32 %v2492, %v2782
    %v2784 = vpop.f32.mrb[0].mxu0
    %v2785 = vadd.f32 %v2496, %v2784
    %v2786 = vpop.f32.mrb[0].mxu0
    %v2787 = vadd.f32 %v2492, %v2786
    %v2788 = vpop.f32.mrb[0].mxu0
    %v2789 = vadd.f32 %v2496, %v2788
    %2790 = vdwg.mxu0
    %2791 = vmatprep.subr.bf16.mxu0 %v2685
    %2792 = vmatpush1.bf16.msra.mxu0 %v2684
    %2793 = vmatprep.subr.bf16.mxu0 %v2687
    %2794 = vmatpush1.bf16.msra.mxu0 %v2686
    %2795 = vmatprep.subr.bf16.mxu0 %v2689
    %2796 = vmatpush1.bf16.msra.mxu0 %v2688
    %2797 = vmatprep.subr.bf16.mxu0 %v2691
    %2798 = vmatpush1.bf16.msra.mxu0 %v2690
    %2799 = vmatprep.subr.bf16.mxu0 %v2693
    %2800 = vmatpush1.bf16.msra.mxu0 %v2692
    %2801 = vmatprep.subr.bf16.mxu0 %v2695
    %2802 = vmatpush1.bf16.msra.mxu0 %v2694
    %2803 = vmatprep.subr.bf16.mxu0 %v2697
    %2804 = vmatpush1.bf16.msra.mxu0 %v2696
    %2805 = vmatprep.subr.bf16.mxu0 %v2699
    %2806 = vmatpush1.bf16.msra.mxu0 %v2698
    %2807 = vmatprep.subr.bf16.mxu0 0
    %2808 = vmatpush1.bf16.msra.mxu0 0
    %2809 = vmatprep.subr.bf16.mxu0 0
    %2810 = vmatpush1.bf16.msra.mxu0 0
    %2811 = vmatprep.subr.bf16.mxu0 0
    %2812 = vmatpush1.bf16.msra.mxu0 0
    %2813 = vmatprep.subr.bf16.mxu0 0
    %2814 = vmatpush1.bf16.msra.mxu0 0
    %2815 = vmatprep.subr.bf16.mxu0 0
    %2816 = vmatpush1.bf16.msra.mxu0 0
    %2817 = vmatprep.subr.bf16.mxu0 0
    %2818 = vmatpush1.bf16.msra.mxu0 0
    %2819 = vmatprep.subr.bf16.mxu0 0
    %2820 = vmatpush1.bf16.msra.mxu0 0
    %2821 = vmatprep.subr.bf16.mxu0 0
    %2822 = vmatpush1.bf16.msra.mxu0 0
    %2823 = vmatprep.mubr.bf16.mxu0 0
    %2824 = vmatmul.mubr.bf16.gmra.mrb[0].mxu0 %v2504
    %v2825 = vpop.f32.mrb[0].mxu0
    %v2826 = vadd.f32 %v2783, %v2825
    %v2827 = vpop.f32.mrb[0].mxu0
    %v2828 = vadd.f32 %v2785, %v2827
    %v2829 = vpop.f32.mrb[0].mxu0
    %v2830 = vadd.f32 %v2787, %v2829
    %v2831 = vpop.f32.mrb[0].mxu0
    %v2832 = vadd.f32 %v2789, %v2831
    %2833 = vdwg.mxu0
    %v2834 = vadd.f32 %v2479, %v2826
    %v2835 = vadd.f32 %v2481, %v2828
    %v2836 = vadd.f32 %v2483, %v2830
    %v2837 = vadd.f32 %v2485, %v2832
    %v2838 = vmax.f32 %v2834, 0.0
    %v2839 = vmax.f32 %v2835, 0.0
    %v2840 = vmax.f32 %v2836, 0.0
    %v2841 = vmax.f32 %v2837, 0.0
    %v2842 = vpack.c.bf16 %v2840, %v2838
    %v2843 = vpack.c.bf16 %v2841, %v2839
    %v2844 = vld [vmem:[#allocation7] sm:$0xff]
    %v2845 = vld [vmem:[#allocation7 + $0x8] sm:$0xff]
    %v2846 = vld [vmem:[#allocation7 + $0x10] sm:$0xff]
    %v2847 = vld [vmem:[#allocation7 + $0x18] sm:$0xff]
    %v2848 = vld [vmem:[#allocation7 + $0x20] sm:$0xff]
    %v2849 = vld [vmem:[#allocation7 + $0x28] sm:$0xff]
    %v2850 = vld [vmem:[#allocation7 + $0x30] sm:$0xff]
    %v2851 = vld [vmem:[#allocation7 + $0x38] sm:$0xff]
    %v2852 = vld [vmem:[#allocation7 + $0x40] sm:$0xff]
    %v2853 = vld [vmem:[#allocation7 + $0x48] sm:$0xff]
    %v2854 = vld [vmem:[#allocation7 + $0x50] sm:$0xff]
    %v2855 = vld [vmem:[#allocation7 + $0x58] sm:$0xff]
    %v2856 = vld [vmem:[#allocation7 + $0x60] sm:$0xff]
    %v2857 = vld [vmem:[#allocation7 + $0x68] sm:$0xff]
    %v2858 = vld [vmem:[#allocation7 + $0x70] sm:$0xff]
    %v2859 = vld [vmem:[#allocation7 + $0x78] sm:$0xff]
    %v2860 = vld [vmem:[#allocation7 + $0x80] sm:$0xff]
    %v2861 = vld [vmem:[#allocation7 + $0x88] sm:$0xff]
    %v2862 = vld [vmem:[#allocation7 + $0x90] sm:$0xff]
    %v2863 = vld [vmem:[#allocation7 + $0x98] sm:$0xff]
    %v2864 = vld [vmem:[#allocation7 + $0xa0] sm:$0xff]
    %v2865 = vld [vmem:[#allocation7 + $0xa8] sm:$0xff]
    %v2866 = vld [vmem:[#allocation7 + $0xb0] sm:$0xff]
    %v2867 = vld [vmem:[#allocation7 + $0xb8] sm:$0xff]
    %v2868 = vld [vmem:[#allocation7 + $0xc0] sm:$0xff]
    %v2869 = vld [vmem:[#allocation7 + $0xc8] sm:$0xff]
    %v2870 = vld [vmem:[#allocation7 + $0xd0] sm:$0xff]
    %v2871 = vld [vmem:[#allocation7 + $0xd8] sm:$0xff]
    %v2872 = vld [vmem:[#allocation7 + $0xe0] sm:$0xff]
    %v2873 = vld [vmem:[#allocation7 + $0xe8] sm:$0xff]
    %v2874 = vld [vmem:[#allocation7 + $0xf0] sm:$0xff]
    %v2875 = vld [vmem:[#allocation7 + $0xf8] sm:$0xff]
    %s2876 = scalar_lea.vmem [#allocation7], 256
    %v2877 = vld [vmem:[%s2876] sm:$0xff]
    %v2878 = vld [vmem:[%s2876 + $0x8] sm:$0xff]
    %v2879 = vld [vmem:[%s2876 + $0x10] sm:$0xff]
    %v2880 = vld [vmem:[%s2876 + $0x18] sm:$0xff]
    %v2881 = vld [vmem:[%s2876 + $0x20] sm:$0xff]
    %v2882 = vld [vmem:[%s2876 + $0x28] sm:$0xff]
    %v2883 = vld [vmem:[%s2876 + $0x30] sm:$0xff]
    %v2884 = vld [vmem:[%s2876 + $0x38] sm:$0xff]
    %v2885 = vld [vmem:[%s2876 + $0x40] sm:$0xff]
    %v2886 = vld [vmem:[%s2876 + $0x48] sm:$0xff]
    %v2887 = vld [vmem:[%s2876 + $0x50] sm:$0xff]
    %v2888 = vld [vmem:[%s2876 + $0x58] sm:$0xff]
    %v2889 = vld [vmem:[%s2876 + $0x60] sm:$0xff]
    %v2890 = vld [vmem:[%s2876 + $0x68] sm:$0xff]
    %v2891 = vld [vmem:[%s2876 + $0x70] sm:$0xff]
    %v2892 = vld [vmem:[%s2876 + $0x78] sm:$0xff]
    %v2893 = vld [vmem:[%s2876 + $0x80] sm:$0xff]
    %v2894 = vld [vmem:[%s2876 + $0x88] sm:$0xff]
    %v2895 = vld [vmem:[%s2876 + $0x90] sm:$0xff]
    %v2896 = vld [vmem:[%s2876 + $0x98] sm:$0xff]
    %v2897 = vld [vmem:[%s2876 + $0xa0] sm:$0xff]
    %v2898 = vld [vmem:[%s2876 + $0xa8] sm:$0xff]
    %v2899 = vld [vmem:[%s2876 + $0xb0] sm:$0xff]
    %v2900 = vld [vmem:[%s2876 + $0xb8] sm:$0xff]
    %v2901 = vld [vmem:[%s2876 + $0xc0] sm:$0xff]
    %v2902 = vld [vmem:[%s2876 + $0xc8] sm:$0xff]
    %v2903 = vld [vmem:[%s2876 + $0xd0] sm:$0xff]
    %v2904 = vld [vmem:[%s2876 + $0xd8] sm:$0xff]
    %v2905 = vld [vmem:[%s2876 + $0xe0] sm:$0xff]
    %v2906 = vld [vmem:[%s2876 + $0xe8] sm:$0xff]
    %v2907 = vld [vmem:[%s2876 + $0xf0] sm:$0xff]
    %v2908 = vld [vmem:[%s2876 + $0xf8] sm:$0xff]
    %v2910 = vshrl.u32 %v2842, 16
    %v2912 = vshll.u32 %v2842, 16
    %v2914 = vrot.slane %v2912, 1
    %v2915 = vor.u32 %v2910, %v2914
    %v2917 = vshrl.u32 %v2843, 16
    %v2919 = vshll.u32 %v2843, 16
    %v2921 = vrot.slane %v2919, 1
    %v2922 = vor.u32 %v2917, %v2921
    %v2957 = vunpack.c.l.b16 %v2877
    %v2958 = vunpack.c.h.b16 %v2877
    %v2959 = vunpack.c.l.b16 %v2878
    %v2960 = vunpack.c.h.b16 %v2878
    %v2961 = vunpack.c.l.b16 %v2879
    %v2962 = vunpack.c.h.b16 %v2879
    %v2963 = vunpack.c.l.b16 %v2880
    %v2964 = vunpack.c.h.b16 %v2880
    %v2965 = vunpack.c.l.b16 %v2881
    %v2966 = vunpack.c.h.b16 %v2881
    %v2967 = vunpack.c.l.b16 %v2882
    %v2968 = vunpack.c.h.b16 %v2882
    %v2969 = vunpack.c.l.b16 %v2883
    %v2970 = vunpack.c.h.b16 %v2883
    %v2971 = vunpack.c.l.b16 %v2884
    %v2972 = vunpack.c.h.b16 %v2884
    %v2973 = vunpack.c.l.b16 %v2885
    %v2974 = vunpack.c.h.b16 %v2885
    %v2975 = vunpack.c.l.b16 %v2886
    %v2976 = vunpack.c.h.b16 %v2886
    %v2977 = vunpack.c.l.b16 %v2887
    %v2978 = vunpack.c.h.b16 %v2887
    %v2979 = vunpack.c.l.b16 %v2888
    %v2980 = vunpack.c.h.b16 %v2888
    %v2981 = vunpack.c.l.b16 %v2889
    %v2982 = vunpack.c.h.b16 %v2889
    %v2983 = vunpack.c.l.b16 %v2890
    %v2984 = vunpack.c.h.b16 %v2890
    %v2985 = vunpack.c.l.b16 %v2891
    %v2986 = vunpack.c.h.b16 %v2891
    %v2987 = vunpack.c.l.b16 %v2892
    %v2988 = vunpack.c.h.b16 %v2892
    %v2989 = vunpack.c.l.b16 %v2893
    %v2990 = vunpack.c.h.b16 %v2893
    %v2991 = vunpack.c.l.b16 %v2894
    %v2992 = vunpack.c.h.b16 %v2894
    %v2993 = vunpack.c.l.b16 %v2895
    %v2994 = vunpack.c.h.b16 %v2895
    %v2995 = vunpack.c.l.b16 %v2896
    %v2996 = vunpack.c.h.b16 %v2896
    %v2997 = vunpack.c.l.b16 %v2897
    %v2998 = vunpack.c.h.b16 %v2897
    %v2999 = vunpack.c.l.b16 %v2898
    %v3000 = vunpack.c.h.b16 %v2898
    %v3001 = vunpack.c.l.b16 %v2899
    %v3002 = vunpack.c.h.b16 %v2899
    %v3003 = vunpack.c.l.b16 %v2900
    %v3004 = vunpack.c.h.b16 %v2900
    %v3005 = vunpack.c.l.b16 %v2901
    %v3006 = vunpack.c.h.b16 %v2901
    %v3007 = vunpack.c.l.b16 %v2902
    %v3008 = vunpack.c.h.b16 %v2902
    %v3009 = vunpack.c.l.b16 %v2903
    %v3010 = vunpack.c.h.b16 %v2903
    %v3011 = vunpack.c.l.b16 %v2904
    %v3012 = vunpack.c.h.b16 %v2904
    %v3013 = vunpack.c.l.b16 %v2905
    %v3014 = vunpack.c.h.b16 %v2905
    %v3015 = vunpack.c.l.b16 %v2906
    %v3016 = vunpack.c.h.b16 %v2906
    %v3017 = vunpack.c.l.b16 %v2907
    %v3018 = vunpack.c.h.b16 %v2907
    %v3019 = vunpack.c.l.b16 %v2908
    %v3020 = vunpack.c.h.b16 %v2908
    %v3021 = vpack.c.b16 %v2959, %v2957
    %v3022 = vpack.c.b16 %v2960, %v2958
    %v3023 = vpack.c.b16 %v2963, %v2961
    %v3024 = vpack.c.b16 %v2964, %v2962
    %v3025 = vpack.c.b16 %v2967, %v2965
    %v3026 = vpack.c.b16 %v2968, %v2966
    %v3027 = vpack.c.b16 %v2971, %v2969
    %v3028 = vpack.c.b16 %v2972, %v2970
    %v3029 = vpack.c.b16 %v2975, %v2973
    %v3030 = vpack.c.b16 %v2976, %v2974
    %v3031 = vpack.c.b16 %v2979, %v2977
    %v3032 = vpack.c.b16 %v2980, %v2978
    %v3033 = vpack.c.b16 %v2983, %v2981
    %v3034 = vpack.c.b16 %v2984, %v2982
    %v3035 = vpack.c.b16 %v2987, %v2985
    %v3036 = vpack.c.b16 %v2988, %v2986
    %v3037 = vpack.c.b16 %v2991, %v2989
    %v3038 = vpack.c.b16 %v2992, %v2990
    %v3039 = vpack.c.b16 %v2995, %v2993
    %v3040 = vpack.c.b16 %v2996, %v2994
    %v3041 = vpack.c.b16 %v2999, %v2997
    %v3042 = vpack.c.b16 %v3000, %v2998
    %v3043 = vpack.c.b16 %v3003, %v3001
    %v3044 = vpack.c.b16 %v3004, %v3002
    %v3045 = vpack.c.b16 %v3007, %v3005
    %v3046 = vpack.c.b16 %v3008, %v3006
    %v3047 = vpack.c.b16 %v3011, %v3009
    %v3048 = vpack.c.b16 %v3012, %v3010
    %v3049 = vpack.c.b16 %v3015, %v3013
    %v3050 = vpack.c.b16 %v3016, %v3014
    %v3051 = vpack.c.b16 %v3019, %v3017
    %v3052 = vpack.c.b16 %v3020, %v3018
    %3085 = vmatprep.subr.bf16.mxu0 %v3022
    %3086 = vmatpush1.bf16.msra.mxu0 %v3021
    %3087 = vmatprep.subr.bf16.mxu0 %v3024
    %3088 = vmatpush1.bf16.msra.mxu0 %v3023
    %3089 = vmatprep.subr.bf16.mxu0 %v3026
    %3090 = vmatpush1.bf16.msra.mxu0 %v3025
    %3091 = vmatprep.subr.bf16.mxu0 %v3028
    %3092 = vmatpush1.bf16.msra.mxu0 %v3027
    %3093 = vmatprep.subr.bf16.mxu0 %v3030
    %3094 = vmatpush1.bf16.msra.mxu0 %v3029
    %3095 = vmatprep.subr.bf16.mxu0 %v3032
    %3096 = vmatpush1.bf16.msra.mxu0 %v3031
    %3097 = vmatprep.subr.bf16.mxu0 %v3034
    %3098 = vmatpush1.bf16.msra.mxu0 %v3033
    %3099 = vmatprep.subr.bf16.mxu0 %v3036
    %3100 = vmatpush1.bf16.msra.mxu0 %v3035
    %3101 = vmatprep.subr.bf16.mxu0 %v3038
    %3102 = vmatpush1.bf16.msra.mxu0 %v3037
    %3103 = vmatprep.subr.bf16.mxu0 %v3040
    %3104 = vmatpush1.bf16.msra.mxu0 %v3039
    %3105 = vmatprep.subr.bf16.mxu0 %v3042
    %3106 = vmatpush1.bf16.msra.mxu0 %v3041
    %3107 = vmatprep.subr.bf16.mxu0 %v3044
    %3108 = vmatpush1.bf16.msra.mxu0 %v3043
    %3109 = vmatprep.subr.bf16.mxu0 %v3046
    %3110 = vmatpush1.bf16.msra.mxu0 %v3045
    %3111 = vmatprep.subr.bf16.mxu0 %v3048
    %3112 = vmatpush1.bf16.msra.mxu0 %v3047
    %3113 = vmatprep.subr.bf16.mxu0 %v3050
    %3114 = vmatpush1.bf16.msra.mxu0 %v3049
    %3115 = vmatprep.subr.bf16.mxu0 %v3052
    %3116 = vmatpush1.bf16.msra.mxu0 %v3051
    %3117 = vmatprep.mubr.bf16.mxu0 %v2922
    %3118 = vmatmul.mubr.bf16.gmra.mrb[0].mxu0 %v2915
    %v3119 = vpop.f32.mrb[0].mxu0
    %v3120 = vadd.f32 0.0, %v3119
    %v3121 = vpop.f32.mrb[0].mxu0
    %v3122 = vadd.f32 0.0, %v3121
    %v3123 = vpop.f32.mrb[0].mxu0
    %v3124 = vadd.f32 0.0, %v3123
    %v3125 = vpop.f32.mrb[0].mxu0
    %v3126 = vadd.f32 0.0, %v3125
    %3127 = vdwg.mxu0
    %s3128 = scalar_lea.vmem [#allocation7], 512
    %v3129 = vld [vmem:[%s3128] sm:$0xff]
    %v3130 = vld [vmem:[%s3128 + $0x8] sm:$0xff]
    %v3131 = vld [vmem:[%s3128 + $0x10] sm:$0xff]
    %v3132 = vld [vmem:[%s3128 + $0x18] sm:$0xff]
    %v3133 = vld [vmem:[%s3128 + $0x20] sm:$0xff]
    %v3134 = vld [vmem:[%s3128 + $0x28] sm:$0xff]
    %v3135 = vld [vmem:[%s3128 + $0x30] sm:$0xff]
    %v3136 = vld [vmem:[%s3128 + $0x38] sm:$0xff]
    %v3137 = vld [vmem:[%s3128 + $0x40] sm:$0xff]
    %v3138 = vld [vmem:[%s3128 + $0x48] sm:$0xff]
    %v3139 = vld [vmem:[%s3128 + $0x50] sm:$0xff]
    %v3140 = vld [vmem:[%s3128 + $0x58] sm:$0xff]
    %v3141 = vld [vmem:[%s3128 + $0x60] sm:$0xff]
    %v3142 = vld [vmem:[%s3128 + $0x68] sm:$0xff]
    %v3143 = vld [vmem:[%s3128 + $0x70] sm:$0xff]
    %v3144 = vld [vmem:[%s3128 + $0x78] sm:$0xff]
    %v3145 = vld [vmem:[%s3128 + $0x80] sm:$0xff]
    %v3146 = vld [vmem:[%s3128 + $0x88] sm:$0xff]
    %v3147 = vld [vmem:[%s3128 + $0x90] sm:$0xff]
    %v3148 = vld [vmem:[%s3128 + $0x98] sm:$0xff]
    %v3149 = vld [vmem:[%s3128 + $0xa0] sm:$0xff]
    %v3150 = vld [vmem:[%s3128 + $0xa8] sm:$0xff]
    %v3151 = vld [vmem:[%s3128 + $0xb0] sm:$0xff]
    %v3152 = vld [vmem:[%s3128 + $0xb8] sm:$0xff]
    %v3153 = vld [vmem:[%s3128 + $0xc0] sm:$0xff]
    %v3154 = vld [vmem:[%s3128 + $0xc8] sm:$0xff]
    %v3155 = vld [vmem:[%s3128 + $0xd0] sm:$0xff]
    %v3156 = vld [vmem:[%s3128 + $0xd8] sm:$0xff]
    %v3157 = vld [vmem:[%s3128 + $0xe0] sm:$0xff]
    %v3158 = vld [vmem:[%s3128 + $0xe8] sm:$0xff]
    %v3159 = vld [vmem:[%s3128 + $0xf0] sm:$0xff]
    %v3160 = vld [vmem:[%s3128 + $0xf8] sm:$0xff]
    %s3161 = scalar_lea.vmem [#allocation7], 768
    %v3162 = vld [vmem:[%s3161] sm:$0xff]
    %v3163 = vld [vmem:[%s3161 + $0x8] sm:$0xff]
    %v3164 = vld [vmem:[%s3161 + $0x10] sm:$0xff]
    %v3165 = vld [vmem:[%s3161 + $0x18] sm:$0xff]
    %v3166 = vld [vmem:[%s3161 + $0x20] sm:$0xff]
    %v3167 = vld [vmem:[%s3161 + $0x28] sm:$0xff]
    %v3168 = vld [vmem:[%s3161 + $0x30] sm:$0xff]
    %v3169 = vld [vmem:[%s3161 + $0x38] sm:$0xff]
    %v3170 = vld [vmem:[%s3161 + $0x40] sm:$0xff]
    %v3171 = vld [vmem:[%s3161 + $0x48] sm:$0xff]
    %v3172 = vld [vmem:[%s3161 + $0x50] sm:$0xff]
    %v3173 = vld [vmem:[%s3161 + $0x58] sm:$0xff]
    %v3174 = vld [vmem:[%s3161 + $0x60] sm:$0xff]
    %v3175 = vld [vmem:[%s3161 + $0x68] sm:$0xff]
    %v3176 = vld [vmem:[%s3161 + $0x70] sm:$0xff]
    %v3177 = vld [vmem:[%s3161 + $0x78] sm:$0xff]
    %v3178 = vld [vmem:[%s3161 + $0x80] sm:$0xff]
    %v3179 = vld [vmem:[%s3161 + $0x88] sm:$0xff]
    %v3180 = vld [vmem:[%s3161 + $0x90] sm:$0xff]
    %v3181 = vld [vmem:[%s3161 + $0x98] sm:$0xff]
    %v3182 = vld [vmem:[%s3161 + $0xa0] sm:$0xff]
    %v3183 = vld [vmem:[%s3161 + $0xa8] sm:$0xff]
    %v3184 = vld [vmem:[%s3161 + $0xb0] sm:$0xff]
    %v3185 = vld [vmem:[%s3161 + $0xb8] sm:$0xff]
    %v3186 = vld [vmem:[%s3161 + $0xc0] sm:$0xff]
    %v3187 = vld [vmem:[%s3161 + $0xc8] sm:$0xff]
    %v3188 = vld [vmem:[%s3161 + $0xd0] sm:$0xff]
    %v3189 = vld [vmem:[%s3161 + $0xd8] sm:$0xff]
    %v3190 = vld [vmem:[%s3161 + $0xe0] sm:$0xff]
    %v3191 = vld [vmem:[%s3161 + $0xe8] sm:$0xff]
    %v3192 = vld [vmem:[%s3161 + $0xf0] sm:$0xff]
    %v3193 = vld [vmem:[%s3161 + $0xf8] sm:$0xff]
    %v3194 = vrot.slane %v2910, 1
    %v3195 = vrot.slane %v2912, 2
    %v3196 = vor.u32 %v3194, %v3195
    %v3197 = vrot.slane %v2917, 1
    %v3198 = vrot.slane %v2919, 2
    %v3199 = vor.u32 %v3197, %v3198
    %v3234 = vunpack.c.l.b16 %v3162
    %v3235 = vunpack.c.h.b16 %v3162
    %v3236 = vunpack.c.l.b16 %v3163
    %v3237 = vunpack.c.h.b16 %v3163
    %v3238 = vunpack.c.l.b16 %v3164
    %v3239 = vunpack.c.h.b16 %v3164
    %v3240 = vunpack.c.l.b16 %v3165
    %v3241 = vunpack.c.h.b16 %v3165
    %v3242 = vunpack.c.l.b16 %v3166
    %v3243 = vunpack.c.h.b16 %v3166
    %v3244 = vunpack.c.l.b16 %v3167
    %v3245 = vunpack.c.h.b16 %v3167
    %v3246 = vunpack.c.l.b16 %v3168
    %v3247 = vunpack.c.h.b16 %v3168
    %v3248 = vunpack.c.l.b16 %v3169
    %v3249 = vunpack.c.h.b16 %v3169
    %v3250 = vunpack.c.l.b16 %v3170
    %v3251 = vunpack.c.h.b16 %v3170
    %v3252 = vunpack.c.l.b16 %v3171
    %v3253 = vunpack.c.h.b16 %v3171
    %v3254 = vunpack.c.l.b16 %v3172
    %v3255 = vunpack.c.h.b16 %v3172
    %v3256 = vunpack.c.l.b16 %v3173
    %v3257 = vunpack.c.h.b16 %v3173
    %v3258 = vunpack.c.l.b16 %v3174
    %v3259 = vunpack.c.h.b16 %v3174
    %v3260 = vunpack.c.l.b16 %v3175
    %v3261 = vunpack.c.h.b16 %v3175
    %v3262 = vunpack.c.l.b16 %v3176
    %v3263 = vunpack.c.h.b16 %v3176
    %v3264 = vunpack.c.l.b16 %v3177
    %v3265 = vunpack.c.h.b16 %v3177
    %v3266 = vunpack.c.l.b16 %v3178
    %v3267 = vunpack.c.h.b16 %v3178
    %v3268 = vunpack.c.l.b16 %v3179
    %v3269 = vunpack.c.h.b16 %v3179
    %v3270 = vunpack.c.l.b16 %v3180
    %v3271 = vunpack.c.h.b16 %v3180
    %v3272 = vunpack.c.l.b16 %v3181
    %v3273 = vunpack.c.h.b16 %v3181
    %v3274 = vunpack.c.l.b16 %v3182
    %v3275 = vunpack.c.h.b16 %v3182
    %v3276 = vunpack.c.l.b16 %v3183
    %v3277 = vunpack.c.h.b16 %v3183
    %v3278 = vunpack.c.l.b16 %v3184
    %v3279 = vunpack.c.h.b16 %v3184
    %v3280 = vunpack.c.l.b16 %v3185
    %v3281 = vunpack.c.h.b16 %v3185
    %v3282 = vunpack.c.l.b16 %v3186
    %v3283 = vunpack.c.h.b16 %v3186
    %v3284 = vunpack.c.l.b16 %v3187
    %v3285 = vunpack.c.h.b16 %v3187
    %v3286 = vunpack.c.l.b16 %v3188
    %v3287 = vunpack.c.h.b16 %v3188
    %v3288 = vunpack.c.l.b16 %v3189
    %v3289 = vunpack.c.h.b16 %v3189
    %v3290 = vunpack.c.l.b16 %v3190
    %v3291 = vunpack.c.h.b16 %v3190
    %v3292 = vunpack.c.l.b16 %v3191
    %v3293 = vunpack.c.h.b16 %v3191
    %v3294 = vunpack.c.l.b16 %v3192
    %v3295 = vunpack.c.h.b16 %v3192
    %v3296 = vunpack.c.l.b16 %v3193
    %v3297 = vunpack.c.h.b16 %v3193
    %v3298 = vpack.c.b16 %v3236, %v3234
    %v3299 = vpack.c.b16 %v3237, %v3235
    %v3300 = vpack.c.b16 %v3240, %v3238
    %v3301 = vpack.c.b16 %v3241, %v3239
    %v3302 = vpack.c.b16 %v3244, %v3242
    %v3303 = vpack.c.b16 %v3245, %v3243
    %v3304 = vpack.c.b16 %v3248, %v3246
    %v3305 = vpack.c.b16 %v3249, %v3247
    %v3306 = vpack.c.b16 %v3252, %v3250
    %v3307 = vpack.c.b16 %v3253, %v3251
    %v3308 = vpack.c.b16 %v3256, %v3254
    %v3309 = vpack.c.b16 %v3257, %v3255
    %v3310 = vpack.c.b16 %v3260, %v3258
    %v3311 = vpack.c.b16 %v3261, %v3259
    %v3312 = vpack.c.b16 %v3264, %v3262
    %v3313 = vpack.c.b16 %v3265, %v3263
    %v3314 = vpack.c.b16 %v3268, %v3266
    %v3315 = vpack.c.b16 %v3269, %v3267
    %v3316 = vpack.c.b16 %v3272, %v3270
    %v3317 = vpack.c.b16 %v3273, %v3271
    %v3318 = vpack.c.b16 %v3276, %v3274
    %v3319 = vpack.c.b16 %v3277, %v3275
    %v3320 = vpack.c.b16 %v3280, %v3278
    %v3321 = vpack.c.b16 %v3281, %v3279
    %v3322 = vpack.c.b16 %v3284, %v3282
    %v3323 = vpack.c.b16 %v3285, %v3283
    %v3324 = vpack.c.b16 %v3288, %v3286
    %v3325 = vpack.c.b16 %v3289, %v3287
    %v3326 = vpack.c.b16 %v3292, %v3290
    %v3327 = vpack.c.b16 %v3293, %v3291
    %v3328 = vpack.c.b16 %v3296, %v3294
    %v3329 = vpack.c.b16 %v3297, %v3295
    %3362 = vmatprep.subr.bf16.mxu0 %v3299
    %3363 = vmatpush1.bf16.msra.mxu0 %v3298
    %3364 = vmatprep.subr.bf16.mxu0 %v3301
    %3365 = vmatpush1.bf16.msra.mxu0 %v3300
    %3366 = vmatprep.subr.bf16.mxu0 %v3303
    %3367 = vmatpush1.bf16.msra.mxu0 %v3302
    %3368 = vmatprep.subr.bf16.mxu0 %v3305
    %3369 = vmatpush1.bf16.msra.mxu0 %v3304
    %3370 = vmatprep.subr.bf16.mxu0 %v3307
    %3371 = vmatpush1.bf16.msra.mxu0 %v3306
    %3372 = vmatprep.subr.bf16.mxu0 %v3309
    %3373 = vmatpush1.bf16.msra.mxu0 %v3308
    %3374 = vmatprep.subr.bf16.mxu0 %v3311
    %3375 = vmatpush1.bf16.msra.mxu0 %v3310
    %3376 = vmatprep.subr.bf16.mxu0 %v3313
    %3377 = vmatpush1.bf16.msra.mxu0 %v3312
    %3378 = vmatprep.subr.bf16.mxu0 %v3315
    %3379 = vmatpush1.bf16.msra.mxu0 %v3314
    %3380 = vmatprep.subr.bf16.mxu0 %v3317
    %3381 = vmatpush1.bf16.msra.mxu0 %v3316
    %3382 = vmatprep.subr.bf16.mxu0 %v3319
    %3383 = vmatpush1.bf16.msra.mxu0 %v3318
    %3384 = vmatprep.subr.bf16.mxu0 %v3321
    %3385 = vmatpush1.bf16.msra.mxu0 %v3320
    %3386 = vmatprep.subr.bf16.mxu0 %v3323
    %3387 = vmatpush1.bf16.msra.mxu0 %v3322
    %3388 = vmatprep.subr.bf16.mxu0 %v3325
    %3389 = vmatpush1.bf16.msra.mxu0 %v3324
    %3390 = vmatprep.subr.bf16.mxu0 %v3327
    %3391 = vmatpush1.bf16.msra.mxu0 %v3326
    %3392 = vmatprep.subr.bf16.mxu0 %v3329
    %3393 = vmatpush1.bf16.msra.mxu0 %v3328
    %3394 = vmatprep.mubr.bf16.mxu0 %v3199
    %3395 = vmatmul.mubr.bf16.gmra.mrb[0].mxu0 %v3196
    %v3396 = vpop.f32.mrb[0].mxu0
    %v3397 = vadd.f32 0.0, %v3396
    %v3398 = vpop.f32.mrb[0].mxu0
    %v3399 = vadd.f32 0.0, %v3398
    %v3400 = vpop.f32.mrb[0].mxu0
    %v3401 = vadd.f32 0.0, %v3400
    %v3402 = vpop.f32.mrb[0].mxu0
    %v3403 = vadd.f32 0.0, %v3402
    %3404 = vdwg.mxu0
    %v3437 = vunpack.c.l.b16 %v2844
    %v3438 = vunpack.c.h.b16 %v2844
    %v3439 = vunpack.c.l.b16 %v2845
    %v3440 = vunpack.c.h.b16 %v2845
    %v3441 = vunpack.c.l.b16 %v2846
    %v3442 = vunpack.c.h.b16 %v2846
    %v3443 = vunpack.c.l.b16 %v2847
    %v3444 = vunpack.c.h.b16 %v2847
    %v3445 = vunpack.c.l.b16 %v2848
    %v3446 = vunpack.c.h.b16 %v2848
    %v3447 = vunpack.c.l.b16 %v2849
    %v3448 = vunpack.c.h.b16 %v2849
    %v3449 = vunpack.c.l.b16 %v2850
    %v3450 = vunpack.c.h.b16 %v2850
    %v3451 = vunpack.c.l.b16 %v2851
    %v3452 = vunpack.c.h.b16 %v2851
    %v3453 = vunpack.c.l.b16 %v2852
    %v3454 = vunpack.c.h.b16 %v2852
    %v3455 = vunpack.c.l.b16 %v2853
    %v3456 = vunpack.c.h.b16 %v2853
    %v3457 = vunpack.c.l.b16 %v2854
    %v3458 = vunpack.c.h.b16 %v2854
    %v3459 = vunpack.c.l.b16 %v2855
    %v3460 = vunpack.c.h.b16 %v2855
    %v3461 = vunpack.c.l.b16 %v2856
    %v3462 = vunpack.c.h.b16 %v2856
    %v3463 = vunpack.c.l.b16 %v2857
    %v3464 = vunpack.c.h.b16 %v2857
    %v3465 = vunpack.c.l.b16 %v2858
    %v3466 = vunpack.c.h.b16 %v2858
    %v3467 = vunpack.c.l.b16 %v2859
    %v3468 = vunpack.c.h.b16 %v2859
    %v3469 = vunpack.c.l.b16 %v2860
    %v3470 = vunpack.c.h.b16 %v2860
    %v3471 = vunpack.c.l.b16 %v2861
    %v3472 = vunpack.c.h.b16 %v2861
    %v3473 = vunpack.c.l.b16 %v2862
    %v3474 = vunpack.c.h.b16 %v2862
    %v3475 = vunpack.c.l.b16 %v2863
    %v3476 = vunpack.c.h.b16 %v2863
    %v3477 = vunpack.c.l.b16 %v2864
    %v3478 = vunpack.c.h.b16 %v2864
    %v3479 = vunpack.c.l.b16 %v2865
    %v3480 = vunpack.c.h.b16 %v2865
    %v3481 = vunpack.c.l.b16 %v2866
    %v3482 = vunpack.c.h.b16 %v2866
    %v3483 = vunpack.c.l.b16 %v2867
    %v3484 = vunpack.c.h.b16 %v2867
    %v3485 = vunpack.c.l.b16 %v2868
    %v3486 = vunpack.c.h.b16 %v2868
    %v3487 = vunpack.c.l.b16 %v2869
    %v3488 = vunpack.c.h.b16 %v2869
    %v3489 = vunpack.c.l.b16 %v2870
    %v3490 = vunpack.c.h.b16 %v2870
    %v3491 = vunpack.c.l.b16 %v2871
    %v3492 = vunpack.c.h.b16 %v2871
    %v3493 = vunpack.c.l.b16 %v2872
    %v3494 = vunpack.c.h.b16 %v2872
    %v3495 = vunpack.c.l.b16 %v2873
    %v3496 = vunpack.c.h.b16 %v2873
    %v3497 = vunpack.c.l.b16 %v2874
    %v3498 = vunpack.c.h.b16 %v2874
    %v3499 = vunpack.c.l.b16 %v2875
    %v3500 = vunpack.c.h.b16 %v2875
    %v3501 = vpack.c.b16 %v3439, %v3437
    %v3502 = vpack.c.b16 %v3440, %v3438
    %v3503 = vpack.c.b16 %v3443, %v3441
    %v3504 = vpack.c.b16 %v3444, %v3442
    %v3505 = vpack.c.b16 %v3447, %v3445
    %v3506 = vpack.c.b16 %v3448, %v3446
    %v3507 = vpack.c.b16 %v3451, %v3449
    %v3508 = vpack.c.b16 %v3452, %v3450
    %v3509 = vpack.c.b16 %v3455, %v3453
    %v3510 = vpack.c.b16 %v3456, %v3454
    %v3511 = vpack.c.b16 %v3459, %v3457
    %v3512 = vpack.c.b16 %v3460, %v3458
    %v3513 = vpack.c.b16 %v3463, %v3461
    %v3514 = vpack.c.b16 %v3464, %v3462
    %v3515 = vpack.c.b16 %v3467, %v3465
    %v3516 = vpack.c.b16 %v3468, %v3466
    %v3517 = vpack.c.b16 %v3471, %v3469
    %v3518 = vpack.c.b16 %v3472, %v3470
    %v3519 = vpack.c.b16 %v3475, %v3473
    %v3520 = vpack.c.b16 %v3476, %v3474
    %v3521 = vpack.c.b16 %v3479, %v3477
    %v3522 = vpack.c.b16 %v3480, %v3478
    %v3523 = vpack.c.b16 %v3483, %v3481
    %v3524 = vpack.c.b16 %v3484, %v3482
    %v3525 = vpack.c.b16 %v3487, %v3485
    %v3526 = vpack.c.b16 %v3488, %v3486
    %v3527 = vpack.c.b16 %v3491, %v3489
    %v3528 = vpack.c.b16 %v3492, %v3490
    %v3529 = vpack.c.b16 %v3495, %v3493
    %v3530 = vpack.c.b16 %v3496, %v3494
    %v3531 = vpack.c.b16 %v3499, %v3497
    %v3532 = vpack.c.b16 %v3500, %v3498
    %3565 = vmatprep.subr.bf16.mxu0 %v3502
    %3566 = vmatpush1.bf16.msra.mxu0 %v3501
    %3567 = vmatprep.subr.bf16.mxu0 %v3504
    %3568 = vmatpush1.bf16.msra.mxu0 %v3503
    %3569 = vmatprep.subr.bf16.mxu0 %v3506
    %3570 = vmatpush1.bf16.msra.mxu0 %v3505
    %3571 = vmatprep.subr.bf16.mxu0 %v3508
    %3572 = vmatpush1.bf16.msra.mxu0 %v3507
    %3573 = vmatprep.subr.bf16.mxu0 %v3510
    %3574 = vmatpush1.bf16.msra.mxu0 %v3509
    %3575 = vmatprep.subr.bf16.mxu0 %v3512
    %3576 = vmatpush1.bf16.msra.mxu0 %v3511
    %3577 = vmatprep.subr.bf16.mxu0 %v3514
    %3578 = vmatpush1.bf16.msra.mxu0 %v3513
    %3579 = vmatprep.subr.bf16.mxu0 %v3516
    %3580 = vmatpush1.bf16.msra.mxu0 %v3515
    %3581 = vmatprep.subr.bf16.mxu0 %v3518
    %3582 = vmatpush1.bf16.msra.mxu0 %v3517
    %3583 = vmatprep.subr.bf16.mxu0 %v3520
    %3584 = vmatpush1.bf16.msra.mxu0 %v3519
    %3585 = vmatprep.subr.bf16.mxu0 %v3522
    %3586 = vmatpush1.bf16.msra.mxu0 %v3521
    %3587 = vmatprep.subr.bf16.mxu0 %v3524
    %3588 = vmatpush1.bf16.msra.mxu0 %v3523
    %3589 = vmatprep.subr.bf16.mxu0 %v3526
    %3590 = vmatpush1.bf16.msra.mxu0 %v3525
    %3591 = vmatprep.subr.bf16.mxu0 %v3528
    %3592 = vmatpush1.bf16.msra.mxu0 %v3527
    %3593 = vmatprep.subr.bf16.mxu0 %v3530
    %3594 = vmatpush1.bf16.msra.mxu0 %v3529
    %3595 = vmatprep.subr.bf16.mxu0 %v3532
    %3596 = vmatpush1.bf16.msra.mxu0 %v3531
    %3597 = vmatprep.mubr.bf16.mxu0 %v2843
    %3598 = vmatmul.mubr.bf16.gmra.mrb[0].mxu0 %v2842
    %v3599 = vpop.f32.mrb[0].mxu0
    %v3600 = vadd.f32 %v3120, %v3599
    %v3601 = vpop.f32.mrb[0].mxu0
    %v3602 = vadd.f32 %v3122, %v3601
    %v3603 = vpop.f32.mrb[0].mxu0
    %v3604 = vadd.f32 %v3124, %v3603
    %v3605 = vpop.f32.mrb[0].mxu0
    %v3606 = vadd.f32 %v3126, %v3605
    %3607 = vdwg.mxu0
    %v3610 = vrot.slane %v2842, 1
    %v3611 = vrot.slane %v2843, 1
    %v3646 = vunpack.c.l.b16 %v3129
    %v3647 = vunpack.c.h.b16 %v3129
    %v3648 = vunpack.c.l.b16 %v3130
    %v3649 = vunpack.c.h.b16 %v3130
    %v3650 = vunpack.c.l.b16 %v3131
    %v3651 = vunpack.c.h.b16 %v3131
    %v3652 = vunpack.c.l.b16 %v3132
    %v3653 = vunpack.c.h.b16 %v3132
    %v3654 = vunpack.c.l.b16 %v3133
    %v3655 = vunpack.c.h.b16 %v3133
    %v3656 = vunpack.c.l.b16 %v3134
    %v3657 = vunpack.c.h.b16 %v3134
    %v3658 = vunpack.c.l.b16 %v3135
    %v3659 = vunpack.c.h.b16 %v3135
    %v3660 = vunpack.c.l.b16 %v3136
    %v3661 = vunpack.c.h.b16 %v3136
    %v3662 = vunpack.c.l.b16 %v3137
    %v3663 = vunpack.c.h.b16 %v3137
    %v3664 = vunpack.c.l.b16 %v3138
    %v3665 = vunpack.c.h.b16 %v3138
    %v3666 = vunpack.c.l.b16 %v3139
    %v3667 = vunpack.c.h.b16 %v3139
    %v3668 = vunpack.c.l.b16 %v3140
    %v3669 = vunpack.c.h.b16 %v3140
    %v3670 = vunpack.c.l.b16 %v3141
    %v3671 = vunpack.c.h.b16 %v3141
    %v3672 = vunpack.c.l.b16 %v3142
    %v3673 = vunpack.c.h.b16 %v3142
    %v3674 = vunpack.c.l.b16 %v3143
    %v3675 = vunpack.c.h.b16 %v3143
    %v3676 = vunpack.c.l.b16 %v3144
    %v3677 = vunpack.c.h.b16 %v3144
    %v3678 = vunpack.c.l.b16 %v3145
    %v3679 = vunpack.c.h.b16 %v3145
    %v3680 = vunpack.c.l.b16 %v3146
    %v3681 = vunpack.c.h.b16 %v3146
    %v3682 = vunpack.c.l.b16 %v3147
    %v3683 = vunpack.c.h.b16 %v3147
    %v3684 = vunpack.c.l.b16 %v3148
    %v3685 = vunpack.c.h.b16 %v3148
    %v3686 = vunpack.c.l.b16 %v3149
    %v3687 = vunpack.c.h.b16 %v3149
    %v3688 = vunpack.c.l.b16 %v3150
    %v3689 = vunpack.c.h.b16 %v3150
    %v3690 = vunpack.c.l.b16 %v3151
    %v3691 = vunpack.c.h.b16 %v3151
    %v3692 = vunpack.c.l.b16 %v3152
    %v3693 = vunpack.c.h.b16 %v3152
    %v3694 = vunpack.c.l.b16 %v3153
    %v3695 = vunpack.c.h.b16 %v3153
    %v3696 = vunpack.c.l.b16 %v3154
    %v3697 = vunpack.c.h.b16 %v3154
    %v3698 = vunpack.c.l.b16 %v3155
    %v3699 = vunpack.c.h.b16 %v3155
    %v3700 = vunpack.c.l.b16 %v3156
    %v3701 = vunpack.c.h.b16 %v3156
    %v3702 = vunpack.c.l.b16 %v3157
    %v3703 = vunpack.c.h.b16 %v3157
    %v3704 = vunpack.c.l.b16 %v3158
    %v3705 = vunpack.c.h.b16 %v3158
    %v3706 = vunpack.c.l.b16 %v3159
    %v3707 = vunpack.c.h.b16 %v3159
    %v3708 = vunpack.c.l.b16 %v3160
    %v3709 = vunpack.c.h.b16 %v3160
    %v3710 = vpack.c.b16 %v3648, %v3646
    %v3711 = vpack.c.b16 %v3649, %v3647
    %v3712 = vpack.c.b16 %v3652, %v3650
    %v3713 = vpack.c.b16 %v3653, %v3651
    %v3714 = vpack.c.b16 %v3656, %v3654
    %v3715 = vpack.c.b16 %v3657, %v3655
    %v3716 = vpack.c.b16 %v3660, %v3658
    %v3717 = vpack.c.b16 %v3661, %v3659
    %v3718 = vpack.c.b16 %v3664, %v3662
    %v3719 = vpack.c.b16 %v3665, %v3663
    %v3720 = vpack.c.b16 %v3668, %v3666
    %v3721 = vpack.c.b16 %v3669, %v3667
    %v3722 = vpack.c.b16 %v3672, %v3670
    %v3723 = vpack.c.b16 %v3673, %v3671
    %v3724 = vpack.c.b16 %v3676, %v3674
    %v3725 = vpack.c.b16 %v3677, %v3675
    %v3726 = vpack.c.b16 %v3680, %v3678
    %v3727 = vpack.c.b16 %v3681, %v3679
    %v3728 = vpack.c.b16 %v3684, %v3682
    %v3729 = vpack.c.b16 %v3685, %v3683
    %v3730 = vpack.c.b16 %v3688, %v3686
    %v3731 = vpack.c.b16 %v3689, %v3687
    %v3732 = vpack.c.b16 %v3692, %v3690
    %v3733 = vpack.c.b16 %v3693, %v3691
    %v3734 = vpack.c.b16 %v3696, %v3694
    %v3735 = vpack.c.b16 %v3697, %v3695
    %v3736 = vpack.c.b16 %v3700, %v3698
    %v3737 = vpack.c.b16 %v3701, %v3699
    %v3738 = vpack.c.b16 %v3704, %v3702
    %v3739 = vpack.c.b16 %v3705, %v3703
    %v3740 = vpack.c.b16 %v3708, %v3706
    %v3741 = vpack.c.b16 %v3709, %v3707
    %3774 = vmatprep.subr.bf16.mxu0 %v3711
    %3775 = vmatpush1.bf16.msra.mxu0 %v3710
    %3776 = vmatprep.subr.bf16.mxu0 %v3713
    %3777 = vmatpush1.bf16.msra.mxu0 %v3712
    %3778 = vmatprep.subr.bf16.mxu0 %v3715
    %3779 = vmatpush1.bf16.msra.mxu0 %v3714
    %3780 = vmatprep.subr.bf16.mxu0 %v3717
    %3781 = vmatpush1.bf16.msra.mxu0 %v3716
    %3782 = vmatprep.subr.bf16.mxu0 %v3719
    %3783 = vmatpush1.bf16.msra.mxu0 %v3718
    %3784 = vmatprep.subr.bf16.mxu0 %v3721
    %3785 = vmatpush1.bf16.msra.mxu0 %v3720
    %3786 = vmatprep.subr.bf16.mxu0 %v3723
    %3787 = vmatpush1.bf16.msra.mxu0 %v3722
    %3788 = vmatprep.subr.bf16.mxu0 %v3725
    %3789 = vmatpush1.bf16.msra.mxu0 %v3724
    %3790 = vmatprep.subr.bf16.mxu0 %v3727
    %3791 = vmatpush1.bf16.msra.mxu0 %v3726
    %3792 = vmatprep.subr.bf16.mxu0 %v3729
    %3793 = vmatpush1.bf16.msra.mxu0 %v3728
    %3794 = vmatprep.subr.bf16.mxu0 %v3731
    %3795 = vmatpush1.bf16.msra.mxu0 %v3730
    %3796 = vmatprep.subr.bf16.mxu0 %v3733
    %3797 = vmatpush1.bf16.msra.mxu0 %v3732
    %3798 = vmatprep.subr.bf16.mxu0 %v3735
    %3799 = vmatpush1.bf16.msra.mxu0 %v3734
    %3800 = vmatprep.subr.bf16.mxu0 %v3737
    %3801 = vmatpush1.bf16.msra.mxu0 %v3736
    %3802 = vmatprep.subr.bf16.mxu0 %v3739
    %3803 = vmatpush1.bf16.msra.mxu0 %v3738
    %3804 = vmatprep.subr.bf16.mxu0 %v3741
    %3805 = vmatpush1.bf16.msra.mxu0 %v3740
    %3806 = vmatprep.mubr.bf16.mxu0 %v3611
    %3807 = vmatmul.mubr.bf16.gmra.mrb[0].mxu0 %v3610
    %v3808 = vpop.f32.mrb[0].mxu0
    %v3809 = vadd.f32 %v3397, %v3808
    %v3810 = vpop.f32.mrb[0].mxu0
    %v3811 = vadd.f32 %v3399, %v3810
    %v3812 = vpop.f32.mrb[0].mxu0
    %v3813 = vadd.f32 %v3401, %v3812
    %v3814 = vpop.f32.mrb[0].mxu0
    %v3815 = vadd.f32 %v3403, %v3814
    %3816 = vdwg.mxu0
    %v3817 = vadd.f32 %v3600, %v3809
    %v3818 = vadd.f32 %v3602, %v3811
    %v3819 = vadd.f32 %v3604, %v3813
    %v3820 = vadd.f32 %v3606, %v3815
    %v3821 = vld [vmem:[%s8] sm:$0x3]
    %v3823 = vlaneseq
    %v3824 = vshrl.u32 %v3823, 7
    %v3825 = vsub.s32 0, %v3824
    %v3826 = vrot.slane %v3821, %v3825
    %v3827 = vlaneseq
    %v3828 = vshrl.u32 %v3827, 7
    %v3829 = vsub.s32 1, %v3828
    %v3830 = vrot.slane %v3821, %v3829
    %v3833 = vadd.f32 %v3817, %v3826
    %v3834 = vadd.f32 %v3818, %v3830
    %v3835 = vadd.f32 %v3819, %v3826
    %v3836 = vadd.f32 %v3820, %v3830
    %v3837 = vmax.f32 %v3833, 0.0
    %v3838 = vmax.f32 %v3834, 0.0
    %v3839 = vmax.f32 %v3835, 0.0
    %v3840 = vmax.f32 %v3836, 0.0
    %v3843 = vrot.slane %v3839, 1
    %v3844 = vrot.slane %v3840, 1
    %vm3847 = vcmask 1040384
    %v3848 = vsel %vm3847, %v3837, %v3843
    %v3849 = vsel %vm3847, %v3838, %v3844
    %v3850 = vpack.c.bf16 %v3848, %v3848
    %v3851 = vpack.c.bf16 %v3849, %v3849
    %v3852 = vld [vmem:[%s9] sm:$0xf]
    %v3853 = vld [vmem:[%s9 + $0x4] sm:$0xf]
    %v3854 = vld [vmem:[%s9 + $0x8] sm:$0xf]
    %v3855 = vld [vmem:[%s9 + $0xc] sm:$0xf]
    %v3856 = vld [vmem:[%s9 + $0x10] sm:$0xf]
    %v3857 = vld [vmem:[%s9 + $0x14] sm:$0xf]
    %v3858 = vld [vmem:[%s9 + $0x18] sm:$0xf]
    %v3859 = vld [vmem:[%s9 + $0x1c] sm:$0xf]
    %v3860 = vld [vmem:[%s9 + $0x20] sm:$0xf]
    %v3861 = vld [vmem:[%s9 + $0x24] sm:$0xf]
    %v3862 = vld [vmem:[%s9 + $0x28] sm:$0xf]
    %v3863 = vld [vmem:[%s9 + $0x2c] sm:$0xf]
    %v3864 = vld [vmem:[%s9 + $0x30] sm:$0xf]
    %v3865 = vld [vmem:[%s9 + $0x34] sm:$0xf]
    %v3866 = vld [vmem:[%s9 + $0x38] sm:$0xf]
    %v3867 = vld [vmem:[%s9 + $0x3c] sm:$0xf]
    %v3868 = vld [vmem:[%s9 + $0x40] sm:$0xf]
    %v3869 = vld [vmem:[%s9 + $0x44] sm:$0xf]
    %v3870 = vld [vmem:[%s9 + $0x48] sm:$0xf]
    %v3871 = vld [vmem:[%s9 + $0x4c] sm:$0xf]
    %v3872 = vld [vmem:[%s9 + $0x50] sm:$0xf]
    %v3873 = vld [vmem:[%s9 + $0x54] sm:$0xf]
    %v3874 = vld [vmem:[%s9 + $0x58] sm:$0xf]
    %v3875 = vld [vmem:[%s9 + $0x5c] sm:$0xf]
    %v3876 = vld [vmem:[%s9 + $0x60] sm:$0xf]
    %v3877 = vld [vmem:[%s9 + $0x64] sm:$0xf]
    %v3878 = vld [vmem:[%s9 + $0x68] sm:$0xf]
    %v3879 = vld [vmem:[%s9 + $0x6c] sm:$0xf]
    %v3880 = vld [vmem:[%s9 + $0x70] sm:$0xf]
    %v3881 = vld [vmem:[%s9 + $0x74] sm:$0xf]
    %v3882 = vld [vmem:[%s9 + $0x78] sm:$0xf]
    %v3883 = vld [vmem:[%s9 + $0x7c] sm:$0xf]
    %v3884 = vld [vmem:[%s10] sm:$0x1]
    %v3886 = vlaneseq
    %v3887 = vshrl.u32 %v3886, 7
    %v3888 = vsub.s32 0, %v3887
    %v3889 = vrot.slane %v3884, %v3888
    %v3923 = vunpack.c.l.b16 %v3852
    %v3924 = vunpack.c.l.b16 %v3853
    %v3925 = vunpack.c.l.b16 %v3854
    %v3926 = vunpack.c.l.b16 %v3855
    %v3927 = vunpack.c.l.b16 %v3856
    %v3928 = vunpack.c.l.b16 %v3857
    %v3929 = vunpack.c.l.b16 %v3858
    %v3930 = vunpack.c.l.b16 %v3859
    %v3931 = vunpack.c.l.b16 %v3860
    %v3932 = vunpack.c.l.b16 %v3861
    %v3933 = vunpack.c.l.b16 %v3862
    %v3934 = vunpack.c.l.b16 %v3863
    %v3935 = vunpack.c.l.b16 %v3864
    %v3936 = vunpack.c.l.b16 %v3865
    %v3937 = vunpack.c.l.b16 %v3866
    %v3938 = vunpack.c.l.b16 %v3867
    %v3939 = vunpack.c.l.b16 %v3868
    %v3940 = vunpack.c.l.b16 %v3869
    %v3941 = vunpack.c.l.b16 %v3870
    %v3942 = vunpack.c.l.b16 %v3871
    %v3943 = vunpack.c.l.b16 %v3872
    %v3944 = vunpack.c.l.b16 %v3873
    %v3945 = vunpack.c.l.b16 %v3874
    %v3946 = vunpack.c.l.b16 %v3875
    %v3947 = vunpack.c.l.b16 %v3876
    %v3948 = vunpack.c.l.b16 %v3877
    %v3949 = vunpack.c.l.b16 %v3878
    %v3950 = vunpack.c.l.b16 %v3879
    %v3951 = vunpack.c.l.b16 %v3880
    %v3952 = vunpack.c.l.b16 %v3881
    %v3953 = vunpack.c.l.b16 %v3882
    %v3954 = vunpack.c.l.b16 %v3883
    %v3955 = vpack.c.b16 %v3924, %v3923
    %v3956 = vpack.c.b16 %v3926, %v3925
    %v3957 = vpack.c.b16 %v3928, %v3927
    %v3958 = vpack.c.b16 %v3930, %v3929
    %v3959 = vpack.c.b16 %v3932, %v3931
    %v3960 = vpack.c.b16 %v3934, %v3933
    %v3961 = vpack.c.b16 %v3936, %v3935
    %v3962 = vpack.c.b16 %v3938, %v3937
    %v3963 = vpack.c.b16 %v3940, %v3939
    %v3964 = vpack.c.b16 %v3942, %v3941
    %v3965 = vpack.c.b16 %v3944, %v3943
    %v3966 = vpack.c.b16 %v3946, %v3945
    %v3967 = vpack.c.b16 %v3948, %v3947
    %v3968 = vpack.c.b16 %v3950, %v3949
    %v3969 = vpack.c.b16 %v3952, %v3951
    %v3970 = vpack.c.b16 %v3954, %v3953
    %3987 = vmatprep.subr.bf16.mxu0 0
    %3988 = vmatpush1.bf16.msra.mxu0 %v3955
    %3989 = vmatprep.subr.bf16.mxu0 0
    %3990 = vmatpush1.bf16.msra.mxu0 %v3956
    %3991 = vmatprep.subr.bf16.mxu0 0
    %3992 = vmatpush1.bf16.msra.mxu0 %v3957
    %3993 = vmatprep.subr.bf16.mxu0 0
    %3994 = vmatpush1.bf16.msra.mxu0 %v3958
    %3995 = vmatprep.subr.bf16.mxu0 0
    %3996 = vmatpush1.bf16.msra.mxu0 %v3959
    %3997 = vmatprep.subr.bf16.mxu0 0
    %3998 = vmatpush1.bf16.msra.mxu0 %v3960
    %3999 = vmatprep.subr.bf16.mxu0 0
    %4000 = vmatpush1.bf16.msra.mxu0 %v3961
    %4001 = vmatprep.subr.bf16.mxu0 0
    %4002 = vmatpush1.bf16.msra.mxu0 %v3962
    %4003 = vmatprep.subr.bf16.mxu0 0
    %4004 = vmatpush1.bf16.msra.mxu0 %v3963
    %4005 = vmatprep.subr.bf16.mxu0 0
    %4006 = vmatpush1.bf16.msra.mxu0 %v3964
    %4007 = vmatprep.subr.bf16.mxu0 0
    %4008 = vmatpush1.bf16.msra.mxu0 %v3965
    %4009 = vmatprep.subr.bf16.mxu0 0
    %4010 = vmatpush1.bf16.msra.mxu0 %v3966
    %4011 = vmatprep.subr.bf16.mxu0 0
    %4012 = vmatpush1.bf16.msra.mxu0 %v3967
    %4013 = vmatprep.subr.bf16.mxu0 0
    %4014 = vmatpush1.bf16.msra.mxu0 %v3968
    %4015 = vmatprep.subr.bf16.mxu0 0
    %4016 = vmatpush1.bf16.msra.mxu0 %v3969
    %4017 = vmatprep.subr.bf16.mxu0 0
    %4018 = vmatpush1.bf16.msra.mxu0 %v3970
    %4019 = vmatprep.mubr.bf16.mxu0 %v3851
    %4020 = vmatmul.mubr.bf16.gmra.mrb[0].mxu0 %v3850
    %v4021 = vpop.f32.mrb[0].mxu0
    %v4022 = vadd.f32 %v3889, %v4021
    %v4023 = vpop.f32.mrb[0].mxu0
    %v4024 = vpop.f32.mrb[0].mxu0
    %v4025 = vpop.f32.mrb[0].mxu0
    %4026 = vdwg.mxu0
    %4027 = vst [vmem:[#allocation8] sm:$0x3] %v4022
    // Predicated region
    $region58: #{dqn_forward.1} parent=1 // pred_check
      _
    $region59: #{dqn_forward.1} parent=1 // pred_check_branch
      %4029 = sbr.rel (0) target = $region61
    $region60: #{dqn_forward.1} parent=1 // pred_region
      %s4031 = ssub.s32 32, 32
      %4032 = vsyncadd [#allocation4], %s4031
      %s4034 = sshll.u32 [#allocation8], 4
      %s4035 = int_to_ptr.vmem [resolvable:$true] %s4034
      %4037 = dma.vmem_to_hbm [thread:$0]  %s4035, 32, %s11, [#allocation4]
    $region61: #{dqn_forward.1} parent=1 // pred_fallthru
      _
    // Predicated region
    $region62: #{dqn_forward.1} parent=1 // pred_check
      _
    $region63: #{dqn_forward.1} parent=1 // pred_check_branch
      %4039 = sbr.rel (0) target = $region65
    $region64: #{dqn_forward.1} parent=1 // pred_region
      %4040 = dma.done [#allocation4], 32
    $region65: #{dqn_forward.1} parent=1 // pred_fallthru
      _
    %4041 = vsyncpa [#allocation3], 1
    %4042 = vsyncpa [#allocation6], 1
    %4043 = vsyncpa [#allocation4], 1

</llo_original>
